<compile_context>
chip_gen: v5e
topology: v5e:2x2
jax: 0.10.0
libtpu: 0.0.40
codegen_flags: <defaults>
</compile_context>

<pallas_src>
import functools

import jax
import jax.numpy as jnp
from jax import lax
from jax.experimental import pallas as pl
from jax.experimental.pallas import tpu as pltpu


def _dense_bottleneck_kernel(x_ref, s1_ref, t1_ref, w1_ref, b1_ref, w2_ref,
                             o_ref, pad_ref, *, H, W, Cin, Cm, Cg):
    # x_ref   : (1, H, W, Cin)  f32   input tile (one batch element)
    # s1_ref  : (1, Cin)        f32   BN1 scale
    # t1_ref  : (1, Cin)        f32   BN1 shift
    # w1_ref  : (Cin, Cm)       bf16  1x1 conv weight with BN2 scale folded in
    # b1_ref  : (1, Cm)         f32   BN2 shift (acts as conv1 bias)
    # w2_ref  : (9, Cm, Cg)     bf16  3x3 conv weight, taps row-major (ky*3+kx)
    # o_ref   : (1, H, W, Cg)   f32   new-features output tile
    # pad_ref : (H+2, W+2, Cm)  bf16  zero-padded cv1 activations (scratch)

    # --- zero only the 1-pixel halo border of the scratch; the interior is
    # fully overwritten below.  Done every grid step (not @pl.when(pid==0))
    # so it stays correct when the "parallel" batch axis is split across
    # TensorCores, each with its own scratch.
    zrow = jnp.zeros((1, W + 2, Cm), pad_ref.dtype)
    zcol = jnp.zeros((H + 2, 1, Cm), pad_ref.dtype)
    pad_ref[0:1, :, :] = zrow
    pad_ref[H + 1:H + 2, :, :] = zrow
    pad_ref[:, 0:1, :] = zcol
    pad_ref[:, W + 1:W + 2, :] = zcol

    # --- BN1 + ReLU (f32 elementwise), then 1x1 conv (+ folded BN2) + ReLU
    # as a single (H*W, Cin) @ (Cin, Cm) matmul: bf16 MXU inputs, f32 accum.
    x = x_ref[0].reshape(H * W, Cin)                                  # f32
    a = jnp.maximum(x * s1_ref[...] + t1_ref[...], 0.0)              # (H*W, Cin)
    z = jnp.dot(a.astype(jnp.bfloat16), w1_ref[...],
                preferred_element_type=jnp.float32) + b1_ref[...]     # (H*W, Cm)
    h = jnp.maximum(z, 0.0)

    # store post-activation into the padded scratch (bf16 halves VMEM + tap BW)
    pad_ref[1:H + 1, 1:W + 1, :] = h.reshape(H, W, Cm).astype(pad_ref.dtype)

    # --- 3x3 conv (pad=1) as 9 whole-image (H*W, Cm) @ (Cm, Cg) matmuls.
    acc = jnp.zeros((H * W, Cg), jnp.float32)
    for dy in range(3):
        for dx in range(3):
            tap = pad_ref[dy:dy + H, dx:dx + W, :].reshape(H * W, Cm)  # bf16
            acc = acc + jnp.dot(tap, w2_ref[dy * 3 + dx],
                                preferred_element_type=jnp.float32)

    o_ref[0] = acc.reshape(H, W, Cg).astype(o_ref.dtype)


def dense_bottleneck_pallas(x_nhwc, s1, t1, w1, b1, w2):
    """One denseBottleneck: returns only the `new_features` (N, H, W, growth)."""
    N, H, W, Cin = x_nhwc.shape
    Cm = w1.shape[1]
    Cg = w2.shape[2]

    kernel = functools.partial(_dense_bottleneck_kernel,
                               H=H, W=W, Cin=Cin, Cm=Cm, Cg=Cg)

    return pl.pallas_call(
        kernel,
        out_shape=jax.ShapeDtypeStruct((N, H, W, Cg), x_nhwc.dtype),
        grid_spec=pltpu.PrefetchScalarGridSpec(
            num_scalar_prefetch=0,
            grid=(N,),
            in_specs=[
                pl.BlockSpec((1, H, W, Cin), lambda n: (n, 0, 0, 0)),
                pl.BlockSpec((1, Cin), lambda n: (0, 0)),
                pl.BlockSpec((1, Cin), lambda n: (0, 0)),
                pl.BlockSpec((Cin, Cm), lambda n: (0, 0)),
                pl.BlockSpec((1, Cm), lambda n: (0, 0)),
                pl.BlockSpec((9, Cm, Cg), lambda n: (0, 0, 0)),
            ],
            out_specs=pl.BlockSpec((1, H, W, Cg), lambda n: (n, 0, 0, 0)),
            scratch_shapes=[pltpu.VMEM((H + 2, W + 2, Cm), jnp.bfloat16)],
        ),
        compiler_params=pltpu.CompilerParams(
            # batch elements are independent -> shard across TCs on v7x
            dimension_semantics=("parallel",),
            vmem_limit_bytes=32 * 1024 * 1024,
        ),
    )(x_nhwc, s1, t1, w1, b1, w2)


def dense_layer_pallas(x_nhwc, blocks_params):
    """denseLayer forward: n dense blocks of nl bottlenecks with channel concat."""
    feats = x_nhwc
    for block in blocks_params:
        for p in block:
            new = dense_bottleneck_pallas(feats, p["s1"], p["t1"],
                                          p["w1"], p["b1"], p["w2"])
            # torch.cat([x, new_features], 1) -> last-axis concat in NHWC.
            feats = jnp.concatenate([feats, new], axis=-1)
    return feats


def make_bottleneck_params(key, c_in, growth=32, bn_size=4):
    """Deterministic conv weights + BN running stats, with BN folding applied."""
    eps = 1e-5
    c_mid = bn_size * growth
    ks = jax.random.split(key, 10)

    # PyTorch conv weight layouts: (out, in, kh, kw), both convs bias-free.
    conv1_w = 0.1 * jax.random.normal(ks[0], (c_mid, c_in, 1, 1), jnp.float32)
    conv2_w = 0.1 * jax.random.normal(ks[1], (growth, c_mid, 3, 3), jnp.float32)

    bn1_gamma = 1.0 + 0.1 * jax.random.normal(ks[2], (c_in,), jnp.float32)
    bn1_beta = 0.1 * jax.random.normal(ks[3], (c_in,), jnp.float32)
    bn1_mean = 0.1 * jax.random.normal(ks[4], (c_in,), jnp.float32)
    bn1_var = jax.random.uniform(ks[5], (c_in,), jnp.float32, 0.5, 1.5)

    bn2_gamma = 1.0 + 0.1 * jax.random.normal(ks[6], (c_mid,), jnp.float32)
    bn2_beta = 0.1 * jax.random.normal(ks[7], (c_mid,), jnp.float32)
    bn2_mean = 0.1 * jax.random.normal(ks[8], (c_mid,), jnp.float32)
    bn2_var = jax.random.uniform(ks[9], (c_mid,), jnp.float32, 0.5, 1.5)

    # BN1 (eval mode) = per-channel affine applied to x before ReLU.
    s1 = bn1_gamma / jnp.sqrt(bn1_var + eps)
    t1 = bn1_beta - bn1_mean * s1
    # BN2 is linear and follows the bias-free 1x1 conv -> fold into conv1.
    s2 = bn2_gamma / jnp.sqrt(bn2_var + eps)
    t2 = bn2_beta - bn2_mean * s2
    w1 = conv1_w[:, :, 0, 0].T * s2[None, :]                  # (c_in, c_mid)
    b1 = t2[None, :]                                          # (1, c_mid)
    # 3x3 conv weight -> (ky*3+kx, c_mid, growth), taps row-major.
    w2 = jnp.transpose(conv2_w, (2, 3, 1, 0)).reshape(9, c_mid, growth)

    return dict(
        s1=s1[None, :], t1=t1[None, :],
        w1=w1.astype(jnp.bfloat16),                           # MXU operand
        b1=b1,
        w2=w2.astype(jnp.bfloat16),                           # MXU operand
    )


def dense_layer_reference(x_nhwc, blocks_params):
    """Pure-JAX reference with the same (bf16-rounded) folded parameters."""
    feats = x_nhwc
    for block in blocks_params:
        for p in block:
            c_mid = p["w1"].shape[1]
            growth = p["w2"].shape[2]
            a = jnp.maximum(feats * p["s1"][0] + p["t1"][0], 0.0)
            a_q = a.astype(jnp.bfloat16).astype(jnp.float32)
            w1_q = p["w1"].astype(jnp.float32)
            z = jnp.einsum("nhwc,cd->nhwd", a_q, w1_q) + p["b1"][0]
            h = jnp.maximum(z, 0.0)
            h_q = h.astype(jnp.bfloat16).astype(jnp.float32)
            w2_q = p["w2"].astype(jnp.float32).reshape(3, 3, c_mid, growth)
            new = lax.conv_general_dilated(
                h_q, w2_q, window_strides=(1, 1), padding="SAME",
                dimension_numbers=("NHWC", "HWIO", "NHWC"))
            feats = jnp.concatenate([feats, new.astype(feats.dtype)], axis=-1)
    return feats


if __name__ == "__main__":
    # Small shapes consistent with the module: x is NCHW (2, 8, 16, 16).
    # denseLayer(..., nc=8, nl=2, n=1): one _DenseBlock with 2 bottlenecks,
    # growth_rate=32, bn_size=4 (hard-coded in _DenseBlock), drop_rate=0.
    N, NC, H, W = 2, 8, 16, 16
    NL, NBLOCKS = 2, 1
    GROWTH, BN_SIZE = 32, 4

    key = jax.random.PRNGKey(0)
    kx, kp = jax.random.split(key)
    x_nchw = jax.random.normal(kx, (N, NC, H, W), jnp.float32)
    x_nhwc = jnp.transpose(x_nchw, (0, 2, 3, 1))      # layout: NCHW -> NHWC

    pkeys = jax.random.split(kp, NBLOCKS * NL)
    blocks, c, ki = [], NC, 0
    for _ in range(NBLOCKS):
        layers = []
        for _ in range(NL):
            layers.append(make_bottleneck_params(pkeys[ki], c, GROWTH, BN_SIZE))
            ki += 1
            c += GROWTH
        blocks.append(layers)

    out_nhwc = dense_layer_pallas(x_nhwc, blocks)
    out_nhwc = jax.block_until_ready(out_nhwc)
    out_nchw = jnp.transpose(out_nhwc, (0, 3, 1, 2))  # back to PyTorch NCHW

    ref_nhwc = dense_layer_reference(x_nhwc, blocks)
    assert out_nchw.shape == (N, NC + NBLOCKS * NL * GROWTH, H, W)
    assert jnp.allclose(out_nhwc, ref_nhwc, atol=1e-2, rtol=1e-2), (
        "mismatch vs reference")

    print("KERNEL_OK")
</pallas_src>

<mosaic_0001>
module attributes {stable_mosaic.version = 11 : i64} {
  func.func @_dense_bottleneck_kernel(%arg0: i32, %arg1: memref<1x16x16x8xf32, #tpu.memory_space<vmem>>, %arg2: memref<1x8xf32, #tpu.memory_space<vmem>>, %arg3: memref<1x8xf32, #tpu.memory_space<vmem>>, %arg4: memref<8x128xbf16, #tpu.memory_space<vmem>>, %arg5: memref<1x128xf32, #tpu.memory_space<vmem>>, %arg6: memref<9x128x32xbf16, #tpu.memory_space<vmem>>, %arg7: memref<1x16x16x32xf32, #tpu.memory_space<vmem>>, %arg8: memref<18x18x128xbf16, #tpu.memory_space<vmem>>) attributes {dimension_semantics = [#tpu.dimension_semantics<parallel>], iteration_bounds = array<i64: 2>, scalar_prefetch = 0 : i64, scratch_operands = 1 : i64, tpu.core_type = #tpu.core_type<tc>, window_params = [{transform_indices = @transform_0, window_bounds = array<i64: 1, 16, 16, 8>}, {pipeline_mode = #tpu.pipeline_mode<synchronous>, transform_indices = @transform_1, window_bounds = array<i64: 1, 8>}, {pipeline_mode = #tpu.pipeline_mode<synchronous>, transform_indices = @transform_2, window_bounds = array<i64: 1, 8>}, {pipeline_mode = #tpu.pipeline_mode<synchronous>, transform_indices = @transform_3, window_bounds = array<i64: 8, 128>}, {pipeline_mode = #tpu.pipeline_mode<synchronous>, transform_indices = @transform_4, window_bounds = array<i64: 1, 128>}, {pipeline_mode = #tpu.pipeline_mode<synchronous>, transform_indices = @transform_5, window_bounds = array<i64: 9, 128, 32>}, {transform_indices = @transform_6, window_bounds = array<i64: 1, 16, 16, 32>}]} {
    %cst = arith.constant 0.000000e+00 : bf16
    %0 = vector.broadcast %cst : bf16 to vector<1x18x128xbf16>
    %cst_0 = arith.constant 0.000000e+00 : bf16
    %1 = vector.broadcast %cst_0 : bf16 to vector<18x1x128xbf16>
    %c0 = arith.constant 0 : index
    %c0_1 = arith.constant 0 : index
    %c0_2 = arith.constant 0 : index
    %2 = vector.load %arg8[%c0, %c0_1, %c0_2] : memref<18x18x128xbf16, #tpu.memory_space<vmem>>, vector<1x18x128xbf16>
    tpu.vector_store %arg8[%c0, %c0_1, %c0_2], %0 {strides = array<i32>} : memref<18x18x128xbf16, #tpu.memory_space<vmem>>, vector<1x18x128xbf16>,
    %c17 = arith.constant 17 : index
    %c0_3 = arith.constant 0 : index
    %c0_4 = arith.constant 0 : index
    %3 = vector.load %arg8[%c17, %c0_3, %c0_4] : memref<18x18x128xbf16, #tpu.memory_space<vmem>>, vector<1x18x128xbf16>
    tpu.vector_store %arg8[%c17, %c0_3, %c0_4], %0 {strides = array<i32>} : memref<18x18x128xbf16, #tpu.memory_space<vmem>>, vector<1x18x128xbf16>,
    %c0_5 = arith.constant 0 : index
    %c0_6 = arith.constant 0 : index
    %c0_7 = arith.constant 0 : index
    %4 = vector.load %arg8[%c0_5, %c0_6, %c0_7] : memref<18x18x128xbf16, #tpu.memory_space<vmem>>, vector<18x1x128xbf16>
    tpu.vector_store %arg8[%c0_5, %c0_6, %c0_7], %1 {strides = array<i32>} : memref<18x18x128xbf16, #tpu.memory_space<vmem>>, vector<18x1x128xbf16>,
    %c0_8 = arith.constant 0 : index
    %c17_9 = arith.constant 17 : index
    %c0_10 = arith.constant 0 : index
    %5 = vector.load %arg8[%c0_8, %c17_9, %c0_10] : memref<18x18x128xbf16, #tpu.memory_space<vmem>>, vector<18x1x128xbf16>
    tpu.vector_store %arg8[%c0_8, %c17_9, %c0_10], %1 {strides = array<i32>} : memref<18x18x128xbf16, #tpu.memory_space<vmem>>, vector<18x1x128xbf16>,
    %c0_11 = arith.constant 0 : index
    %c0_12 = arith.constant 0 : index
    %c0_13 = arith.constant 0 : index
    %c0_14 = arith.constant 0 : index
    %6 = vector.load %arg1[%c0_11, %c0_12, %c0_13, %c0_14] : memref<1x16x16x8xf32, #tpu.memory_space<vmem>>, vector<1x16x16x8xf32>
    %7 = vector.shape_cast %6 : vector<1x16x16x8xf32> to vector<16x16x8xf32>
    %8 = vector.shape_cast %7 : vector<16x16x8xf32> to vector<256x8xf32>
    %c0_15 = arith.constant 0 : index
    %c0_16 = arith.constant 0 : index
    %9 = vector.load %arg2[%c0_15, %c0_16] : memref<1x8xf32, #tpu.memory_space<vmem>>, vector<1x8xf32>
    %10 = vector.broadcast %9 : vector<1x8xf32> to vector<256x8xf32>
    %11 = arith.mulf %8, %10 : vector<256x8xf32>
    %c0_17 = arith.constant 0 : index
    %c0_18 = arith.constant 0 : index
    %12 = vector.load %arg3[%c0_17, %c0_18] : memref<1x8xf32, #tpu.memory_space<vmem>>, vector<1x8xf32>
    %13 = vector.broadcast %12 : vector<1x8xf32> to vector<256x8xf32>
    %14 = arith.addf %11, %13 : vector<256x8xf32>
    %cst_19 = arith.constant 0.000000e+00 : f32
    %15 = vector.broadcast %cst_19 : f32 to vector<256x8xf32>
    %16 = arith.maximumf %14, %15 : vector<256x8xf32>
    %17 = arith.truncf %16 : vector<256x8xf32> to vector<256x8xbf16>
    %c0_20 = arith.constant 0 : index
    %c0_21 = arith.constant 0 : index
    %18 = vector.load %arg4[%c0_20, %c0_21] : memref<8x128xbf16, #tpu.memory_space<vmem>>, vector<8x128xbf16>
    %cst_22 = arith.constant dense<0.000000e+00> : vector<256x128xf32>
    %19 = tpu.matmul %17, %18, %cst_22 {dimension_numbers = #tpu.dot_dimension_numbers<[1], [0], [0], [1], [0, 0, 1, 1], [], []>} : vector<256x8xbf16>, vector<8x128xbf16>, vector<256x128xf32> -> vector<256x128xf32>
    %c0_23 = arith.constant 0 : index
    %c0_24 = arith.constant 0 : index
    %20 = vector.load %arg5[%c0_23, %c0_24] : memref<1x128xf32, #tpu.memory_space<vmem>>, vector<1x128xf32>
    %21 = vector.broadcast %20 : vector<1x128xf32> to vector<256x128xf32>
    %22 = arith.addf %19, %21 : vector<256x128xf32>
    %cst_25 = arith.constant 0.000000e+00 : f32
    %23 = vector.broadcast %cst_25 : f32 to vector<256x128xf32>
    %24 = arith.maximumf %22, %23 : vector<256x128xf32>
    %25 = vector.shape_cast %24 : vector<256x128xf32> to vector<16x16x128xf32>
    %26 = arith.truncf %25 : vector<16x16x128xf32> to vector<16x16x128xbf16>
    %c1 = arith.constant 1 : index
    %c1_26 = arith.constant 1 : index
    %c0_27 = arith.constant 0 : index
    %27 = vector.load %arg8[%c1, %c1_26, %c0_27] : memref<18x18x128xbf16, #tpu.memory_space<vmem>>, vector<16x16x128xbf16>
    tpu.vector_store %arg8[%c1, %c1_26, %c0_27], %26 {strides = array<i32>} : memref<18x18x128xbf16, #tpu.memory_space<vmem>>, vector<16x16x128xbf16>,
    %cst_28 = arith.constant 0.000000e+00 : f32
    %28 = vector.broadcast %cst_28 : f32 to vector<256x32xf32>
    %c0_29 = arith.constant 0 : index
    %c0_30 = arith.constant 0 : index
    %c0_31 = arith.constant 0 : index
    %29 = vector.load %arg8[%c0_29, %c0_30, %c0_31] : memref<18x18x128xbf16, #tpu.memory_space<vmem>>, vector<16x16x128xbf16>
    %30 = vector.shape_cast %29 : vector<16x16x128xbf16> to vector<256x128xbf16>
    %c0_32 = arith.constant 0 : index
    %c0_33 = arith.constant 0 : index
    %c0_34 = arith.constant 0 : index
    %31 = vector.load %arg6[%c0_32, %c0_33, %c0_34] : memref<9x128x32xbf16, #tpu.memory_space<vmem>>, vector<1x128x32xbf16>
    %32 = vector.shape_cast %31 : vector<1x128x32xbf16> to vector<128x32xbf16>
    %cst_35 = arith.constant dense<0.000000e+00> : vector<256x32xf32>
    %33 = tpu.matmul %30, %32, %cst_35 {dimension_numbers = #tpu.dot_dimension_numbers<[1], [0], [0], [1], [0, 0, 1, 1], [], []>} : vector<256x128xbf16>, vector<128x32xbf16>, vector<256x32xf32> -> vector<256x32xf32>
    %34 = arith.addf %28, %33 : vector<256x32xf32>
    %c0_36 = arith.constant 0 : index
    %c1_37 = arith.constant 1 : index
    %c0_38 = arith.constant 0 : index
    %35 = vector.load %arg8[%c0_36, %c1_37, %c0_38] : memref<18x18x128xbf16, #tpu.memory_space<vmem>>, vector<16x16x128xbf16>
    %36 = vector.shape_cast %35 : vector<16x16x128xbf16> to vector<256x128xbf16>
    %c1_39 = arith.constant 1 : index
    %c0_40 = arith.constant 0 : index
    %c0_41 = arith.constant 0 : index
    %37 = vector.load %arg6[%c1_39, %c0_40, %c0_41] : memref<9x128x32xbf16, #tpu.memory_space<vmem>>, vector<1x128x32xbf16>
    %38 = vector.shape_cast %37 : vector<1x128x32xbf16> to vector<128x32xbf16>
    %cst_42 = arith.constant dense<0.000000e+00> : vector<256x32xf32>
    %39 = tpu.matmul %36, %38, %cst_42 {dimension_numbers = #tpu.dot_dimension_numbers<[1], [0], [0], [1], [0, 0, 1, 1], [], []>} : vector<256x128xbf16>, vector<128x32xbf16>, vector<256x32xf32> -> vector<256x32xf32>
    %40 = arith.addf %34, %39 : vector<256x32xf32>
    %c0_43 = arith.constant 0 : index
    %c2 = arith.constant 2 : index
    %c0_44 = arith.constant 0 : index
    %41 = vector.load %arg8[%c0_43, %c2, %c0_44] : memref<18x18x128xbf16, #tpu.memory_space<vmem>>, vector<16x16x128xbf16>
    %42 = vector.shape_cast %41 : vector<16x16x128xbf16> to vector<256x128xbf16>
    %c2_45 = arith.constant 2 : index
    %c0_46 = arith.constant 0 : index
    %c0_47 = arith.constant 0 : index
    %43 = vector.load %arg6[%c2_45, %c0_46, %c0_47] : memref<9x128x32xbf16, #tpu.memory_space<vmem>>, vector<1x128x32xbf16>
    %44 = vector.shape_cast %43 : vector<1x128x32xbf16> to vector<128x32xbf16>
    %cst_48 = arith.constant dense<0.000000e+00> : vector<256x32xf32>
    %45 = tpu.matmul %42, %44, %cst_48 {dimension_numbers = #tpu.dot_dimension_numbers<[1], [0], [0], [1], [0, 0, 1, 1], [], []>} : vector<256x128xbf16>, vector<128x32xbf16>, vector<256x32xf32> -> vector<256x32xf32>
    %46 = arith.addf %40, %45 : vector<256x32xf32>
    %c1_49 = arith.constant 1 : index
    %c0_50 = arith.constant 0 : index
    %c0_51 = arith.constant 0 : index
    %47 = vector.load %arg8[%c1_49, %c0_50, %c0_51] : memref<18x18x128xbf16, #tpu.memory_space<vmem>>, vector<16x16x128xbf16>
    %48 = vector.shape_cast %47 : vector<16x16x128xbf16> to vector<256x128xbf16>
    %c3 = arith.constant 3 : index
    %c0_52 = arith.constant 0 : index
    %c0_53 = arith.constant 0 : index
    %49 = vector.load %arg6[%c3, %c0_52, %c0_53] : memref<9x128x32xbf16, #tpu.memory_space<vmem>>, vector<1x128x32xbf16>
    %50 = vector.shape_cast %49 : vector<1x128x32xbf16> to vector<128x32xbf16>
    %cst_54 = arith.constant dense<0.000000e+00> : vector<256x32xf32>
    %51 = tpu.matmul %48, %50, %cst_54 {dimension_numbers = #tpu.dot_dimension_numbers<[1], [0], [0], [1], [0, 0, 1, 1], [], []>} : vector<256x128xbf16>, vector<128x32xbf16>, vector<256x32xf32> -> vector<256x32xf32>
    %52 = arith.addf %46, %51 : vector<256x32xf32>
    %c1_55 = arith.constant 1 : index
    %c1_56 = arith.constant 1 : index
    %c0_57 = arith.constant 0 : index
    %53 = vector.load %arg8[%c1_55, %c1_56, %c0_57] : memref<18x18x128xbf16, #tpu.memory_space<vmem>>, vector<16x16x128xbf16>
    %54 = vector.shape_cast %53 : vector<16x16x128xbf16> to vector<256x128xbf16>
    %c4 = arith.constant 4 : index
    %c0_58 = arith.constant 0 : index
    %c0_59 = arith.constant 0 : index
    %55 = vector.load %arg6[%c4, %c0_58, %c0_59] : memref<9x128x32xbf16, #tpu.memory_space<vmem>>, vector<1x128x32xbf16>
    %56 = vector.shape_cast %55 : vector<1x128x32xbf16> to vector<128x32xbf16>
    %cst_60 = arith.constant dense<0.000000e+00> : vector<256x32xf32>
    %57 = tpu.matmul %54, %56, %cst_60 {dimension_numbers = #tpu.dot_dimension_numbers<[1], [0], [0], [1], [0, 0, 1, 1], [], []>} : vector<256x128xbf16>, vector<128x32xbf16>, vector<256x32xf32> -> vector<256x32xf32>
    %58 = arith.addf %52, %57 : vector<256x32xf32>
    %c1_61 = arith.constant 1 : index
    %c2_62 = arith.constant 2 : index
    %c0_63 = arith.constant 0 : index
    %59 = vector.load %arg8[%c1_61, %c2_62, %c0_63] : memref<18x18x128xbf16, #tpu.memory_space<vmem>>, vector<16x16x128xbf16>
    %60 = vector.shape_cast %59 : vector<16x16x128xbf16> to vector<256x128xbf16>
    %c5 = arith.constant 5 : index
    %c0_64 = arith.constant 0 : index
    %c0_65 = arith.constant 0 : index
    %61 = vector.load %arg6[%c5, %c0_64, %c0_65] : memref<9x128x32xbf16, #tpu.memory_space<vmem>>, vector<1x128x32xbf16>
    %62 = vector.shape_cast %61 : vector<1x128x32xbf16> to vector<128x32xbf16>
    %cst_66 = arith.constant dense<0.000000e+00> : vector<256x32xf32>
    %63 = tpu.matmul %60, %62, %cst_66 {dimension_numbers = #tpu.dot_dimension_numbers<[1], [0], [0], [1], [0, 0, 1, 1], [], []>} : vector<256x128xbf16>, vector<128x32xbf16>, vector<256x32xf32> -> vector<256x32xf32>
    %64 = arith.addf %58, %63 : vector<256x32xf32>
    %c2_67 = arith.constant 2 : index
    %c0_68 = arith.constant 0 : index
    %c0_69 = arith.constant 0 : index
    %65 = vector.load %arg8[%c2_67, %c0_68, %c0_69] : memref<18x18x128xbf16, #tpu.memory_space<vmem>>, vector<16x16x128xbf16>
    %66 = vector.shape_cast %65 : vector<16x16x128xbf16> to vector<256x128xbf16>
    %c6 = arith.constant 6 : index
    %c0_70 = arith.constant 0 : index
    %c0_71 = arith.constant 0 : index
    %67 = vector.load %arg6[%c6, %c0_70, %c0_71] : memref<9x128x32xbf16, #tpu.memory_space<vmem>>, vector<1x128x32xbf16>
    %68 = vector.shape_cast %67 : vector<1x128x32xbf16> to vector<128x32xbf16>
    %cst_72 = arith.constant dense<0.000000e+00> : vector<256x32xf32>
    %69 = tpu.matmul %66, %68, %cst_72 {dimension_numbers = #tpu.dot_dimension_numbers<[1], [0], [0], [1], [0, 0, 1, 1], [], []>} : vector<256x128xbf16>, vector<128x32xbf16>, vector<256x32xf32> -> vector<256x32xf32>
    %70 = arith.addf %64, %69 : vector<256x32xf32>
    %c2_73 = arith.constant 2 : index
    %c1_74 = arith.constant 1 : index
    %c0_75 = arith.constant 0 : index
    %71 = vector.load %arg8[%c2_73, %c1_74, %c0_75] : memref<18x18x128xbf16, #tpu.memory_space<vmem>>, vector<16x16x128xbf16>
    %72 = vector.shape_cast %71 : vector<16x16x128xbf16> to vector<256x128xbf16>
    %c7 = arith.constant 7 : index
    %c0_76 = arith.constant 0 : index
    %c0_77 = arith.constant 0 : index
    %73 = vector.load %arg6[%c7, %c0_76, %c0_77] : memref<9x128x32xbf16, #tpu.memory_space<vmem>>, vector<1x128x32xbf16>
    %74 = vector.shape_cast %73 : vector<1x128x32xbf16> to vector<128x32xbf16>
    %cst_78 = arith.constant dense<0.000000e+00> : vector<256x32xf32>
    %75 = tpu.matmul %72, %74, %cst_78 {dimension_numbers = #tpu.dot_dimension_numbers<[1], [0], [0], [1], [0, 0, 1, 1], [], []>} : vector<256x128xbf16>, vector<128x32xbf16>, vector<256x32xf32> -> vector<256x32xf32>
    %76 = arith.addf %70, %75 : vector<256x32xf32>
    %c2_79 = arith.constant 2 : index
    %c2_80 = arith.constant 2 : index
    %c0_81 = arith.constant 0 : index
    %77 = vector.load %arg8[%c2_79, %c2_80, %c0_81] : memref<18x18x128xbf16, #tpu.memory_space<vmem>>, vector<16x16x128xbf16>
    %78 = vector.shape_cast %77 : vector<16x16x128xbf16> to vector<256x128xbf16>
    %c8 = arith.constant 8 : index
    %c0_82 = arith.constant 0 : index
    %c0_83 = arith.constant 0 : index
    %79 = vector.load %arg6[%c8, %c0_82, %c0_83] : memref<9x128x32xbf16, #tpu.memory_space<vmem>>, vector<1x128x32xbf16>
    %80 = vector.shape_cast %79 : vector<1x128x32xbf16> to vector<128x32xbf16>
    %cst_84 = arith.constant dense<0.000000e+00> : vector<256x32xf32>
    %81 = tpu.matmul %78, %80, %cst_84 {dimension_numbers = #tpu.dot_dimension_numbers<[1], [0], [0], [1], [0, 0, 1, 1], [], []>} : vector<256x128xbf16>, vector<128x32xbf16>, vector<256x32xf32> -> vector<256x32xf32>
    %82 = arith.addf %76, %81 : vector<256x32xf32>
    %83 = vector.shape_cast %82 : vector<256x32xf32> to vector<16x16x32xf32>
    %c0_85 = arith.constant 0 : index
    %c0_86 = arith.constant 0 : index
    %c0_87 = arith.constant 0 : index
    %c0_88 = arith.constant 0 : index
    %84 = vector.load %arg7[%c0_85, %c0_86, %c0_87, %c0_88] : memref<1x16x16x32xf32, #tpu.memory_space<vmem>>, vector<1x16x16x32xf32>
    %85 = vector.shape_cast %84 : vector<1x16x16x32xf32> to vector<16x16x32xf32>
    %86 = vector.shape_cast %83 : vector<16x16x32xf32> to vector<1x16x16x32xf32>
    tpu.vector_store %arg7[%c0_85, %c0_86, %c0_87, %c0_88], %86 {strides = array<i32>} : memref<1x16x16x32xf32, #tpu.memory_space<vmem>>, vector<1x16x16x32xf32>,
    return
  }
  func.func @transform_0(%arg0: i32) -> (i32, i32, i32, i32) {
    %c0_i32 = arith.constant 0 : i32
    %c0_i32_0 = arith.constant 0 : i32
    %c0_i32_1 = arith.constant 0 : i32
    %c0_i32_2 = arith.constant 0 : i32
    return %arg0, %c0_i32, %c0_i32_0, %c0_i32_1 : i32, i32, i32, i32
  }
  func.func @transform_1(%arg0: i32) -> (i32, i32) {
    %c0_i32 = arith.constant 0 : i32
    %c0_i32_0 = arith.constant 0 : i32
    %c0_i32_1 = arith.constant 0 : i32
    return %c0_i32, %c0_i32_0 : i32, i32
  }
  func.func @transform_2(%arg0: i32) -> (i32, i32) {
    %c0_i32 = arith.constant 0 : i32
    %c0_i32_0 = arith.constant 0 : i32
    %c0_i32_1 = arith.constant 0 : i32
    return %c0_i32, %c0_i32_0 : i32, i32
  }
  func.func @transform_3(%arg0: i32) -> (i32, i32) {
    %c0_i32 = arith.constant 0 : i32
    %c0_i32_0 = arith.constant 0 : i32
    %c0_i32_1 = arith.constant 0 : i32
    return %c0_i32, %c0_i32_0 : i32, i32
  }
  func.func @transform_4(%arg0: i32) -> (i32, i32) {
    %c0_i32 = arith.constant 0 : i32
    %c0_i32_0 = arith.constant 0 : i32
    %c0_i32_1 = arith.constant 0 : i32
    return %c0_i32, %c0_i32_0 : i32, i32
  }
  func.func @transform_5(%arg0: i32) -> (i32, i32, i32) {
    %c0_i32 = arith.constant 0 : i32
    %c0_i32_0 = arith.constant 0 : i32
    %c0_i32_1 = arith.constant 0 : i32
    %c0_i32_2 = arith.constant 0 : i32
    return %c0_i32, %c0_i32_0, %c0_i32_1 : i32, i32, i32
  }
  func.func @transform_6(%arg0: i32) -> (i32, i32, i32, i32) {
    %c0_i32 = arith.constant 0 : i32
    %c0_i32_0 = arith.constant 0 : i32
    %c0_i32_1 = arith.constant 0 : i32
    %c0_i32_2 = arith.constant 0 : i32
    return %arg0, %c0_i32, %c0_i32_0, %c0_i32_1 : i32, i32, i32, i32
  }
}

</mosaic_0001>

<llo_original>
// kernel: tpu_custom_call.1
$region0: #{tpu_custom_call.1}
  #allocation0 [shape = 'u32[]', space=smem, size = 0x4, offset = 0x4, fixed_abs, tag = 'smem constant byte address 0x4 - core index']
  #allocation1 [shape = 'u32[72,128]{1,0:T(1,128)}', space=vmem, size = 0x9000, scoped, tag = 'internal scratch']
  #allocation2 [shape = 'bf16[18,18,128]{2,1,0:T(8,128)(2,1)}', space=vmem, size = 0x1b000, scoped, tag = 'scratch operand']
  %s0 = inlined_call_operand.vmem [shape: f32[2,16,16,8], index: 0, kind: input, shape index: {}]
  %s1 = inlined_call_operand.vmem [shape: f32[1,8], index: 1, kind: input, shape index: {}]
  %s2 = inlined_call_operand.vmem [shape: f32[1,8], index: 2, kind: input, shape index: {}]
  %s3 = inlined_call_operand.vmem [shape: bf16[8,128], index: 3, kind: input, shape index: {}]
  %s4 = inlined_call_operand.vmem [shape: f32[1,128], index: 4, kind: input, shape index: {}]
  %s5 = inlined_call_operand.vmem [shape: bf16[9,128,32], index: 5, kind: input, shape index: {}]
  %s6 = inlined_call_operand.hbm [shape: f32[2,16,16,32], index: 6, kind: output, shape index: {}]
  %s7 = sld [smem:[#allocation0]]
  $region57: #{tpu_custom_call.1} parent=0
    _
  %s9 = ssub.s32 1, %s7
  %s10 = scalar_select 0, %s9, %s7
  $region1: #{tpu_custom_call.1} parent=0
    #allocation3 [shape = 'u8[262144]{0}', space=vmem, size = 0x40000, scoped, tag = 'output window, operand 0']
    #allocation4 [shape = 's32[2]{0}', space=sflag, size = 0x8, scoped, tag = 'scoped memory for tpu_custom_call.1']
    %11 = vsyncpa [#allocation4], 0
    %s12 = scalar_lea.sflag [#allocation4], 1
    %13 = vsyncpa %s12, 0
    loop: start=0, step=1, limit=4
    $region2: #{tpu_custom_call.1} parent=1 // loop_pre_header
      _
    $region3: #{tpu_custom_call.1} parent=1 // loop_header
      %s15 = sphi 0, %s19
      %p16 = scmp.ge.s32.totalorder %s15, 4
      %s25 = sphi 0, %s27
      %s28 = sphi 0, %s25
      %s29 = sphi 0, %s28
      %s45 = sphi 0, %s29
      %s49 = sphi 0, %s49
      %s51 = sphi 0, %s49
      %s52 = sphi 0, %s51
      %s66 = sphi 0, %s52
      %s70 = sphi 0, %s70
      %s72 = sphi 0, %s70
      %s73 = sphi 0, %s72
      %s87 = sphi 0, %s73
      %s91 = sphi 0, %s91
      %s93 = sphi 0, %s91
      %s94 = sphi 0, %s93
      %s108 = sphi 0, %s94
      %s112 = sphi 0, %s112
      %s114 = sphi 0, %s112
      %s115 = sphi 0, %s114
      %s129 = sphi 0, %s115
      %s133 = sphi 0, %s133
      %s135 = sphi 0, %s133
      %s136 = sphi 0, %s135
      %s150 = sphi 0, %s136
      %s156 = sphi 0, %s158
      %s159 = sphi 0, %s156
      %s160 = sphi 0, %s159
      %s176 = sphi 0, %s160
    $region4: #{tpu_custom_call.1} parent=1 // loop_header_branch
      %18 = sbr.rel (%p16) target = $region8
    $region5: #{tpu_custom_call.1} parent=1 // loop_body
      %s20 = ssub.s32 %s15, 1
      %s21 = ssub.s32 %s15, 2
      %s22 = sadd.s32 %s15, 1
      %s23 = ssub.s32 %s15, %s22
      %p24 = scmp.eq.s32.totalorder %s23, 0
      %s26 = sadd.s32 %s25, 1
      %s27 = scalar_select %p24, %s25, %s26
      %p30 = pneg %p24
      %p31 = scmp.eq.s32.totalorder %s15, 1
      %p32 = por %p30, %p31
      %p33 = scmp.ne.s32.totalorder %s25, %s28
      %p34 = scmp.eq.s32.totalorder %s15, 0
      %p35 = por %p33, %p34
      %p36 = scmp.ne.s32.totalorder %s25, %s28
      %p37 = scmp.eq.s32.totalorder %s20, 1
      %p38 = por %p36, %p37
      %p39 = scmp.ne.s32.totalorder %s28, %s29
      %p40 = scmp.eq.s32.totalorder %s20, 0
      %p41 = por %p39, %p40
      %p42 = scmp.ne.s32.totalorder %s28, %s29
      %p43 = scmp.eq.s32.totalorder %s21, 1
      %p44 = por %p42, %p43
      %p46 = scmp.ne.s32.totalorder %s29, %s45
      %p47 = scmp.eq.s32.totalorder %s21, 0
      %p48 = por %p46, %p47
      %s50 = sadd.s32 %s49, 1
      %p53 = scmp.eq.s32.totalorder %s15, 1
      %p54 = scmp.ne.s32.totalorder %s49, %s51
      %p55 = scmp.eq.s32.totalorder %s15, 0
      %p56 = por %p54, %p55
      %p57 = scmp.ne.s32.totalorder %s49, %s51
      %p58 = scmp.eq.s32.totalorder %s20, 1
      %p59 = por %p57, %p58
      %p60 = scmp.ne.s32.totalorder %s51, %s52
      %p61 = scmp.eq.s32.totalorder %s20, 0
      %p62 = por %p60, %p61
      %p63 = scmp.ne.s32.totalorder %s51, %s52
      %p64 = scmp.eq.s32.totalorder %s21, 1
      %p65 = por %p63, %p64
      %p67 = scmp.ne.s32.totalorder %s52, %s66
      %p68 = scmp.eq.s32.totalorder %s21, 0
      %p69 = por %p67, %p68
      %s71 = sadd.s32 %s70, 1
      %p74 = scmp.eq.s32.totalorder %s15, 1
      %p75 = scmp.ne.s32.totalorder %s70, %s72
      %p76 = scmp.eq.s32.totalorder %s15, 0
      %p77 = por %p75, %p76
      %p78 = scmp.ne.s32.totalorder %s70, %s72
      %p79 = scmp.eq.s32.totalorder %s20, 1
      %p80 = por %p78, %p79
      %p81 = scmp.ne.s32.totalorder %s72, %s73
      %p82 = scmp.eq.s32.totalorder %s20, 0
      %p83 = por %p81, %p82
      %p84 = scmp.ne.s32.totalorder %s72, %s73
      %p85 = scmp.eq.s32.totalorder %s21, 1
      %p86 = por %p84, %p85
      %p88 = scmp.ne.s32.totalorder %s73, %s87
      %p89 = scmp.eq.s32.totalorder %s21, 0
      %p90 = por %p88, %p89
      %s92 = sadd.s32 %s91, 1
      %p95 = scmp.eq.s32.totalorder %s15, 1
      %p96 = scmp.ne.s32.totalorder %s91, %s93
      %p97 = scmp.eq.s32.totalorder %s15, 0
      %p98 = por %p96, %p97
      %p99 = scmp.ne.s32.totalorder %s91, %s93
      %p100 = scmp.eq.s32.totalorder %s20, 1
      %p101 = por %p99, %p100
      %p102 = scmp.ne.s32.totalorder %s93, %s94
      %p103 = scmp.eq.s32.totalorder %s20, 0
      %p104 = por %p102, %p103
      %p105 = scmp.ne.s32.totalorder %s93, %s94
      %p106 = scmp.eq.s32.totalorder %s21, 1
      %p107 = por %p105, %p106
      %p109 = scmp.ne.s32.totalorder %s94, %s108
      %p110 = scmp.eq.s32.totalorder %s21, 0
      %p111 = por %p109, %p110
      %s113 = sadd.s32 %s112, 1
      %p116 = scmp.eq.s32.totalorder %s15, 1
      %p117 = scmp.ne.s32.totalorder %s112, %s114
      %p118 = scmp.eq.s32.totalorder %s15, 0
      %p119 = por %p117, %p118
      %p120 = scmp.ne.s32.totalorder %s112, %s114
      %p121 = scmp.eq.s32.totalorder %s20, 1
      %p122 = por %p120, %p121
      %p123 = scmp.ne.s32.totalorder %s114, %s115
      %p124 = scmp.eq.s32.totalorder %s20, 0
      %p125 = por %p123, %p124
      %p126 = scmp.ne.s32.totalorder %s114, %s115
      %p127 = scmp.eq.s32.totalorder %s21, 1
      %p128 = por %p126, %p127
      %p130 = scmp.ne.s32.totalorder %s115, %s129
      %p131 = scmp.eq.s32.totalorder %s21, 0
      %p132 = por %p130, %p131
      %s134 = sadd.s32 %s133, 1
      %p137 = scmp.eq.s32.totalorder %s15, 1
      %p138 = scmp.ne.s32.totalorder %s133, %s135
      %p139 = scmp.eq.s32.totalorder %s15, 0
      %p140 = por %p138, %p139
      %p141 = scmp.ne.s32.totalorder %s133, %s135
      %p142 = scmp.eq.s32.totalorder %s20, 1
      %p143 = por %p141, %p142
      %p144 = scmp.ne.s32.totalorder %s135, %s136
      %p145 = scmp.eq.s32.totalorder %s20, 0
      %p146 = por %p144, %p145
      %p147 = scmp.ne.s32.totalorder %s135, %s136
      %p148 = scmp.eq.s32.totalorder %s21, 1
      %p149 = por %p147, %p148
      %p151 = scmp.ne.s32.totalorder %s136, %s150
      %p152 = scmp.eq.s32.totalorder %s21, 0
      %p153 = por %p151, %p152
      %s154 = ssub.s32 %s15, %s22
      %p155 = scmp.eq.s32.totalorder %s154, 0
      %s157 = sadd.s32 %s156, 1
      %s158 = scalar_select %p155, %s156, %s157
      %p161 = pneg %p155
      %p162 = scmp.eq.s32.totalorder %s15, 1
      %p163 = por %p161, %p162
      %p164 = scmp.ne.s32.totalorder %s156, %s159
      %p165 = scmp.eq.s32.totalorder %s15, 0
      %p166 = por %p164, %p165
      %p167 = scmp.ne.s32.totalorder %s156, %s159
      %p168 = scmp.eq.s32.totalorder %s20, 1
      %p169 = por %p167, %p168
      %p170 = scmp.ne.s32.totalorder %s159, %s160
      %p171 = scmp.eq.s32.totalorder %s20, 0
      %p172 = por %p170, %p171
      %p173 = scmp.ne.s32.totalorder %s159, %s160
      %p174 = scmp.eq.s32.totalorder %s21, 1
      %p175 = por %p173, %p174
      %p177 = scmp.ne.s32.totalorder %s160, %s176
      %p178 = scmp.eq.s32.totalorder %s21, 0
      %p179 = por %p177, %p178
      %p180 = scmp.le.s32.totalorder 1, %s15
      %p181 = scmp.lt.s32.totalorder %s15, 3
      %p182 = pnand %p180, %p181
      %p183 = pneg %p182
      // Predicated region
      $region9: #{tpu_custom_call.1} parent=5 // pred_check
        _
      $region10: #{tpu_custom_call.1} parent=5 // pred_check_branch
        %185 = sbr.rel (%p182) target = $region12
      $region11: #{tpu_custom_call.1} parent=5 // pred_region
        %s186 = ssub.s32 %s15, 1
        // Predicated region
        $region13: #{tpu_custom_call.1} parent=11 // pred_check
          %p187 = pneg %p62
        $region14: #{tpu_custom_call.1} parent=11 // pred_check_branch
          %189 = sbr.rel (%p187) target = $region16
        $region15: #{tpu_custom_call.1} parent=11 // pred_region
          _
        $region16: #{tpu_custom_call.1} parent=11 // pred_fallthru
          _
        // Predicated region
        $region17: #{tpu_custom_call.1} parent=11 // pred_check
          %p190 = pneg %p83
        $region18: #{tpu_custom_call.1} parent=11 // pred_check_branch
          %192 = sbr.rel (%p190) target = $region20
        $region19: #{tpu_custom_call.1} parent=11 // pred_region
          _
        $region20: #{tpu_custom_call.1} parent=11 // pred_fallthru
          _
        // Predicated region
        $region21: #{tpu_custom_call.1} parent=11 // pred_check
          %p193 = pneg %p104
        $region22: #{tpu_custom_call.1} parent=11 // pred_check_branch
          %195 = sbr.rel (%p193) target = $region24
        $region23: #{tpu_custom_call.1} parent=11 // pred_region
          _
        $region24: #{tpu_custom_call.1} parent=11 // pred_fallthru
          _
        // Predicated region
        $region25: #{tpu_custom_call.1} parent=11 // pred_check
          %p196 = pneg %p125
        $region26: #{tpu_custom_call.1} parent=11 // pred_check_branch
          %198 = sbr.rel (%p196) target = $region28
        $region27: #{tpu_custom_call.1} parent=11 // pred_region
          _
        $region28: #{tpu_custom_call.1} parent=11 // pred_fallthru
          _
        // Predicated region
        $region29: #{tpu_custom_call.1} parent=11 // pred_check
          %p199 = pneg %p146
        $region30: #{tpu_custom_call.1} parent=11 // pred_check_branch
          %201 = sbr.rel (%p199) target = $region32
        $region31: #{tpu_custom_call.1} parent=11 // pred_region
          _
        $region32: #{tpu_custom_call.1} parent=11 // pred_fallthru
          _
      $region12: #{tpu_custom_call.1} parent=5 // pred_fallthru
        _
      %p202 = scmp.lt.s32.totalorder %s15, 2
      // Predicated region
      $region33: #{tpu_custom_call.1} parent=5 // pred_check
        %p203 = pneg %p202
      $region34: #{tpu_custom_call.1} parent=5 // pred_check_branch
        %205 = sbr.rel (%p203) target = $region36
      $region35: #{tpu_custom_call.1} parent=5 // pred_region
        // Predicated region
        $region37: #{tpu_custom_call.1} parent=35 // pred_check
          %p206 = pneg %p35
        $region38: #{tpu_custom_call.1} parent=35 // pred_check_branch
          %208 = sbr.rel (%p206) target = $region40
        $region39: #{tpu_custom_call.1} parent=35 // pred_region
          %p209 = scmp.lt.s32.totalorder %s15, 1
          %s210 = scalar_select %p209, %s15, 1
          %s211 = smul.addr %s210, 32
          %s212 = smul.addr %s211, 8
          %s213 = scalar_lea.vmem %s0, %s212
        $region40: #{tpu_custom_call.1} parent=35 // pred_fallthru
          _
      $region36: #{tpu_custom_call.1} parent=5 // pred_fallthru
        _
      %p214 = scmp.le.s32.totalorder 1, %s15
      %p215 = scmp.lt.s32.totalorder %s15, 3
      %p216 = pnand %p214, %p215
      %p217 = pneg %p216
      // Predicated region
      $region41: #{tpu_custom_call.1} parent=5 // pred_check
        _
      $region42: #{tpu_custom_call.1} parent=5 // pred_check_branch
        %219 = sbr.rel (%p216) target = $region44
      $region43: #{tpu_custom_call.1} parent=5 // pred_region
        %s220 = ssub.s32 %s15, 1
        %p221 = scmp.lt.s32.totalorder %s20, 1
        %s222 = scalar_select %p221, %s20, 1
        %s223 = smul.addr %s222, 32
        %s224 = smul.addr %s223, 8
        %s225 = scalar_lea.vmem %s0, %s224
        %p226 = pneg %p41
        %p227 = pneg %p38
        %p228 = pneg %p62
        %p229 = pneg %p59
        %p230 = pneg %p83
        %p231 = pneg %p80
        %p232 = pneg %p104
        %p233 = pneg %p101
        %p234 = pneg %p125
        %p235 = pneg %p122
        %p236 = pneg %p146
        %p237 = pneg %p143
        %p238 = pneg %p172
        %p239 = pneg %p169
        %s240 = sand.u32 %s159, 1
        %s241 = scalar_lea.sflag [#allocation4], %s240
        %s242 = sand.u32 %s159, 1
        %s243 = smul.addr %s242, 256
        %s244 = scalar_lea.vmem [#allocation3], %s243
        %p245 = scmp.lt.s32.totalorder %s20, 1
        %s246 = scalar_select %p245, %s20, 1
        %s247 = smul.addr %s246, 32
        %s248 = smul.addr %s247, 8
        %s249 = scalar_lea.vmem %s0, %s248
        %251 = vst [vmem:[#allocation2] sm:$0xf] 0
        %252 = vst [vmem:[#allocation2 + $0x4] sm:$0xf] 0
        %253 = vst [vmem:[#allocation2 + $0x8] sm:$0x1] 0
        %s254 = scalar_lea.vmem [#allocation2], 204
        %255 = vst [vmem:[%s254] sm:$0xf] 0
        %256 = vst [vmem:[%s254 + $0x4] sm:$0xf] 0
        %257 = vst [vmem:[%s254 + $0x8] sm:$0x1] 0
        %vm258 = vcmask 1040384
        %vm259 = vsmask.f32 256
        %vm260 = vmand %vm258, %vm259
        %v261 = vld [vmem:[#allocation2] sm:$0x1]
        %v262 = vsel %vm260, 0, %v261
        %263 = vst [vmem:[#allocation2] sm:$0x1] %v262
        %v264 = vld [vmem:[#allocation2 + $0xc] sm:$0x1]
        %v265 = vsel %vm260, 0, %v264
        %266 = vst [vmem:[#allocation2 + $0xc] sm:$0x1] %v265
        %v267 = vld [vmem:[#allocation2 + $0x18] sm:$0x1]
        %v268 = vsel %vm260, 0, %v267
        %269 = vst [vmem:[#allocation2 + $0x18] sm:$0x1] %v268
        %v270 = vld [vmem:[#allocation2 + $0x24] sm:$0x1]
        %v271 = vsel %vm260, 0, %v270
        %272 = vst [vmem:[#allocation2 + $0x24] sm:$0x1] %v271
        %v273 = vld [vmem:[#allocation2 + $0x30] sm:$0x1]
        %v274 = vsel %vm260, 0, %v273
        %275 = vst [vmem:[#allocation2 + $0x30] sm:$0x1] %v274
        %v276 = vld [vmem:[#allocation2 + $0x3c] sm:$0x1]
        %v277 = vsel %vm260, 0, %v276
        %278 = vst [vmem:[#allocation2 + $0x3c] sm:$0x1] %v277
        %v279 = vld [vmem:[#allocation2 + $0x48] sm:$0x1]
        %v280 = vsel %vm260, 0, %v279
        %281 = vst [vmem:[#allocation2 + $0x48] sm:$0x1] %v280
        %v282 = vld [vmem:[#allocation2 + $0x54] sm:$0x1]
        %v283 = vsel %vm260, 0, %v282
        %284 = vst [vmem:[#allocation2 + $0x54] sm:$0x1] %v283
        %v285 = vld [vmem:[#allocation2 + $0x60] sm:$0x1]
        %v286 = vsel %vm260, 0, %v285
        %287 = vst [vmem:[#allocation2 + $0x60] sm:$0x1] %v286
        %v288 = vld [vmem:[#allocation2 + $0x6c] sm:$0x1]
        %v289 = vsel %vm260, 0, %v288
        %290 = vst [vmem:[#allocation2 + $0x6c] sm:$0x1] %v289
        %v291 = vld [vmem:[#allocation2 + $0x78] sm:$0x1]
        %v292 = vsel %vm260, 0, %v291
        %293 = vst [vmem:[#allocation2 + $0x78] sm:$0x1] %v292
        %v294 = vld [vmem:[#allocation2 + $0x84] sm:$0x1]
        %v295 = vsel %vm260, 0, %v294
        %296 = vst [vmem:[#allocation2 + $0x84] sm:$0x1] %v295
        %v297 = vld [vmem:[#allocation2 + $0x90] sm:$0x1]
        %v298 = vsel %vm260, 0, %v297
        %299 = vst [vmem:[#allocation2 + $0x90] sm:$0x1] %v298
        %v300 = vld [vmem:[#allocation2 + $0x9c] sm:$0x1]
        %v301 = vsel %vm260, 0, %v300
        %302 = vst [vmem:[#allocation2 + $0x9c] sm:$0x1] %v301
        %v303 = vld [vmem:[#allocation2 + $0xa8] sm:$0x1]
        %v304 = vsel %vm260, 0, %v303
        %305 = vst [vmem:[#allocation2 + $0xa8] sm:$0x1] %v304
        %v306 = vld [vmem:[#allocation2 + $0xb4] sm:$0x1]
        %v307 = vsel %vm260, 0, %v306
        %308 = vst [vmem:[#allocation2 + $0xb4] sm:$0x1] %v307
        %v309 = vld [vmem:[#allocation2 + $0xc0] sm:$0x1]
        %v310 = vsel %vm260, 0, %v309
        %311 = vst [vmem:[#allocation2 + $0xc0] sm:$0x1] %v310
        %v312 = vld [vmem:[#allocation2 + $0xcc] sm:$0x1]
        %v313 = vsel %vm260, 0, %v312
        %314 = vst [vmem:[#allocation2 + $0xcc] sm:$0x1] %v313
        %vm315 = vsmask.f32 7938
        %vm316 = vmand %vm258, %vm315
        %v317 = vld [vmem:[#allocation2 + $0x8] sm:$0x1]
        %v318 = vsel %vm316, 0, %v317
        %319 = vst [vmem:[#allocation2 + $0x8] sm:$0x1] %v318
        %v320 = vld [vmem:[#allocation2 + $0x14] sm:$0x1]
        %v321 = vsel %vm316, 0, %v320
        %322 = vst [vmem:[#allocation2 + $0x14] sm:$0x1] %v321
        %v323 = vld [vmem:[#allocation2 + $0x20] sm:$0x1]
        %v324 = vsel %vm316, 0, %v323
        %325 = vst [vmem:[#allocation2 + $0x20] sm:$0x1] %v324
        %v326 = vld [vmem:[#allocation2 + $0x2c] sm:$0x1]
        %v327 = vsel %vm316, 0, %v326
        %328 = vst [vmem:[#allocation2 + $0x2c] sm:$0x1] %v327
        %v329 = vld [vmem:[#allocation2 + $0x38] sm:$0x1]
        %v330 = vsel %vm316, 0, %v329
        %331 = vst [vmem:[#allocation2 + $0x38] sm:$0x1] %v330
        %v332 = vld [vmem:[#allocation2 + $0x44] sm:$0x1]
        %v333 = vsel %vm316, 0, %v332
        %334 = vst [vmem:[#allocation2 + $0x44] sm:$0x1] %v333
        %v335 = vld [vmem:[#allocation2 + $0x50] sm:$0x1]
        %v336 = vsel %vm316, 0, %v335
        %337 = vst [vmem:[#allocation2 + $0x50] sm:$0x1] %v336
        %v338 = vld [vmem:[#allocation2 + $0x5c] sm:$0x1]
        %v339 = vsel %vm316, 0, %v338
        %340 = vst [vmem:[#allocation2 + $0x5c] sm:$0x1] %v339
        %v341 = vld [vmem:[#allocation2 + $0x68] sm:$0x1]
        %v342 = vsel %vm316, 0, %v341
        %343 = vst [vmem:[#allocation2 + $0x68] sm:$0x1] %v342
        %v344 = vld [vmem:[#allocation2 + $0x74] sm:$0x1]
        %v345 = vsel %vm316, 0, %v344
        %346 = vst [vmem:[#allocation2 + $0x74] sm:$0x1] %v345
        %v347 = vld [vmem:[#allocation2 + $0x80] sm:$0x1]
        %v348 = vsel %vm316, 0, %v347
        %349 = vst [vmem:[#allocation2 + $0x80] sm:$0x1] %v348
        %v350 = vld [vmem:[#allocation2 + $0x8c] sm:$0x1]
        %v351 = vsel %vm316, 0, %v350
        %352 = vst [vmem:[#allocation2 + $0x8c] sm:$0x1] %v351
        %v353 = vld [vmem:[#allocation2 + $0x98] sm:$0x1]
        %v354 = vsel %vm316, 0, %v353
        %355 = vst [vmem:[#allocation2 + $0x98] sm:$0x1] %v354
        %v356 = vld [vmem:[#allocation2 + $0xa4] sm:$0x1]
        %v357 = vsel %vm316, 0, %v356
        %358 = vst [vmem:[#allocation2 + $0xa4] sm:$0x1] %v357
        %v359 = vld [vmem:[#allocation2 + $0xb0] sm:$0x1]
        %v360 = vsel %vm316, 0, %v359
        %361 = vst [vmem:[#allocation2 + $0xb0] sm:$0x1] %v360
        %v362 = vld [vmem:[#allocation2 + $0xbc] sm:$0x1]
        %v363 = vsel %vm316, 0, %v362
        %364 = vst [vmem:[#allocation2 + $0xbc] sm:$0x1] %v363
        %v365 = vld [vmem:[#allocation2 + $0xc8] sm:$0x1]
        %v366 = vsel %vm316, 0, %v365
        %367 = vst [vmem:[#allocation2 + $0xc8] sm:$0x1] %v366
        %v368 = vld [vmem:[#allocation2 + $0xd4] sm:$0x1]
        %v369 = vsel %vm316, 0, %v368
        %370 = vst [vmem:[#allocation2 + $0xd4] sm:$0x1] %v369
        %v371 = vld [vmem:[%s249] sm:$0xff]
        %v372 = vld [vmem:[%s249 + $0x8] sm:$0xff]
        %v373 = vld [vmem:[%s249 + $0x10] sm:$0xff]
        %v374 = vld [vmem:[%s249 + $0x18] sm:$0xff]
        %v375 = vld [vmem:[%s249 + $0x20] sm:$0xff]
        %v376 = vld [vmem:[%s249 + $0x28] sm:$0xff]
        %v377 = vld [vmem:[%s249 + $0x30] sm:$0xff]
        %v378 = vld [vmem:[%s249 + $0x38] sm:$0xff]
        %v379 = vld [vmem:[%s249 + $0x40] sm:$0xff]
        %v380 = vld [vmem:[%s249 + $0x48] sm:$0xff]
        %v381 = vld [vmem:[%s249 + $0x50] sm:$0xff]
        %v382 = vld [vmem:[%s249 + $0x58] sm:$0xff]
        %v383 = vld [vmem:[%s249 + $0x60] sm:$0xff]
        %v384 = vld [vmem:[%s249 + $0x68] sm:$0xff]
        %v385 = vld [vmem:[%s249 + $0x70] sm:$0xff]
        %v386 = vld [vmem:[%s249 + $0x78] sm:$0xff]
        %v387 = vld [vmem:[%s249 + $0x80] sm:$0xff]
        %v388 = vld [vmem:[%s249 + $0x88] sm:$0xff]
        %v389 = vld [vmem:[%s249 + $0x90] sm:$0xff]
        %v390 = vld [vmem:[%s249 + $0x98] sm:$0xff]
        %v391 = vld [vmem:[%s249 + $0xa0] sm:$0xff]
        %v392 = vld [vmem:[%s249 + $0xa8] sm:$0xff]
        %v393 = vld [vmem:[%s249 + $0xb0] sm:$0xff]
        %v394 = vld [vmem:[%s249 + $0xb8] sm:$0xff]
        %v395 = vld [vmem:[%s249 + $0xc0] sm:$0xff]
        %v396 = vld [vmem:[%s249 + $0xc8] sm:$0xff]
        %v397 = vld [vmem:[%s249 + $0xd0] sm:$0xff]
        %v398 = vld [vmem:[%s249 + $0xd8] sm:$0xff]
        %v399 = vld [vmem:[%s249 + $0xe0] sm:$0xff]
        %v400 = vld [vmem:[%s249 + $0xe8] sm:$0xff]
        %v401 = vld [vmem:[%s249 + $0xf0] sm:$0xff]
        %v402 = vld [vmem:[%s249 + $0xf8] sm:$0xff]
        %v403 = vld [vmem:[%s1] sm:$0x1]
        %v405 = vperm.slane %v403, 0
        %v407 = vmul.f32 %v371, %v405
        %v408 = vmul.f32 %v372, %v405
        %v409 = vmul.f32 %v373, %v405
        %v410 = vmul.f32 %v374, %v405
        %v411 = vmul.f32 %v375, %v405
        %v412 = vmul.f32 %v376, %v405
        %v413 = vmul.f32 %v377, %v405
        %v414 = vmul.f32 %v378, %v405
        %v415 = vmul.f32 %v379, %v405
        %v416 = vmul.f32 %v380, %v405
        %v417 = vmul.f32 %v381, %v405
        %v418 = vmul.f32 %v382, %v405
        %v419 = vmul.f32 %v383, %v405
        %v420 = vmul.f32 %v384, %v405
        %v421 = vmul.f32 %v385, %v405
        %v422 = vmul.f32 %v386, %v405
        %v423 = vmul.f32 %v387, %v405
        %v424 = vmul.f32 %v388, %v405
        %v425 = vmul.f32 %v389, %v405
        %v426 = vmul.f32 %v390, %v405
        %v427 = vmul.f32 %v391, %v405
        %v428 = vmul.f32 %v392, %v405
        %v429 = vmul.f32 %v393, %v405
        %v430 = vmul.f32 %v394, %v405
        %v431 = vmul.f32 %v395, %v405
        %v432 = vmul.f32 %v396, %v405
        %v433 = vmul.f32 %v397, %v405
        %v434 = vmul.f32 %v398, %v405
        %v435 = vmul.f32 %v399, %v405
        %v436 = vmul.f32 %v400, %v405
        %v437 = vmul.f32 %v401, %v405
        %v438 = vmul.f32 %v402, %v405
        %v439 = vld [vmem:[%s2] sm:$0x1]
        %v441 = vperm.slane %v439, 0
        %v443 = vadd.f32 %v407, %v441
        %v444 = vadd.f32 %v408, %v441
        %v445 = vadd.f32 %v409, %v441
        %v446 = vadd.f32 %v410, %v441
        %v447 = vadd.f32 %v411, %v441
        %v448 = vadd.f32 %v412, %v441
        %v449 = vadd.f32 %v413, %v441
        %v450 = vadd.f32 %v414, %v441
        %v451 = vadd.f32 %v415, %v441
        %v452 = vadd.f32 %v416, %v441
        %v453 = vadd.f32 %v417, %v441
        %v454 = vadd.f32 %v418, %v441
        %v455 = vadd.f32 %v419, %v441
        %v456 = vadd.f32 %v420, %v441
        %v457 = vadd.f32 %v421, %v441
        %v458 = vadd.f32 %v422, %v441
        %v459 = vadd.f32 %v423, %v441
        %v460 = vadd.f32 %v424, %v441
        %v461 = vadd.f32 %v425, %v441
        %v462 = vadd.f32 %v426, %v441
        %v463 = vadd.f32 %v427, %v441
        %v464 = vadd.f32 %v428, %v441
        %v465 = vadd.f32 %v429, %v441
        %v466 = vadd.f32 %v430, %v441
        %v467 = vadd.f32 %v431, %v441
        %v468 = vadd.f32 %v432, %v441
        %v469 = vadd.f32 %v433, %v441
        %v470 = vadd.f32 %v434, %v441
        %v471 = vadd.f32 %v435, %v441
        %v472 = vadd.f32 %v436, %v441
        %v473 = vadd.f32 %v437, %v441
        %v474 = vadd.f32 %v438, %v441
        %v475 = vmax.f32 %v443, 0.0
        %v476 = vmax.f32 %v444, 0.0
        %v477 = vmax.f32 %v445, 0.0
        %v478 = vmax.f32 %v446, 0.0
        %v479 = vmax.f32 %v447, 0.0
        %v480 = vmax.f32 %v448, 0.0
        %v481 = vmax.f32 %v449, 0.0
        %v482 = vmax.f32 %v450, 0.0
        %v483 = vmax.f32 %v451, 0.0
        %v484 = vmax.f32 %v452, 0.0
        %v485 = vmax.f32 %v453, 0.0
        %v486 = vmax.f32 %v454, 0.0
        %v487 = vmax.f32 %v455, 0.0
        %v488 = vmax.f32 %v456, 0.0
        %v489 = vmax.f32 %v457, 0.0
        %v490 = vmax.f32 %v458, 0.0
        %v491 = vmax.f32 %v459, 0.0
        %v492 = vmax.f32 %v460, 0.0
        %v493 = vmax.f32 %v461, 0.0
        %v494 = vmax.f32 %v462, 0.0
        %v495 = vmax.f32 %v463, 0.0
        %v496 = vmax.f32 %v464, 0.0
        %v497 = vmax.f32 %v465, 0.0
        %v498 = vmax.f32 %v466, 0.0
        %v499 = vmax.f32 %v467, 0.0
        %v500 = vmax.f32 %v468, 0.0
        %v501 = vmax.f32 %v469, 0.0
        %v502 = vmax.f32 %v470, 0.0
        %v503 = vmax.f32 %v471, 0.0
        %v504 = vmax.f32 %v472, 0.0
        %v505 = vmax.f32 %v473, 0.0
        %v506 = vmax.f32 %v474, 0.0
        %v507 = vpack.c.bf16 %v476, %v475
        %v508 = vpack.c.bf16 %v478, %v477
        %v509 = vpack.c.bf16 %v480, %v479
        %v510 = vpack.c.bf16 %v482, %v481
        %v511 = vpack.c.bf16 %v484, %v483
        %v512 = vpack.c.bf16 %v486, %v485
        %v513 = vpack.c.bf16 %v488, %v487
        %v514 = vpack.c.bf16 %v490, %v489
        %v515 = vpack.c.bf16 %v492, %v491
        %v516 = vpack.c.bf16 %v494, %v493
        %v517 = vpack.c.bf16 %v496, %v495
        %v518 = vpack.c.bf16 %v498, %v497
        %v519 = vpack.c.bf16 %v500, %v499
        %v520 = vpack.c.bf16 %v502, %v501
        %v521 = vpack.c.bf16 %v504, %v503
        %v522 = vpack.c.bf16 %v506, %v505
        %v523 = vld [vmem:[%s3] sm:$0xf]
        %v524 = vld [vmem:[%s4] sm:$0x1]
        %v526 = vperm.slane %v524, 0
        %vm528 = vcmask 64512
        %v530 = vsel %vm528, %v507, 0
        %v533 = vsel %vm528, %v508, 0
        %v536 = vsel %vm528, %v509, 0
        %v539 = vsel %vm528, %v510, 0
        %v542 = vsel %vm528, %v511, 0
        %v545 = vsel %vm528, %v512, 0
        %v548 = vsel %vm528, %v513, 0
        %v551 = vsel %vm528, %v514, 0
        %v554 = vsel %vm528, %v515, 0
        %v557 = vsel %vm528, %v516, 0
        %v560 = vsel %vm528, %v517, 0
        %v563 = vsel %vm528, %v518, 0
        %v566 = vsel %vm528, %v519, 0
        %v569 = vsel %vm528, %v520, 0
        %v572 = vsel %vm528, %v521, 0
        %v575 = vsel %vm528, %v522, 0
        %vm577 = vcmask 1043456
        %v579 = vsel %vm577, %v523, 0
        %581 = vmatpush.bf16.msra.mxu0 0
        %582 = vmatpush.bf16.msra.mxu0 0
        %583 = vmatpush.bf16.msra.mxu0 0
        %584 = vmatpush.bf16.msra.mxu0 0
        %585 = vmatpush.bf16.msra.mxu0 0
        %586 = vmatpush.bf16.msra.mxu0 0
        %587 = vmatpush.bf16.msra.mxu0 0
        %588 = vmatpush.bf16.msra.mxu0 %v579
        %589 = vmatmul.bf16.gmra.mxu0 %v530
        %v590 = vpop.f32.mrf.mxu0
        %v591 = vadd.f32 %v526, %v590
        %v592 = vpop.f32.mrf.mxu0
        %v593 = vadd.f32 %v526, %v592
        %594 = vmatmul.bf16.gmra.mxu0 %v533
        %v595 = vpop.f32.mrf.mxu0
        %v596 = vadd.f32 %v526, %v595
        %v597 = vpop.f32.mrf.mxu0
        %v598 = vadd.f32 %v526, %v597
        %599 = vmatmul.bf16.gmra.mxu0 %v536
        %v600 = vpop.f32.mrf.mxu0
        %v601 = vadd.f32 %v526, %v600
        %v602 = vpop.f32.mrf.mxu0
        %v603 = vadd.f32 %v526, %v602
        %604 = vmatmul.bf16.gmra.mxu0 %v539
        %v605 = vpop.f32.mrf.mxu0
        %v606 = vadd.f32 %v526, %v605
        %v607 = vpop.f32.mrf.mxu0
        %v608 = vadd.f32 %v526, %v607
        %609 = vmatmul.bf16.gmra.mxu0 %v542
        %v610 = vpop.f32.mrf.mxu0
        %v611 = vadd.f32 %v526, %v610
        %v612 = vpop.f32.mrf.mxu0
        %v613 = vadd.f32 %v526, %v612
        %614 = vmatmul.bf16.gmra.mxu0 %v545
        %v615 = vpop.f32.mrf.mxu0
        %v616 = vadd.f32 %v526, %v615
        %v617 = vpop.f32.mrf.mxu0
        %v618 = vadd.f32 %v526, %v617
        %619 = vmatmul.bf16.gmra.mxu0 %v548
        %v620 = vpop.f32.mrf.mxu0
        %v621 = vadd.f32 %v526, %v620
        %v622 = vpop.f32.mrf.mxu0
        %v623 = vadd.f32 %v526, %v622
        %624 = vmatmul.bf16.gmra.mxu0 %v551
        %v625 = vpop.f32.mrf.mxu0
        %v626 = vadd.f32 %v526, %v625
        %v627 = vpop.f32.mrf.mxu0
        %v628 = vadd.f32 %v526, %v627
        %629 = vmatmul.bf16.gmra.mxu0 %v554
        %v630 = vpop.f32.mrf.mxu0
        %v631 = vadd.f32 %v526, %v630
        %v632 = vpop.f32.mrf.mxu0
        %v633 = vadd.f32 %v526, %v632
        %634 = vmatmul.bf16.gmra.mxu0 %v557
        %v635 = vpop.f32.mrf.mxu0
        %v636 = vadd.f32 %v526, %v635
        %v637 = vpop.f32.mrf.mxu0
        %v638 = vadd.f32 %v526, %v637
        %639 = vmatmul.bf16.gmra.mxu0 %v560
        %v640 = vpop.f32.mrf.mxu0
        %v641 = vadd.f32 %v526, %v640
        %v642 = vpop.f32.mrf.mxu0
        %v643 = vadd.f32 %v526, %v642
        %644 = vmatmul.bf16.gmra.mxu0 %v563
        %v645 = vpop.f32.mrf.mxu0
        %v646 = vadd.f32 %v526, %v645
        %v647 = vpop.f32.mrf.mxu0
        %v648 = vadd.f32 %v526, %v647
        %649 = vmatmul.bf16.gmra.mxu0 %v566
        %v650 = vpop.f32.mrf.mxu0
        %v651 = vadd.f32 %v526, %v650
        %v652 = vpop.f32.mrf.mxu0
        %v653 = vadd.f32 %v526, %v652
        %654 = vmatmul.bf16.gmra.mxu0 %v569
        %v655 = vpop.f32.mrf.mxu0
        %v656 = vadd.f32 %v526, %v655
        %v657 = vpop.f32.mrf.mxu0
        %v658 = vadd.f32 %v526, %v657
        %659 = vmatmul.bf16.gmra.mxu0 %v572
        %v660 = vpop.f32.mrf.mxu0
        %v661 = vadd.f32 %v526, %v660
        %v662 = vpop.f32.mrf.mxu0
        %v663 = vadd.f32 %v526, %v662
        %664 = vmatmul.bf16.gmra.mxu0 %v575
        %v665 = vpop.f32.mrf.mxu0
        %v666 = vadd.f32 %v526, %v665
        %v667 = vpop.f32.mrf.mxu0
        %v668 = vadd.f32 %v526, %v667
        %669 = vdwg.mxu0
        %v670 = vmax.f32 %v591, 0.0
        %v671 = vmax.f32 %v593, 0.0
        %v672 = vmax.f32 %v596, 0.0
        %v673 = vmax.f32 %v598, 0.0
        %v674 = vmax.f32 %v601, 0.0
        %v675 = vmax.f32 %v603, 0.0
        %v676 = vmax.f32 %v606, 0.0
        %v677 = vmax.f32 %v608, 0.0
        %v678 = vmax.f32 %v611, 0.0
        %v679 = vmax.f32 %v613, 0.0
        %v680 = vmax.f32 %v616, 0.0
        %v681 = vmax.f32 %v618, 0.0
        %v682 = vmax.f32 %v621, 0.0
        %v683 = vmax.f32 %v623, 0.0
        %v684 = vmax.f32 %v626, 0.0
        %v685 = vmax.f32 %v628, 0.0
        %v686 = vmax.f32 %v631, 0.0
        %v687 = vmax.f32 %v633, 0.0
        %v688 = vmax.f32 %v636, 0.0
        %v689 = vmax.f32 %v638, 0.0
        %v690 = vmax.f32 %v641, 0.0
        %v691 = vmax.f32 %v643, 0.0
        %v692 = vmax.f32 %v646, 0.0
        %v693 = vmax.f32 %v648, 0.0
        %v694 = vmax.f32 %v651, 0.0
        %v695 = vmax.f32 %v653, 0.0
        %v696 = vmax.f32 %v656, 0.0
        %v697 = vmax.f32 %v658, 0.0
        %v698 = vmax.f32 %v661, 0.0
        %v699 = vmax.f32 %v663, 0.0
        %v700 = vmax.f32 %v666, 0.0
        %v701 = vmax.f32 %v668, 0.0
        %v702 = vpack.c.bf16 %v670, %v670
        %v703 = vpack.c.bf16 %v671, %v671
        %v704 = vpack.c.bf16 %v672, %v672
        %v705 = vpack.c.bf16 %v673, %v673
        %v706 = vpack.c.bf16 %v674, %v674
        %v707 = vpack.c.bf16 %v675, %v675
        %v708 = vpack.c.bf16 %v676, %v676
        %v709 = vpack.c.bf16 %v677, %v677
        %v710 = vpack.c.bf16 %v678, %v678
        %v711 = vpack.c.bf16 %v679, %v679
        %v712 = vpack.c.bf16 %v680, %v680
        %v713 = vpack.c.bf16 %v681, %v681
        %v714 = vpack.c.bf16 %v682, %v682
        %v715 = vpack.c.bf16 %v683, %v683
        %v716 = vpack.c.bf16 %v684, %v684
        %v717 = vpack.c.bf16 %v685, %v685
        %v718 = vpack.c.bf16 %v686, %v686
        %v719 = vpack.c.bf16 %v687, %v687
        %v720 = vpack.c.bf16 %v688, %v688
        %v721 = vpack.c.bf16 %v689, %v689
        %v722 = vpack.c.bf16 %v690, %v690
        %v723 = vpack.c.bf16 %v691, %v691
        %v724 = vpack.c.bf16 %v692, %v692
        %v725 = vpack.c.bf16 %v693, %v693
        %v726 = vpack.c.bf16 %v694, %v694
        %v727 = vpack.c.bf16 %v695, %v695
        %v728 = vpack.c.bf16 %v696, %v696
        %v729 = vpack.c.bf16 %v697, %v697
        %v730 = vpack.c.bf16 %v698, %v698
        %v731 = vpack.c.bf16 %v699, %v699
        %v732 = vpack.c.bf16 %v700, %v700
        %v733 = vpack.c.bf16 %v701, %v701
        %vm734 = vsmask.f32 4368
        %vm735 = vmor %vm259, %vm734
        %v737 = vshrl.u32 %v702, 16
        %v739 = vrot.slane %v737, 7
        %v740 = vshll.u32 %v702, 16
        %v742 = vor.u32 %v739, %v740
        %v743 = vrot.slane %v739, 4
        %v745 = vshrl.u32 %v703, 16
        %v747 = vrot.slane %v745, 7
        %v748 = vshll.u32 %v703, 16
        %v750 = vor.u32 %v747, %v748
        %v751 = vsel %vm735, %v743, %v750
        %v752 = vrot.slane %v747, 4
        %v754 = vshrl.u32 %v704, 16
        %v756 = vrot.slane %v754, 7
        %v757 = vshll.u32 %v704, 16
        %v759 = vor.u32 %v756, %v757
        %v760 = vrot.slane %v756, 4
        %v762 = vshrl.u32 %v705, 16
        %v764 = vrot.slane %v762, 7
        %v765 = vshll.u32 %v705, 16
        %v767 = vor.u32 %v764, %v765
        %v768 = vsel %vm735, %v760, %v767
        %v769 = vrot.slane %v764, 4
        %v771 = vshrl.u32 %v706, 16
        %v773 = vrot.slane %v771, 7
        %v774 = vshll.u32 %v706, 16
        %v776 = vor.u32 %v773, %v774
        %v777 = vrot.slane %v773, 4
        %v779 = vshrl.u32 %v707, 16
        %v781 = vrot.slane %v779, 7
        %v782 = vshll.u32 %v707, 16
        %v784 = vor.u32 %v781, %v782
        %v785 = vsel %vm735, %v777, %v784
        %v786 = vrot.slane %v781, 4
        %v788 = vshrl.u32 %v708, 16
        %v790 = vrot.slane %v788, 7
        %v791 = vshll.u32 %v708, 16
        %v793 = vor.u32 %v790, %v791
        %v794 = vrot.slane %v790, 4
        %v796 = vshrl.u32 %v709, 16
        %v798 = vrot.slane %v796, 7
        %v799 = vshll.u32 %v709, 16
        %v801 = vor.u32 %v798, %v799
        %v802 = vsel %vm735, %v794, %v801
        %v803 = vrot.slane %v798, 4
        %v805 = vshrl.u32 %v710, 16
        %v807 = vrot.slane %v805, 7
        %v808 = vshll.u32 %v710, 16
        %v810 = vor.u32 %v807, %v808
        %v811 = vrot.slane %v807, 4
        %v813 = vshrl.u32 %v711, 16
        %v815 = vrot.slane %v813, 7
        %v816 = vshll.u32 %v711, 16
        %v818 = vor.u32 %v815, %v816
        %v819 = vsel %vm735, %v811, %v818
        %v820 = vrot.slane %v815, 4
        %v822 = vshrl.u32 %v712, 16
        %v824 = vrot.slane %v822, 7
        %v825 = vshll.u32 %v712, 16
        %v827 = vor.u32 %v824, %v825
        %v828 = vrot.slane %v824, 4
        %v830 = vshrl.u32 %v713, 16
        %v832 = vrot.slane %v830, 7
        %v833 = vshll.u32 %v713, 16
        %v835 = vor.u32 %v832, %v833
        %v836 = vsel %vm735, %v828, %v835
        %v837 = vrot.slane %v832, 4
        %v839 = vshrl.u32 %v714, 16
        %v841 = vrot.slane %v839, 7
        %v842 = vshll.u32 %v714, 16
        %v844 = vor.u32 %v841, %v842
        %v845 = vrot.slane %v841, 4
        %v847 = vshrl.u32 %v715, 16
        %v849 = vrot.slane %v847, 7
        %v850 = vshll.u32 %v715, 16
        %v852 = vor.u32 %v849, %v850
        %v853 = vsel %vm735, %v845, %v852
        %v854 = vrot.slane %v849, 4
        %v856 = vshrl.u32 %v716, 16
        %v858 = vrot.slane %v856, 7
        %v859 = vshll.u32 %v716, 16
        %v861 = vor.u32 %v858, %v859
        %v862 = vrot.slane %v858, 4
        %v864 = vshrl.u32 %v717, 16
        %v866 = vrot.slane %v864, 7
        %v867 = vshll.u32 %v717, 16
        %v869 = vor.u32 %v866, %v867
        %v870 = vsel %vm735, %v862, %v869
        %v871 = vrot.slane %v866, 4
        %v873 = vshrl.u32 %v718, 16
        %v875 = vrot.slane %v873, 7
        %v876 = vshll.u32 %v718, 16
        %v878 = vor.u32 %v875, %v876
        %v879 = vrot.slane %v875, 4
        %v881 = vshrl.u32 %v719, 16
        %v883 = vrot.slane %v881, 7
        %v884 = vshll.u32 %v719, 16
        %v886 = vor.u32 %v883, %v884
        %v887 = vsel %vm735, %v879, %v886
        %v888 = vrot.slane %v883, 4
        %v890 = vshrl.u32 %v720, 16
        %v892 = vrot.slane %v890, 7
        %v893 = vshll.u32 %v720, 16
        %v895 = vor.u32 %v892, %v893
        %v896 = vrot.slane %v892, 4
        %v898 = vshrl.u32 %v721, 16
        %v900 = vrot.slane %v898, 7
        %v901 = vshll.u32 %v721, 16
        %v903 = vor.u32 %v900, %v901
        %v904 = vsel %vm735, %v896, %v903
        %v905 = vrot.slane %v900, 4
        %v907 = vshrl.u32 %v722, 16
        %v909 = vrot.slane %v907, 7
        %v910 = vshll.u32 %v722, 16
        %v912 = vor.u32 %v909, %v910
        %v913 = vrot.slane %v909, 4
        %v915 = vshrl.u32 %v723, 16
        %v917 = vrot.slane %v915, 7
        %v918 = vshll.u32 %v723, 16
        %v920 = vor.u32 %v917, %v918
        %v921 = vsel %vm735, %v913, %v920
        %v922 = vrot.slane %v917, 4
        %v924 = vshrl.u32 %v724, 16
        %v926 = vrot.slane %v924, 7
        %v927 = vshll.u32 %v724, 16
        %v929 = vor.u32 %v926, %v927
        %v930 = vrot.slane %v926, 4
        %v932 = vshrl.u32 %v725, 16
        %v934 = vrot.slane %v932, 7
        %v935 = vshll.u32 %v725, 16
        %v937 = vor.u32 %v934, %v935
        %v938 = vsel %vm735, %v930, %v937
        %v939 = vrot.slane %v934, 4
        %v941 = vshrl.u32 %v726, 16
        %v943 = vrot.slane %v941, 7
        %v944 = vshll.u32 %v726, 16
        %v946 = vor.u32 %v943, %v944
        %v947 = vrot.slane %v943, 4
        %v949 = vshrl.u32 %v727, 16
        %v951 = vrot.slane %v949, 7
        %v952 = vshll.u32 %v727, 16
        %v954 = vor.u32 %v951, %v952
        %v955 = vsel %vm735, %v947, %v954
        %v956 = vrot.slane %v951, 4
        %v958 = vshrl.u32 %v728, 16
        %v960 = vrot.slane %v958, 7
        %v961 = vshll.u32 %v728, 16
        %v963 = vor.u32 %v960, %v961
        %v964 = vrot.slane %v960, 4
        %v966 = vshrl.u32 %v729, 16
        %v968 = vrot.slane %v966, 7
        %v969 = vshll.u32 %v729, 16
        %v971 = vor.u32 %v968, %v969
        %v972 = vsel %vm735, %v964, %v971
        %v973 = vrot.slane %v968, 4
        %v975 = vshrl.u32 %v730, 16
        %v977 = vrot.slane %v975, 7
        %v978 = vshll.u32 %v730, 16
        %v980 = vor.u32 %v977, %v978
        %v981 = vrot.slane %v977, 4
        %v983 = vshrl.u32 %v731, 16
        %v985 = vrot.slane %v983, 7
        %v986 = vshll.u32 %v731, 16
        %v988 = vor.u32 %v985, %v986
        %v989 = vsel %vm735, %v981, %v988
        %v990 = vrot.slane %v985, 4
        %v992 = vshrl.u32 %v732, 16
        %v994 = vrot.slane %v992, 7
        %v995 = vshll.u32 %v732, 16
        %v997 = vor.u32 %v994, %v995
        %v998 = vrot.slane %v994, 4
        %v1000 = vshrl.u32 %v733, 16
        %v1002 = vrot.slane %v1000, 7
        %v1003 = vshll.u32 %v733, 16
        %v1005 = vor.u32 %v1002, %v1003
        %v1006 = vsel %vm735, %v998, %v1005
        %v1007 = vrot.slane %v1002, 4
        %s1056 = scalar_lea.vmem [#allocation2], 12
        %vm1057 = vcmask 1043456
        %vm1058 = vmand %vm1057, %vm315
        %v1059 = vld [vmem:[%s1056] sm:$0xf]
        %v1060 = vsel %vm1058, %v742, %v1059
        %1061 = vst [vmem:[%s1056] sm:$0xf] %v1060
        %1062 = vst [vmem:[%s1056 + $0x4] sm:$0xf] %v751
        %v1063 = vld [vmem:[%s1056 + $0x8] sm:$0x1]
        %v1064 = vsel %vm260, %v752, %v1063
        %1065 = vst [vmem:[%s1056 + $0x8] sm:$0x1] %v1064
        %v1066 = vld [vmem:[%s1056 + $0xc] sm:$0xf]
        %v1067 = vsel %vm1058, %v759, %v1066
        %1068 = vst [vmem:[%s1056 + $0xc] sm:$0xf] %v1067
        %1069 = vst [vmem:[%s1056 + $0x10] sm:$0xf] %v768
        %v1070 = vld [vmem:[%s1056 + $0x14] sm:$0x1]
        %v1071 = vsel %vm260, %v769, %v1070
        %1072 = vst [vmem:[%s1056 + $0x14] sm:$0x1] %v1071
        %v1073 = vld [vmem:[%s1056 + $0x18] sm:$0xf]
        %v1074 = vsel %vm1058, %v776, %v1073
        %1075 = vst [vmem:[%s1056 + $0x18] sm:$0xf] %v1074
        %1076 = vst [vmem:[%s1056 + $0x1c] sm:$0xf] %v785
        %v1077 = vld [vmem:[%s1056 + $0x20] sm:$0x1]
        %v1078 = vsel %vm260, %v786, %v1077
        %1079 = vst [vmem:[%s1056 + $0x20] sm:$0x1] %v1078
        %v1080 = vld [vmem:[%s1056 + $0x24] sm:$0xf]
        %v1081 = vsel %vm1058, %v793, %v1080
        %1082 = vst [vmem:[%s1056 + $0x24] sm:$0xf] %v1081
        %1083 = vst [vmem:[%s1056 + $0x28] sm:$0xf] %v802
        %v1084 = vld [vmem:[%s1056 + $0x2c] sm:$0x1]
        %v1085 = vsel %vm260, %v803, %v1084
        %1086 = vst [vmem:[%s1056 + $0x2c] sm:$0x1] %v1085
        %v1087 = vld [vmem:[%s1056 + $0x30] sm:$0xf]
        %v1088 = vsel %vm1058, %v810, %v1087
        %1089 = vst [vmem:[%s1056 + $0x30] sm:$0xf] %v1088
        %1090 = vst [vmem:[%s1056 + $0x34] sm:$0xf] %v819
        %v1091 = vld [vmem:[%s1056 + $0x38] sm:$0x1]
        %v1092 = vsel %vm260, %v820, %v1091
        %1093 = vst [vmem:[%s1056 + $0x38] sm:$0x1] %v1092
        %v1094 = vld [vmem:[%s1056 + $0x3c] sm:$0xf]
        %v1095 = vsel %vm1058, %v827, %v1094
        %1096 = vst [vmem:[%s1056 + $0x3c] sm:$0xf] %v1095
        %1097 = vst [vmem:[%s1056 + $0x40] sm:$0xf] %v836
        %v1098 = vld [vmem:[%s1056 + $0x44] sm:$0x1]
        %v1099 = vsel %vm260, %v837, %v1098
        %1100 = vst [vmem:[%s1056 + $0x44] sm:$0x1] %v1099
        %v1101 = vld [vmem:[%s1056 + $0x48] sm:$0xf]
        %v1102 = vsel %vm1058, %v844, %v1101
        %1103 = vst [vmem:[%s1056 + $0x48] sm:$0xf] %v1102
        %1104 = vst [vmem:[%s1056 + $0x4c] sm:$0xf] %v853
        %v1105 = vld [vmem:[%s1056 + $0x50] sm:$0x1]
        %v1106 = vsel %vm260, %v854, %v1105
        %1107 = vst [vmem:[%s1056 + $0x50] sm:$0x1] %v1106
        %v1108 = vld [vmem:[%s1056 + $0x54] sm:$0xf]
        %v1109 = vsel %vm1058, %v861, %v1108
        %1110 = vst [vmem:[%s1056 + $0x54] sm:$0xf] %v1109
        %1111 = vst [vmem:[%s1056 + $0x58] sm:$0xf] %v870
        %v1112 = vld [vmem:[%s1056 + $0x5c] sm:$0x1]
        %v1113 = vsel %vm260, %v871, %v1112
        %1114 = vst [vmem:[%s1056 + $0x5c] sm:$0x1] %v1113
        %v1115 = vld [vmem:[%s1056 + $0x60] sm:$0xf]
        %v1116 = vsel %vm1058, %v878, %v1115
        %1117 = vst [vmem:[%s1056 + $0x60] sm:$0xf] %v1116
        %1118 = vst [vmem:[%s1056 + $0x64] sm:$0xf] %v887
        %v1119 = vld [vmem:[%s1056 + $0x68] sm:$0x1]
        %v1120 = vsel %vm260, %v888, %v1119
        %1121 = vst [vmem:[%s1056 + $0x68] sm:$0x1] %v1120
        %v1122 = vld [vmem:[%s1056 + $0x6c] sm:$0xf]
        %v1123 = vsel %vm1058, %v895, %v1122
        %1124 = vst [vmem:[%s1056 + $0x6c] sm:$0xf] %v1123
        %1125 = vst [vmem:[%s1056 + $0x70] sm:$0xf] %v904
        %v1126 = vld [vmem:[%s1056 + $0x74] sm:$0x1]
        %v1127 = vsel %vm260, %v905, %v1126
        %1128 = vst [vmem:[%s1056 + $0x74] sm:$0x1] %v1127
        %v1129 = vld [vmem:[%s1056 + $0x78] sm:$0xf]
        %v1130 = vsel %vm1058, %v912, %v1129
        %1131 = vst [vmem:[%s1056 + $0x78] sm:$0xf] %v1130
        %1132 = vst [vmem:[%s1056 + $0x7c] sm:$0xf] %v921
        %v1133 = vld [vmem:[%s1056 + $0x80] sm:$0x1]
        %v1134 = vsel %vm260, %v922, %v1133
        %1135 = vst [vmem:[%s1056 + $0x80] sm:$0x1] %v1134
        %v1136 = vld [vmem:[%s1056 + $0x84] sm:$0xf]
        %v1137 = vsel %vm1058, %v929, %v1136
        %1138 = vst [vmem:[%s1056 + $0x84] sm:$0xf] %v1137
        %1139 = vst [vmem:[%s1056 + $0x88] sm:$0xf] %v938
        %v1140 = vld [vmem:[%s1056 + $0x8c] sm:$0x1]
        %v1141 = vsel %vm260, %v939, %v1140
        %1142 = vst [vmem:[%s1056 + $0x8c] sm:$0x1] %v1141
        %v1143 = vld [vmem:[%s1056 + $0x90] sm:$0xf]
        %v1144 = vsel %vm1058, %v946, %v1143
        %1145 = vst [vmem:[%s1056 + $0x90] sm:$0xf] %v1144
        %1146 = vst [vmem:[%s1056 + $0x94] sm:$0xf] %v955
        %v1147 = vld [vmem:[%s1056 + $0x98] sm:$0x1]
        %v1148 = vsel %vm260, %v956, %v1147
        %1149 = vst [vmem:[%s1056 + $0x98] sm:$0x1] %v1148
        %v1150 = vld [vmem:[%s1056 + $0x9c] sm:$0xf]
        %v1151 = vsel %vm1058, %v963, %v1150
        %1152 = vst [vmem:[%s1056 + $0x9c] sm:$0xf] %v1151
        %1153 = vst [vmem:[%s1056 + $0xa0] sm:$0xf] %v972
        %v1154 = vld [vmem:[%s1056 + $0xa4] sm:$0x1]
        %v1155 = vsel %vm260, %v973, %v1154
        %1156 = vst [vmem:[%s1056 + $0xa4] sm:$0x1] %v1155
        %v1157 = vld [vmem:[%s1056 + $0xa8] sm:$0xf]
        %v1158 = vsel %vm1058, %v980, %v1157
        %1159 = vst [vmem:[%s1056 + $0xa8] sm:$0xf] %v1158
        %1160 = vst [vmem:[%s1056 + $0xac] sm:$0xf] %v989
        %v1161 = vld [vmem:[%s1056 + $0xb0] sm:$0x1]
        %v1162 = vsel %vm260, %v990, %v1161
        %1163 = vst [vmem:[%s1056 + $0xb0] sm:$0x1] %v1162
        %v1164 = vld [vmem:[%s1056 + $0xb4] sm:$0xf]
        %v1165 = vsel %vm1058, %v997, %v1164
        %1166 = vst [vmem:[%s1056 + $0xb4] sm:$0xf] %v1165
        %1167 = vst [vmem:[%s1056 + $0xb8] sm:$0xf] %v1006
        %v1168 = vld [vmem:[%s1056 + $0xbc] sm:$0x1]
        %v1169 = vsel %vm260, %v1007, %v1168
        %1170 = vst [vmem:[%s1056 + $0xbc] sm:$0x1] %v1169
        %v1171 = vld [vmem:[#allocation2] sm:$0xf]
        %v1172 = vld [vmem:[#allocation2 + $0x4] sm:$0xf]
        %v1173 = vld [vmem:[#allocation2 + $0xc] sm:$0xf]
        %v1174 = vld [vmem:[#allocation2 + $0x10] sm:$0xf]
        %v1175 = vld [vmem:[#allocation2 + $0x18] sm:$0xf]
        %v1176 = vld [vmem:[#allocation2 + $0x1c] sm:$0xf]
        %v1177 = vld [vmem:[#allocation2 + $0x24] sm:$0xf]
        %v1178 = vld [vmem:[#allocation2 + $0x28] sm:$0xf]
        %v1179 = vld [vmem:[#allocation2 + $0x30] sm:$0xf]
        %v1180 = vld [vmem:[#allocation2 + $0x34] sm:$0xf]
        %v1181 = vld [vmem:[#allocation2 + $0x3c] sm:$0xf]
        %v1182 = vld [vmem:[#allocation2 + $0x40] sm:$0xf]
        %v1183 = vld [vmem:[#allocation2 + $0x48] sm:$0xf]
        %v1184 = vld [vmem:[#allocation2 + $0x4c] sm:$0xf]
        %v1185 = vld [vmem:[#allocation2 + $0x54] sm:$0xf]
        %v1186 = vld [vmem:[#allocation2 + $0x58] sm:$0xf]
        %v1187 = vld [vmem:[#allocation2 + $0x60] sm:$0xf]
        %v1188 = vld [vmem:[#allocation2 + $0x64] sm:$0xf]
        %v1189 = vld [vmem:[#allocation2 + $0x6c] sm:$0xf]
        %v1190 = vld [vmem:[#allocation2 + $0x70] sm:$0xf]
        %v1191 = vld [vmem:[#allocation2 + $0x78] sm:$0xf]
        %v1192 = vld [vmem:[#allocation2 + $0x7c] sm:$0xf]
        %v1193 = vld [vmem:[#allocation2 + $0x84] sm:$0xf]
        %v1194 = vld [vmem:[#allocation2 + $0x88] sm:$0xf]
        %v1195 = vld [vmem:[#allocation2 + $0x90] sm:$0xf]
        %v1196 = vld [vmem:[#allocation2 + $0x94] sm:$0xf]
        %v1197 = vld [vmem:[#allocation2 + $0x9c] sm:$0xf]
        %v1198 = vld [vmem:[#allocation2 + $0xa0] sm:$0xf]
        %v1199 = vld [vmem:[#allocation2 + $0xa8] sm:$0xf]
        %v1200 = vld [vmem:[#allocation2 + $0xac] sm:$0xf]
        %v1201 = vld [vmem:[#allocation2 + $0xb4] sm:$0xf]
        %v1202 = vld [vmem:[#allocation2 + $0xb8] sm:$0xf]
        %v1203 = vld [vmem:[%s5] sm:$0xf]
        %v1204 = vld [vmem:[%s5 + $0x4] sm:$0xf]
        %v1205 = vld [vmem:[%s5 + $0x8] sm:$0xf]
        %v1206 = vld [vmem:[%s5 + $0xc] sm:$0xf]
        %v1207 = vld [vmem:[%s5 + $0x10] sm:$0xf]
        %v1208 = vld [vmem:[%s5 + $0x14] sm:$0xf]
        %v1209 = vld [vmem:[%s5 + $0x18] sm:$0xf]
        %v1210 = vld [vmem:[%s5 + $0x1c] sm:$0xf]
        %v1211 = vld [vmem:[%s5 + $0x20] sm:$0xf]
        %v1212 = vld [vmem:[%s5 + $0x24] sm:$0xf]
        %v1213 = vld [vmem:[%s5 + $0x28] sm:$0xf]
        %v1214 = vld [vmem:[%s5 + $0x2c] sm:$0xf]
        %v1215 = vld [vmem:[%s5 + $0x30] sm:$0xf]
        %v1216 = vld [vmem:[%s5 + $0x34] sm:$0xf]
        %v1217 = vld [vmem:[%s5 + $0x38] sm:$0xf]
        %v1218 = vld [vmem:[%s5 + $0x3c] sm:$0xf]
        %v1219 = vld [vmem:[#allocation2 + $0x8] sm:$0x1]
        %v1220 = vld [vmem:[#allocation2 + $0x14] sm:$0x1]
        %v1221 = vld [vmem:[#allocation2 + $0x20] sm:$0x1]
        %v1222 = vld [vmem:[#allocation2 + $0x2c] sm:$0x1]
        %v1223 = vld [vmem:[#allocation2 + $0x38] sm:$0x1]
        %v1224 = vld [vmem:[#allocation2 + $0x44] sm:$0x1]
        %v1225 = vld [vmem:[#allocation2 + $0x50] sm:$0x1]
        %v1226 = vld [vmem:[#allocation2 + $0x5c] sm:$0x1]
        %v1227 = vld [vmem:[#allocation2 + $0x68] sm:$0x1]
        %v1228 = vld [vmem:[#allocation2 + $0x74] sm:$0x1]
        %v1229 = vld [vmem:[#allocation2 + $0x80] sm:$0x1]
        %v1230 = vld [vmem:[#allocation2 + $0x8c] sm:$0x1]
        %v1231 = vld [vmem:[#allocation2 + $0x98] sm:$0x1]
        %v1232 = vld [vmem:[#allocation2 + $0xa4] sm:$0x1]
        %v1233 = vld [vmem:[#allocation2 + $0xb0] sm:$0x1]
        %v1234 = vld [vmem:[#allocation2 + $0xbc] sm:$0x1]
        %vm1235 = vsmask.f32 3328
        %vm1236 = vsmask.f32 7440
        %vm1237 = vmor %vm1235, %vm1236
        %v1239 = vshrl.u32 %v1171, 16
        %v1241 = vrot.slane %v1239, 4
        %v1242 = vshll.u32 %v1171, 16
        %v1244 = vrot.slane %v1242, 5
        %v1245 = vor.u32 %v1241, %v1244
        %v1246 = vrot.slane %v1245, 4
        %v1248 = vshll.u32 %v1172, 16
        %v1250 = vrot.slane %v1248, 5
        %v1251 = vsel %vm1237, %v1246, %v1250
        %v1252 = vshrl.u32 %v1172, 16
        %v1254 = vrot.slane %v1252, 4
        %v1255 = vor.u32 %v1254, %v1250
        %v1256 = vrot.slane %v1255, 4
        %v1258 = vshll.u32 %v1219, 16
        %v1260 = vrot.slane %v1258, 5
        %v1261 = vsel %vm1237, %v1256, %v1260
        %v1263 = vshrl.u32 %v1173, 16
        %v1265 = vrot.slane %v1263, 4
        %v1266 = vshll.u32 %v1173, 16
        %v1268 = vrot.slane %v1266, 5
        %v1269 = vor.u32 %v1265, %v1268
        %v1270 = vrot.slane %v1269, 4
        %v1272 = vshll.u32 %v1174, 16
        %v1274 = vrot.slane %v1272, 5
        %v1275 = vsel %vm1237, %v1270, %v1274
        %v1276 = vshrl.u32 %v1174, 16
        %v1278 = vrot.slane %v1276, 4
        %v1279 = vor.u32 %v1278, %v1274
        %v1280 = vrot.slane %v1279, 4
        %v1282 = vshll.u32 %v1220, 16
        %v1284 = vrot.slane %v1282, 5
        %v1285 = vsel %vm1237, %v1280, %v1284
        %v1287 = vshrl.u32 %v1175, 16
        %v1289 = vrot.slane %v1287, 4
        %v1290 = vshll.u32 %v1175, 16
        %v1292 = vrot.slane %v1290, 5
        %v1293 = vor.u32 %v1289, %v1292
        %v1294 = vrot.slane %v1293, 4
        %v1296 = vshll.u32 %v1176, 16
        %v1298 = vrot.slane %v1296, 5
        %v1299 = vsel %vm1237, %v1294, %v1298
        %v1300 = vshrl.u32 %v1176, 16
        %v1302 = vrot.slane %v1300, 4
        %v1303 = vor.u32 %v1302, %v1298
        %v1304 = vrot.slane %v1303, 4
        %v1306 = vshll.u32 %v1221, 16
        %v1308 = vrot.slane %v1306, 5
        %v1309 = vsel %vm1237, %v1304, %v1308
        %v1311 = vshrl.u32 %v1177, 16
        %v1313 = vrot.slane %v1311, 4
        %v1314 = vshll.u32 %v1177, 16
        %v1316 = vrot.slane %v1314, 5
        %v1317 = vor.u32 %v1313, %v1316
        %v1318 = vrot.slane %v1317, 4
        %v1320 = vshll.u32 %v1178, 16
        %v1322 = vrot.slane %v1320, 5
        %v1323 = vsel %vm1237, %v1318, %v1322
        %v1324 = vshrl.u32 %v1178, 16
        %v1326 = vrot.slane %v1324, 4
        %v1327 = vor.u32 %v1326, %v1322
        %v1328 = vrot.slane %v1327, 4
        %v1330 = vshll.u32 %v1222, 16
        %v1332 = vrot.slane %v1330, 5
        %v1333 = vsel %vm1237, %v1328, %v1332
        %v1335 = vshrl.u32 %v1179, 16
        %v1337 = vrot.slane %v1335, 4
        %v1338 = vshll.u32 %v1179, 16
        %v1340 = vrot.slane %v1338, 5
        %v1341 = vor.u32 %v1337, %v1340
        %v1342 = vrot.slane %v1341, 4
        %v1344 = vshll.u32 %v1180, 16
        %v1346 = vrot.slane %v1344, 5
        %v1347 = vsel %vm1237, %v1342, %v1346
        %v1348 = vshrl.u32 %v1180, 16
        %v1350 = vrot.slane %v1348, 4
        %v1351 = vor.u32 %v1350, %v1346
        %v1352 = vrot.slane %v1351, 4
        %v1354 = vshll.u32 %v1223, 16
        %v1356 = vrot.slane %v1354, 5
        %v1357 = vsel %vm1237, %v1352, %v1356
        %v1359 = vshrl.u32 %v1181, 16
        %v1361 = vrot.slane %v1359, 4
        %v1362 = vshll.u32 %v1181, 16
        %v1364 = vrot.slane %v1362, 5
        %v1365 = vor.u32 %v1361, %v1364
        %v1366 = vrot.slane %v1365, 4
        %v1368 = vshll.u32 %v1182, 16
        %v1370 = vrot.slane %v1368, 5
        %v1371 = vsel %vm1237, %v1366, %v1370
        %v1372 = vshrl.u32 %v1182, 16
        %v1374 = vrot.slane %v1372, 4
        %v1375 = vor.u32 %v1374, %v1370
        %v1376 = vrot.slane %v1375, 4
        %v1378 = vshll.u32 %v1224, 16
        %v1380 = vrot.slane %v1378, 5
        %v1381 = vsel %vm1237, %v1376, %v1380
        %v1383 = vshrl.u32 %v1183, 16
        %v1385 = vrot.slane %v1383, 4
        %v1386 = vshll.u32 %v1183, 16
        %v1388 = vrot.slane %v1386, 5
        %v1389 = vor.u32 %v1385, %v1388
        %v1390 = vrot.slane %v1389, 4
        %v1392 = vshll.u32 %v1184, 16
        %v1394 = vrot.slane %v1392, 5
        %v1395 = vsel %vm1237, %v1390, %v1394
        %v1396 = vshrl.u32 %v1184, 16
        %v1398 = vrot.slane %v1396, 4
        %v1399 = vor.u32 %v1398, %v1394
        %v1400 = vrot.slane %v1399, 4
        %v1402 = vshll.u32 %v1225, 16
        %v1404 = vrot.slane %v1402, 5
        %v1405 = vsel %vm1237, %v1400, %v1404
        %v1407 = vshrl.u32 %v1185, 16
        %v1409 = vrot.slane %v1407, 4
        %v1410 = vshll.u32 %v1185, 16
        %v1412 = vrot.slane %v1410, 5
        %v1413 = vor.u32 %v1409, %v1412
        %v1414 = vrot.slane %v1413, 4
        %v1416 = vshll.u32 %v1186, 16
        %v1418 = vrot.slane %v1416, 5
        %v1419 = vsel %vm1237, %v1414, %v1418
        %v1420 = vshrl.u32 %v1186, 16
        %v1422 = vrot.slane %v1420, 4
        %v1423 = vor.u32 %v1422, %v1418
        %v1424 = vrot.slane %v1423, 4
        %v1426 = vshll.u32 %v1226, 16
        %v1428 = vrot.slane %v1426, 5
        %v1429 = vsel %vm1237, %v1424, %v1428
        %v1431 = vshrl.u32 %v1187, 16
        %v1433 = vrot.slane %v1431, 4
        %v1434 = vshll.u32 %v1187, 16
        %v1436 = vrot.slane %v1434, 5
        %v1437 = vor.u32 %v1433, %v1436
        %v1438 = vrot.slane %v1437, 4
        %v1440 = vshll.u32 %v1188, 16
        %v1442 = vrot.slane %v1440, 5
        %v1443 = vsel %vm1237, %v1438, %v1442
        %v1444 = vshrl.u32 %v1188, 16
        %v1446 = vrot.slane %v1444, 4
        %v1447 = vor.u32 %v1446, %v1442
        %v1448 = vrot.slane %v1447, 4
        %v1450 = vshll.u32 %v1227, 16
        %v1452 = vrot.slane %v1450, 5
        %v1453 = vsel %vm1237, %v1448, %v1452
        %v1455 = vshrl.u32 %v1189, 16
        %v1457 = vrot.slane %v1455, 4
        %v1458 = vshll.u32 %v1189, 16
        %v1460 = vrot.slane %v1458, 5
        %v1461 = vor.u32 %v1457, %v1460
        %v1462 = vrot.slane %v1461, 4
        %v1464 = vshll.u32 %v1190, 16
        %v1466 = vrot.slane %v1464, 5
        %v1467 = vsel %vm1237, %v1462, %v1466
        %v1468 = vshrl.u32 %v1190, 16
        %v1470 = vrot.slane %v1468, 4
        %v1471 = vor.u32 %v1470, %v1466
        %v1472 = vrot.slane %v1471, 4
        %v1474 = vshll.u32 %v1228, 16
        %v1476 = vrot.slane %v1474, 5
        %v1477 = vsel %vm1237, %v1472, %v1476
        %v1479 = vshrl.u32 %v1191, 16
        %v1481 = vrot.slane %v1479, 4
        %v1482 = vshll.u32 %v1191, 16
        %v1484 = vrot.slane %v1482, 5
        %v1485 = vor.u32 %v1481, %v1484
        %v1486 = vrot.slane %v1485, 4
        %v1488 = vshll.u32 %v1192, 16
        %v1490 = vrot.slane %v1488, 5
        %v1491 = vsel %vm1237, %v1486, %v1490
        %v1492 = vshrl.u32 %v1192, 16
        %v1494 = vrot.slane %v1492, 4
        %v1495 = vor.u32 %v1494, %v1490
        %v1496 = vrot.slane %v1495, 4
        %v1498 = vshll.u32 %v1229, 16
        %v1500 = vrot.slane %v1498, 5
        %v1501 = vsel %vm1237, %v1496, %v1500
        %v1503 = vshrl.u32 %v1193, 16
        %v1505 = vrot.slane %v1503, 4
        %v1506 = vshll.u32 %v1193, 16
        %v1508 = vrot.slane %v1506, 5
        %v1509 = vor.u32 %v1505, %v1508
        %v1510 = vrot.slane %v1509, 4
        %v1512 = vshll.u32 %v1194, 16
        %v1514 = vrot.slane %v1512, 5
        %v1515 = vsel %vm1237, %v1510, %v1514
        %v1516 = vshrl.u32 %v1194, 16
        %v1518 = vrot.slane %v1516, 4
        %v1519 = vor.u32 %v1518, %v1514
        %v1520 = vrot.slane %v1519, 4
        %v1522 = vshll.u32 %v1230, 16
        %v1524 = vrot.slane %v1522, 5
        %v1525 = vsel %vm1237, %v1520, %v1524
        %v1527 = vshrl.u32 %v1195, 16
        %v1529 = vrot.slane %v1527, 4
        %v1530 = vshll.u32 %v1195, 16
        %v1532 = vrot.slane %v1530, 5
        %v1533 = vor.u32 %v1529, %v1532
        %v1534 = vrot.slane %v1533, 4
        %v1536 = vshll.u32 %v1196, 16
        %v1538 = vrot.slane %v1536, 5
        %v1539 = vsel %vm1237, %v1534, %v1538
        %v1540 = vshrl.u32 %v1196, 16
        %v1542 = vrot.slane %v1540, 4
        %v1543 = vor.u32 %v1542, %v1538
        %v1544 = vrot.slane %v1543, 4
        %v1546 = vshll.u32 %v1231, 16
        %v1548 = vrot.slane %v1546, 5
        %v1549 = vsel %vm1237, %v1544, %v1548
        %v1551 = vshrl.u32 %v1197, 16
        %v1553 = vrot.slane %v1551, 4
        %v1554 = vshll.u32 %v1197, 16
        %v1556 = vrot.slane %v1554, 5
        %v1557 = vor.u32 %v1553, %v1556
        %v1558 = vrot.slane %v1557, 4
        %v1560 = vshll.u32 %v1198, 16
        %v1562 = vrot.slane %v1560, 5
        %v1563 = vsel %vm1237, %v1558, %v1562
        %v1564 = vshrl.u32 %v1198, 16
        %v1566 = vrot.slane %v1564, 4
        %v1567 = vor.u32 %v1566, %v1562
        %v1568 = vrot.slane %v1567, 4
        %v1570 = vshll.u32 %v1232, 16
        %v1572 = vrot.slane %v1570, 5
        %v1573 = vsel %vm1237, %v1568, %v1572
        %v1575 = vshrl.u32 %v1199, 16
        %v1577 = vrot.slane %v1575, 4
        %v1578 = vshll.u32 %v1199, 16
        %v1580 = vrot.slane %v1578, 5
        %v1581 = vor.u32 %v1577, %v1580
        %v1582 = vrot.slane %v1581, 4
        %v1584 = vshll.u32 %v1200, 16
        %v1586 = vrot.slane %v1584, 5
        %v1587 = vsel %vm1237, %v1582, %v1586
        %v1588 = vshrl.u32 %v1200, 16
        %v1590 = vrot.slane %v1588, 4
        %v1591 = vor.u32 %v1590, %v1586
        %v1592 = vrot.slane %v1591, 4
        %v1594 = vshll.u32 %v1233, 16
        %v1596 = vrot.slane %v1594, 5
        %v1597 = vsel %vm1237, %v1592, %v1596
        %v1599 = vshrl.u32 %v1201, 16
        %v1601 = vrot.slane %v1599, 4
        %v1602 = vshll.u32 %v1201, 16
        %v1604 = vrot.slane %v1602, 5
        %v1605 = vor.u32 %v1601, %v1604
        %v1606 = vrot.slane %v1605, 4
        %v1608 = vshll.u32 %v1202, 16
        %v1610 = vrot.slane %v1608, 5
        %v1611 = vsel %vm1237, %v1606, %v1610
        %v1612 = vshrl.u32 %v1202, 16
        %v1614 = vrot.slane %v1612, 4
        %v1615 = vor.u32 %v1614, %v1610
        %v1616 = vrot.slane %v1615, 4
        %v1618 = vshll.u32 %v1234, 16
        %v1620 = vrot.slane %v1618, 5
        %v1621 = vsel %vm1237, %v1616, %v1620
        %s1622 = scalar_lea.vmem %s5, 64
        %v1623 = vld [vmem:[%s1622] sm:$0xf]
        %v1624 = vld [vmem:[%s1622 + $0x4] sm:$0xf]
        %v1625 = vld [vmem:[%s1622 + $0x8] sm:$0xf]
        %v1626 = vld [vmem:[%s1622 + $0xc] sm:$0xf]
        %v1627 = vld [vmem:[%s1622 + $0x10] sm:$0xf]
        %v1628 = vld [vmem:[%s1622 + $0x14] sm:$0xf]
        %v1629 = vld [vmem:[%s1622 + $0x18] sm:$0xf]
        %v1630 = vld [vmem:[%s1622 + $0x1c] sm:$0xf]
        %v1631 = vld [vmem:[%s1622 + $0x20] sm:$0xf]
        %v1632 = vld [vmem:[%s1622 + $0x24] sm:$0xf]
        %v1633 = vld [vmem:[%s1622 + $0x28] sm:$0xf]
        %v1634 = vld [vmem:[%s1622 + $0x2c] sm:$0xf]
        %v1635 = vld [vmem:[%s1622 + $0x30] sm:$0xf]
        %v1636 = vld [vmem:[%s1622 + $0x34] sm:$0xf]
        %v1637 = vld [vmem:[%s1622 + $0x38] sm:$0xf]
        %v1638 = vld [vmem:[%s1622 + $0x3c] sm:$0xf]
        %v1639 = vunpack.c.l.b16 %v1251
        %v1640 = vunpack.c.l.b16 %v1261
        %v1641 = vunpack.c.l.b16 %v1275
        %v1642 = vunpack.c.l.b16 %v1285
        %v1643 = vunpack.c.l.b16 %v1299
        %v1644 = vunpack.c.l.b16 %v1309
        %v1645 = vunpack.c.l.b16 %v1323
        %v1646 = vunpack.c.l.b16 %v1333
        %v1647 = vunpack.c.l.b16 %v1347
        %v1648 = vunpack.c.l.b16 %v1357
        %v1649 = vunpack.c.l.b16 %v1371
        %v1650 = vunpack.c.l.b16 %v1381
        %v1651 = vunpack.c.l.b16 %v1395
        %v1652 = vunpack.c.l.b16 %v1405
        %v1653 = vunpack.c.l.b16 %v1419
        %v1654 = vunpack.c.l.b16 %v1429
        %v1655 = vunpack.c.l.b16 %v1443
        %v1656 = vunpack.c.l.b16 %v1453
        %v1657 = vunpack.c.l.b16 %v1467
        %v1658 = vunpack.c.l.b16 %v1477
        %v1659 = vunpack.c.l.b16 %v1491
        %v1660 = vunpack.c.l.b16 %v1501
        %v1661 = vunpack.c.l.b16 %v1515
        %v1662 = vunpack.c.l.b16 %v1525
        %v1663 = vunpack.c.l.b16 %v1539
        %v1664 = vunpack.c.l.b16 %v1549
        %v1665 = vunpack.c.l.b16 %v1563
        %v1666 = vunpack.c.l.b16 %v1573
        %v1667 = vunpack.c.l.b16 %v1587
        %v1668 = vunpack.c.l.b16 %v1597
        %v1669 = vunpack.c.l.b16 %v1611
        %v1670 = vunpack.c.l.b16 %v1621
        %v1671 = vpack.c.b16 %v1640, %v1639
        %v1672 = vpack.c.b16 %v1642, %v1641
        %v1673 = vpack.c.b16 %v1644, %v1643
        %v1674 = vpack.c.b16 %v1646, %v1645
        %v1675 = vpack.c.b16 %v1648, %v1647
        %v1676 = vpack.c.b16 %v1650, %v1649
        %v1677 = vpack.c.b16 %v1652, %v1651
        %v1678 = vpack.c.b16 %v1654, %v1653
        %v1679 = vpack.c.b16 %v1656, %v1655
        %v1680 = vpack.c.b16 %v1658, %v1657
        %v1681 = vpack.c.b16 %v1660, %v1659
        %v1682 = vpack.c.b16 %v1662, %v1661
        %v1683 = vpack.c.b16 %v1664, %v1663
        %v1684 = vpack.c.b16 %v1666, %v1665
        %v1685 = vpack.c.b16 %v1668, %v1667
        %v1686 = vpack.c.b16 %v1670, %v1669
        %v1719 = vunpack.c.l.b16 %v1623
        %v1720 = vunpack.c.l.b16 %v1624
        %v1721 = vunpack.c.l.b16 %v1625
        %v1722 = vunpack.c.l.b16 %v1626
        %v1723 = vunpack.c.l.b16 %v1627
        %v1724 = vunpack.c.l.b16 %v1628
        %v1725 = vunpack.c.l.b16 %v1629
        %v1726 = vunpack.c.l.b16 %v1630
        %v1727 = vunpack.c.l.b16 %v1631
        %v1728 = vunpack.c.l.b16 %v1632
        %v1729 = vunpack.c.l.b16 %v1633
        %v1730 = vunpack.c.l.b16 %v1634
        %v1731 = vunpack.c.l.b16 %v1635
        %v1732 = vunpack.c.l.b16 %v1636
        %v1733 = vunpack.c.l.b16 %v1637
        %v1734 = vunpack.c.l.b16 %v1638
        %v1735 = vpack.c.b16 %v1720, %v1719
        %v1736 = vpack.c.b16 %v1722, %v1721
        %v1737 = vpack.c.b16 %v1724, %v1723
        %v1738 = vpack.c.b16 %v1726, %v1725
        %v1739 = vpack.c.b16 %v1728, %v1727
        %v1740 = vpack.c.b16 %v1730, %v1729
        %v1741 = vpack.c.b16 %v1732, %v1731
        %v1742 = vpack.c.b16 %v1734, %v1733
        %1751 = vmatpush.bf16.msra.mxu0 %v1742
        %1752 = vmatpush.bf16.msra.mxu0 %v1741
        %1753 = vmatpush.bf16.msra.mxu0 %v1740
        %1754 = vmatpush.bf16.msra.mxu0 %v1739
        %1755 = vmatpush.bf16.msra.mxu0 %v1738
        %1756 = vmatpush.bf16.msra.mxu0 %v1737
        %1757 = vmatpush.bf16.msra.mxu0 %v1736
        %1758 = vmatpush.bf16.msra.mxu0 %v1735
        %1759 = vmatmul.bf16.gmra.mxu0 %v1671
        %v1760 = vpop.f32.mrf.mxu0
        %v1761 = vadd.f32 0.0, %v1760
        %v1762 = vpop.f32.mrf.mxu0
        %v1763 = vadd.f32 0.0, %v1762
        %1764 = vmatmul.bf16.gmra.mxu0 %v1672
        %v1765 = vpop.f32.mrf.mxu0
        %v1766 = vadd.f32 0.0, %v1765
        %v1767 = vpop.f32.mrf.mxu0
        %v1768 = vadd.f32 0.0, %v1767
        %1769 = vmatmul.bf16.gmra.mxu0 %v1673
        %v1770 = vpop.f32.mrf.mxu0
        %v1771 = vadd.f32 0.0, %v1770
        %v1772 = vpop.f32.mrf.mxu0
        %v1773 = vadd.f32 0.0, %v1772
        %1774 = vmatmul.bf16.gmra.mxu0 %v1674
        %v1775 = vpop.f32.mrf.mxu0
        %v1776 = vadd.f32 0.0, %v1775
        %v1777 = vpop.f32.mrf.mxu0
        %v1778 = vadd.f32 0.0, %v1777
        %1779 = vmatmul.bf16.gmra.mxu0 %v1675
        %v1780 = vpop.f32.mrf.mxu0
        %v1781 = vadd.f32 0.0, %v1780
        %v1782 = vpop.f32.mrf.mxu0
        %v1783 = vadd.f32 0.0, %v1782
        %1784 = vmatmul.bf16.gmra.mxu0 %v1676
        %v1785 = vpop.f32.mrf.mxu0
        %v1786 = vadd.f32 0.0, %v1785
        %v1787 = vpop.f32.mrf.mxu0
        %v1788 = vadd.f32 0.0, %v1787
        %1789 = vmatmul.bf16.gmra.mxu0 %v1677
        %v1790 = vpop.f32.mrf.mxu0
        %v1791 = vadd.f32 0.0, %v1790
        %v1792 = vpop.f32.mrf.mxu0
        %v1793 = vadd.f32 0.0, %v1792
        %1794 = vmatmul.bf16.gmra.mxu0 %v1678
        %v1795 = vpop.f32.mrf.mxu0
        %v1796 = vadd.f32 0.0, %v1795
        %v1797 = vpop.f32.mrf.mxu0
        %v1798 = vadd.f32 0.0, %v1797
        %1799 = vmatmul.bf16.gmra.mxu0 %v1679
        %v1800 = vpop.f32.mrf.mxu0
        %v1801 = vadd.f32 0.0, %v1800
        %v1802 = vpop.f32.mrf.mxu0
        %v1803 = vadd.f32 0.0, %v1802
        %1804 = vmatmul.bf16.gmra.mxu0 %v1680
        %v1805 = vpop.f32.mrf.mxu0
        %v1806 = vadd.f32 0.0, %v1805
        %v1807 = vpop.f32.mrf.mxu0
        %v1808 = vadd.f32 0.0, %v1807
        %1809 = vmatmul.bf16.gmra.mxu0 %v1681
        %v1810 = vpop.f32.mrf.mxu0
        %v1811 = vadd.f32 0.0, %v1810
        %v1812 = vpop.f32.mrf.mxu0
        %v1813 = vadd.f32 0.0, %v1812
        %1814 = vmatmul.bf16.gmra.mxu0 %v1682
        %v1815 = vpop.f32.mrf.mxu0
        %v1816 = vadd.f32 0.0, %v1815
        %v1817 = vpop.f32.mrf.mxu0
        %v1818 = vadd.f32 0.0, %v1817
        %1819 = vmatmul.bf16.gmra.mxu0 %v1683
        %v1820 = vpop.f32.mrf.mxu0
        %v1821 = vadd.f32 0.0, %v1820
        %v1822 = vpop.f32.mrf.mxu0
        %v1823 = vadd.f32 0.0, %v1822
        %1824 = vmatmul.bf16.gmra.mxu0 %v1684
        %v1825 = vpop.f32.mrf.mxu0
        %v1826 = vadd.f32 0.0, %v1825
        %v1827 = vpop.f32.mrf.mxu0
        %v1828 = vadd.f32 0.0, %v1827
        %1829 = vmatmul.bf16.gmra.mxu0 %v1685
        %v1830 = vpop.f32.mrf.mxu0
        %v1831 = vadd.f32 0.0, %v1830
        %v1832 = vpop.f32.mrf.mxu0
        %v1833 = vadd.f32 0.0, %v1832
        %1834 = vmatmul.bf16.gmra.mxu0 %v1686
        %v1835 = vpop.f32.mrf.mxu0
        %v1836 = vadd.f32 0.0, %v1835
        %v1837 = vpop.f32.mrf.mxu0
        %v1838 = vadd.f32 0.0, %v1837
        %1839 = vdwg.mxu0
        %v1872 = vunpack.c.l.b16 %v1171
        %v1873 = vunpack.c.l.b16 %v1172
        %v1874 = vunpack.c.l.b16 %v1173
        %v1875 = vunpack.c.l.b16 %v1174
        %v1876 = vunpack.c.l.b16 %v1175
        %v1877 = vunpack.c.l.b16 %v1176
        %v1878 = vunpack.c.l.b16 %v1177
        %v1879 = vunpack.c.l.b16 %v1178
        %v1880 = vunpack.c.l.b16 %v1179
        %v1881 = vunpack.c.l.b16 %v1180
        %v1882 = vunpack.c.l.b16 %v1181
        %v1883 = vunpack.c.l.b16 %v1182
        %v1884 = vunpack.c.l.b16 %v1183
        %v1885 = vunpack.c.l.b16 %v1184
        %v1886 = vunpack.c.l.b16 %v1185
        %v1887 = vunpack.c.l.b16 %v1186
        %v1888 = vunpack.c.l.b16 %v1187
        %v1889 = vunpack.c.l.b16 %v1188
        %v1890 = vunpack.c.l.b16 %v1189
        %v1891 = vunpack.c.l.b16 %v1190
        %v1892 = vunpack.c.l.b16 %v1191
        %v1893 = vunpack.c.l.b16 %v1192
        %v1894 = vunpack.c.l.b16 %v1193
        %v1895 = vunpack.c.l.b16 %v1194
        %v1896 = vunpack.c.l.b16 %v1195
        %v1897 = vunpack.c.l.b16 %v1196
        %v1898 = vunpack.c.l.b16 %v1197
        %v1899 = vunpack.c.l.b16 %v1198
        %v1900 = vunpack.c.l.b16 %v1199
        %v1901 = vunpack.c.l.b16 %v1200
        %v1902 = vunpack.c.l.b16 %v1201
        %v1903 = vunpack.c.l.b16 %v1202
        %v1904 = vpack.c.b16 %v1873, %v1872
        %v1905 = vpack.c.b16 %v1875, %v1874
        %v1906 = vpack.c.b16 %v1877, %v1876
        %v1907 = vpack.c.b16 %v1879, %v1878
        %v1908 = vpack.c.b16 %v1881, %v1880
        %v1909 = vpack.c.b16 %v1883, %v1882
        %v1910 = vpack.c.b16 %v1885, %v1884
        %v1911 = vpack.c.b16 %v1887, %v1886
        %v1912 = vpack.c.b16 %v1889, %v1888
        %v1913 = vpack.c.b16 %v1891, %v1890
        %v1914 = vpack.c.b16 %v1893, %v1892
        %v1915 = vpack.c.b16 %v1895, %v1894
        %v1916 = vpack.c.b16 %v1897, %v1896
        %v1917 = vpack.c.b16 %v1899, %v1898
        %v1918 = vpack.c.b16 %v1901, %v1900
        %v1919 = vpack.c.b16 %v1903, %v1902
        %v1952 = vunpack.c.l.b16 %v1203
        %v1953 = vunpack.c.l.b16 %v1204
        %v1954 = vunpack.c.l.b16 %v1205
        %v1955 = vunpack.c.l.b16 %v1206
        %v1956 = vunpack.c.l.b16 %v1207
        %v1957 = vunpack.c.l.b16 %v1208
        %v1958 = vunpack.c.l.b16 %v1209
        %v1959 = vunpack.c.l.b16 %v1210
        %v1960 = vunpack.c.l.b16 %v1211
        %v1961 = vunpack.c.l.b16 %v1212
        %v1962 = vunpack.c.l.b16 %v1213
        %v1963 = vunpack.c.l.b16 %v1214
        %v1964 = vunpack.c.l.b16 %v1215
        %v1965 = vunpack.c.l.b16 %v1216
        %v1966 = vunpack.c.l.b16 %v1217
        %v1967 = vunpack.c.l.b16 %v1218
        %v1968 = vpack.c.b16 %v1953, %v1952
        %v1969 = vpack.c.b16 %v1955, %v1954
        %v1970 = vpack.c.b16 %v1957, %v1956
        %v1971 = vpack.c.b16 %v1959, %v1958
        %v1972 = vpack.c.b16 %v1961, %v1960
        %v1973 = vpack.c.b16 %v1963, %v1962
        %v1974 = vpack.c.b16 %v1965, %v1964
        %v1975 = vpack.c.b16 %v1967, %v1966
        %1984 = vmatpush.bf16.msra.mxu0 %v1975
        %1985 = vmatpush.bf16.msra.mxu0 %v1974
        %1986 = vmatpush.bf16.msra.mxu0 %v1973
        %1987 = vmatpush.bf16.msra.mxu0 %v1972
        %1988 = vmatpush.bf16.msra.mxu0 %v1971
        %1989 = vmatpush.bf16.msra.mxu0 %v1970
        %1990 = vmatpush.bf16.msra.mxu0 %v1969
        %1991 = vmatpush.bf16.msra.mxu0 %v1968
        %1992 = vmatmul.bf16.gmra.mxu0 %v1904
        %v1993 = vpop.f32.mrf.mxu0
        %v1994 = vadd.f32 %v1761, %v1993
        %v1995 = vpop.f32.mrf.mxu0
        %v1996 = vadd.f32 %v1763, %v1995
        %1997 = vmatmul.bf16.gmra.mxu0 %v1905
        %v1998 = vpop.f32.mrf.mxu0
        %v1999 = vadd.f32 %v1766, %v1998
        %v2000 = vpop.f32.mrf.mxu0
        %v2001 = vadd.f32 %v1768, %v2000
        %2002 = vmatmul.bf16.gmra.mxu0 %v1906
        %v2003 = vpop.f32.mrf.mxu0
        %v2004 = vadd.f32 %v1771, %v2003
        %v2005 = vpop.f32.mrf.mxu0
        %v2006 = vadd.f32 %v1773, %v2005
        %2007 = vmatmul.bf16.gmra.mxu0 %v1907
        %v2008 = vpop.f32.mrf.mxu0
        %v2009 = vadd.f32 %v1776, %v2008
        %v2010 = vpop.f32.mrf.mxu0
        %v2011 = vadd.f32 %v1778, %v2010
        %2012 = vmatmul.bf16.gmra.mxu0 %v1908
        %v2013 = vpop.f32.mrf.mxu0
        %v2014 = vadd.f32 %v1781, %v2013
        %v2015 = vpop.f32.mrf.mxu0
        %v2016 = vadd.f32 %v1783, %v2015
        %2017 = vmatmul.bf16.gmra.mxu0 %v1909
        %v2018 = vpop.f32.mrf.mxu0
        %v2019 = vadd.f32 %v1786, %v2018
        %v2020 = vpop.f32.mrf.mxu0
        %v2021 = vadd.f32 %v1788, %v2020
        %2022 = vmatmul.bf16.gmra.mxu0 %v1910
        %v2023 = vpop.f32.mrf.mxu0
        %v2024 = vadd.f32 %v1791, %v2023
        %v2025 = vpop.f32.mrf.mxu0
        %v2026 = vadd.f32 %v1793, %v2025
        %2027 = vmatmul.bf16.gmra.mxu0 %v1911
        %v2028 = vpop.f32.mrf.mxu0
        %v2029 = vadd.f32 %v1796, %v2028
        %v2030 = vpop.f32.mrf.mxu0
        %v2031 = vadd.f32 %v1798, %v2030
        %2032 = vmatmul.bf16.gmra.mxu0 %v1912
        %v2033 = vpop.f32.mrf.mxu0
        %v2034 = vadd.f32 %v1801, %v2033
        %v2035 = vpop.f32.mrf.mxu0
        %v2036 = vadd.f32 %v1803, %v2035
        %2037 = vmatmul.bf16.gmra.mxu0 %v1913
        %v2038 = vpop.f32.mrf.mxu0
        %v2039 = vadd.f32 %v1806, %v2038
        %v2040 = vpop.f32.mrf.mxu0
        %v2041 = vadd.f32 %v1808, %v2040
        %2042 = vmatmul.bf16.gmra.mxu0 %v1914
        %v2043 = vpop.f32.mrf.mxu0
        %v2044 = vadd.f32 %v1811, %v2043
        %v2045 = vpop.f32.mrf.mxu0
        %v2046 = vadd.f32 %v1813, %v2045
        %2047 = vmatmul.bf16.gmra.mxu0 %v1915
        %v2048 = vpop.f32.mrf.mxu0
        %v2049 = vadd.f32 %v1816, %v2048
        %v2050 = vpop.f32.mrf.mxu0
        %v2051 = vadd.f32 %v1818, %v2050
        %2052 = vmatmul.bf16.gmra.mxu0 %v1916
        %v2053 = vpop.f32.mrf.mxu0
        %v2054 = vadd.f32 %v1821, %v2053
        %v2055 = vpop.f32.mrf.mxu0
        %v2056 = vadd.f32 %v1823, %v2055
        %2057 = vmatmul.bf16.gmra.mxu0 %v1917
        %v2058 = vpop.f32.mrf.mxu0
        %v2059 = vadd.f32 %v1826, %v2058
        %v2060 = vpop.f32.mrf.mxu0
        %v2061 = vadd.f32 %v1828, %v2060
        %2062 = vmatmul.bf16.gmra.mxu0 %v1918
        %v2063 = vpop.f32.mrf.mxu0
        %v2064 = vadd.f32 %v1831, %v2063
        %v2065 = vpop.f32.mrf.mxu0
        %v2066 = vadd.f32 %v1833, %v2065
        %2067 = vmatmul.bf16.gmra.mxu0 %v1919
        %v2068 = vpop.f32.mrf.mxu0
        %v2069 = vadd.f32 %v1836, %v2068
        %v2070 = vpop.f32.mrf.mxu0
        %v2071 = vadd.f32 %v1838, %v2070
        %2072 = vdwg.mxu0
        %v2073 = vld [vmem:[#allocation2] sm:$0xe]
        %v2074 = vld [vmem:[#allocation2 + $0xc] sm:$0xe]
        %v2075 = vld [vmem:[#allocation2 + $0x18] sm:$0xe]
        %v2076 = vld [vmem:[#allocation2 + $0x24] sm:$0xe]
        %v2077 = vld [vmem:[#allocation2 + $0x30] sm:$0xe]
        %v2078 = vld [vmem:[#allocation2 + $0x3c] sm:$0xe]
        %v2079 = vld [vmem:[#allocation2 + $0x48] sm:$0xe]
        %v2080 = vld [vmem:[#allocation2 + $0x54] sm:$0xe]
        %v2081 = vld [vmem:[#allocation2 + $0x60] sm:$0xe]
        %v2082 = vld [vmem:[#allocation2 + $0x6c] sm:$0xe]
        %v2083 = vld [vmem:[#allocation2 + $0x78] sm:$0xe]
        %v2084 = vld [vmem:[#allocation2 + $0x84] sm:$0xe]
        %v2085 = vld [vmem:[#allocation2 + $0x90] sm:$0xe]
        %v2086 = vld [vmem:[#allocation2 + $0x9c] sm:$0xe]
        %v2087 = vld [vmem:[#allocation2 + $0xa8] sm:$0xe]
        %v2088 = vld [vmem:[#allocation2 + $0xb4] sm:$0xe]
        %vm2121 = vcmask 1042432
        %vm2122 = vcmask 1046532
        %vm2123 = vmor %vm2121, %vm2122
        %v2124 = vrot.slane %v2073, 5
        %v2125 = vrot.slane %v2124, 4
        %v2126 = vrot.slane %v1172, 5
        %v2127 = vsel %vm2123, %v2125, %v2126
        %v2128 = vrot.slane %v2126, 4
        %v2129 = vrot.slane %v1219, 5
        %v2130 = vsel %vm2123, %v2128, %v2129
        %v2131 = vrot.slane %v2074, 5
        %v2132 = vrot.slane %v2131, 4
        %v2133 = vrot.slane %v1174, 5
        %v2134 = vsel %vm2123, %v2132, %v2133
        %v2135 = vrot.slane %v2133, 4
        %v2136 = vrot.slane %v1220, 5
        %v2137 = vsel %vm2123, %v2135, %v2136
        %v2138 = vrot.slane %v2075, 5
        %v2139 = vrot.slane %v2138, 4
        %v2140 = vrot.slane %v1176, 5
        %v2141 = vsel %vm2123, %v2139, %v2140
        %v2142 = vrot.slane %v2140, 4
        %v2143 = vrot.slane %v1221, 5
        %v2144 = vsel %vm2123, %v2142, %v2143
        %v2145 = vrot.slane %v2076, 5
        %v2146 = vrot.slane %v2145, 4
        %v2147 = vrot.slane %v1178, 5
        %v2148 = vsel %vm2123, %v2146, %v2147
        %v2149 = vrot.slane %v2147, 4
        %v2150 = vrot.slane %v1222, 5
        %v2151 = vsel %vm2123, %v2149, %v2150
        %v2152 = vrot.slane %v2077, 5
        %v2153 = vrot.slane %v2152, 4
        %v2154 = vrot.slane %v1180, 5
        %v2155 = vsel %vm2123, %v2153, %v2154
        %v2156 = vrot.slane %v2154, 4
        %v2157 = vrot.slane %v1223, 5
        %v2158 = vsel %vm2123, %v2156, %v2157
        %v2159 = vrot.slane %v2078, 5
        %v2160 = vrot.slane %v2159, 4
        %v2161 = vrot.slane %v1182, 5
        %v2162 = vsel %vm2123, %v2160, %v2161
        %v2163 = vrot.slane %v2161, 4
        %v2164 = vrot.slane %v1224, 5
        %v2165 = vsel %vm2123, %v2163, %v2164
        %v2166 = vrot.slane %v2079, 5
        %v2167 = vrot.slane %v2166, 4
        %v2168 = vrot.slane %v1184, 5
        %v2169 = vsel %vm2123, %v2167, %v2168
        %v2170 = vrot.slane %v2168, 4
        %v2171 = vrot.slane %v1225, 5
        %v2172 = vsel %vm2123, %v2170, %v2171
        %v2173 = vrot.slane %v2080, 5
        %v2174 = vrot.slane %v2173, 4
        %v2175 = vrot.slane %v1186, 5
        %v2176 = vsel %vm2123, %v2174, %v2175
        %v2177 = vrot.slane %v2175, 4
        %v2178 = vrot.slane %v1226, 5
        %v2179 = vsel %vm2123, %v2177, %v2178
        %v2180 = vrot.slane %v2081, 5
        %v2181 = vrot.slane %v2180, 4
        %v2182 = vrot.slane %v1188, 5
        %v2183 = vsel %vm2123, %v2181, %v2182
        %v2184 = vrot.slane %v2182, 4
        %v2185 = vrot.slane %v1227, 5
        %v2186 = vsel %vm2123, %v2184, %v2185
        %v2187 = vrot.slane %v2082, 5
        %v2188 = vrot.slane %v2187, 4
        %v2189 = vrot.slane %v1190, 5
        %v2190 = vsel %vm2123, %v2188, %v2189
        %v2191 = vrot.slane %v2189, 4
        %v2192 = vrot.slane %v1228, 5
        %v2193 = vsel %vm2123, %v2191, %v2192
        %v2194 = vrot.slane %v2083, 5
        %v2195 = vrot.slane %v2194, 4
        %v2196 = vrot.slane %v1192, 5
        %v2197 = vsel %vm2123, %v2195, %v2196
        %v2198 = vrot.slane %v2196, 4
        %v2199 = vrot.slane %v1229, 5
        %v2200 = vsel %vm2123, %v2198, %v2199
        %v2201 = vrot.slane %v2084, 5
        %v2202 = vrot.slane %v2201, 4
        %v2203 = vrot.slane %v1194, 5
        %v2204 = vsel %vm2123, %v2202, %v2203
        %v2205 = vrot.slane %v2203, 4
        %v2206 = vrot.slane %v1230, 5
        %v2207 = vsel %vm2123, %v2205, %v2206
        %v2208 = vrot.slane %v2085, 5
        %v2209 = vrot.slane %v2208, 4
        %v2210 = vrot.slane %v1196, 5
        %v2211 = vsel %vm2123, %v2209, %v2210
        %v2212 = vrot.slane %v2210, 4
        %v2213 = vrot.slane %v1231, 5
        %v2214 = vsel %vm2123, %v2212, %v2213
        %v2215 = vrot.slane %v2086, 5
        %v2216 = vrot.slane %v2215, 4
        %v2217 = vrot.slane %v1198, 5
        %v2218 = vsel %vm2123, %v2216, %v2217
        %v2219 = vrot.slane %v2217, 4
        %v2220 = vrot.slane %v1232, 5
        %v2221 = vsel %vm2123, %v2219, %v2220
        %v2222 = vrot.slane %v2087, 5
        %v2223 = vrot.slane %v2222, 4
        %v2224 = vrot.slane %v1200, 5
        %v2225 = vsel %vm2123, %v2223, %v2224
        %v2226 = vrot.slane %v2224, 4
        %v2227 = vrot.slane %v1233, 5
        %v2228 = vsel %vm2123, %v2226, %v2227
        %v2229 = vrot.slane %v2088, 5
        %v2230 = vrot.slane %v2229, 4
        %v2231 = vrot.slane %v1202, 5
        %v2232 = vsel %vm2123, %v2230, %v2231
        %v2233 = vrot.slane %v2231, 4
        %v2234 = vrot.slane %v1234, 5
        %v2235 = vsel %vm2123, %v2233, %v2234
        %s2236 = scalar_lea.vmem %s5, 128
        %v2237 = vld [vmem:[%s2236] sm:$0xf]
        %v2238 = vld [vmem:[%s2236 + $0x4] sm:$0xf]
        %v2239 = vld [vmem:[%s2236 + $0x8] sm:$0xf]
        %v2240 = vld [vmem:[%s2236 + $0xc] sm:$0xf]
        %v2241 = vld [vmem:[%s2236 + $0x10] sm:$0xf]
        %v2242 = vld [vmem:[%s2236 + $0x14] sm:$0xf]
        %v2243 = vld [vmem:[%s2236 + $0x18] sm:$0xf]
        %v2244 = vld [vmem:[%s2236 + $0x1c] sm:$0xf]
        %v2245 = vld [vmem:[%s2236 + $0x20] sm:$0xf]
        %v2246 = vld [vmem:[%s2236 + $0x24] sm:$0xf]
        %v2247 = vld [vmem:[%s2236 + $0x28] sm:$0xf]
        %v2248 = vld [vmem:[%s2236 + $0x2c] sm:$0xf]
        %v2249 = vld [vmem:[%s2236 + $0x30] sm:$0xf]
        %v2250 = vld [vmem:[%s2236 + $0x34] sm:$0xf]
        %v2251 = vld [vmem:[%s2236 + $0x38] sm:$0xf]
        %v2252 = vld [vmem:[%s2236 + $0x3c] sm:$0xf]
        %v2253 = vunpack.c.l.b16 %v2127
        %v2254 = vunpack.c.l.b16 %v2130
        %v2255 = vunpack.c.l.b16 %v2134
        %v2256 = vunpack.c.l.b16 %v2137
        %v2257 = vunpack.c.l.b16 %v2141
        %v2258 = vunpack.c.l.b16 %v2144
        %v2259 = vunpack.c.l.b16 %v2148
        %v2260 = vunpack.c.l.b16 %v2151
        %v2261 = vunpack.c.l.b16 %v2155
        %v2262 = vunpack.c.l.b16 %v2158
        %v2263 = vunpack.c.l.b16 %v2162
        %v2264 = vunpack.c.l.b16 %v2165
        %v2265 = vunpack.c.l.b16 %v2169
        %v2266 = vunpack.c.l.b16 %v2172
        %v2267 = vunpack.c.l.b16 %v2176
        %v2268 = vunpack.c.l.b16 %v2179
        %v2269 = vunpack.c.l.b16 %v2183
        %v2270 = vunpack.c.l.b16 %v2186
        %v2271 = vunpack.c.l.b16 %v2190
        %v2272 = vunpack.c.l.b16 %v2193
        %v2273 = vunpack.c.l.b16 %v2197
        %v2274 = vunpack.c.l.b16 %v2200
        %v2275 = vunpack.c.l.b16 %v2204
        %v2276 = vunpack.c.l.b16 %v2207
        %v2277 = vunpack.c.l.b16 %v2211
        %v2278 = vunpack.c.l.b16 %v2214
        %v2279 = vunpack.c.l.b16 %v2218
        %v2280 = vunpack.c.l.b16 %v2221
        %v2281 = vunpack.c.l.b16 %v2225
        %v2282 = vunpack.c.l.b16 %v2228
        %v2283 = vunpack.c.l.b16 %v2232
        %v2284 = vunpack.c.l.b16 %v2235
        %v2285 = vpack.c.b16 %v2254, %v2253
        %v2286 = vpack.c.b16 %v2256, %v2255
        %v2287 = vpack.c.b16 %v2258, %v2257
        %v2288 = vpack.c.b16 %v2260, %v2259
        %v2289 = vpack.c.b16 %v2262, %v2261
        %v2290 = vpack.c.b16 %v2264, %v2263
        %v2291 = vpack.c.b16 %v2266, %v2265
        %v2292 = vpack.c.b16 %v2268, %v2267
        %v2293 = vpack.c.b16 %v2270, %v2269
        %v2294 = vpack.c.b16 %v2272, %v2271
        %v2295 = vpack.c.b16 %v2274, %v2273
        %v2296 = vpack.c.b16 %v2276, %v2275
        %v2297 = vpack.c.b16 %v2278, %v2277
        %v2298 = vpack.c.b16 %v2280, %v2279
        %v2299 = vpack.c.b16 %v2282, %v2281
        %v2300 = vpack.c.b16 %v2284, %v2283
        %v2333 = vunpack.c.l.b16 %v2237
        %v2334 = vunpack.c.l.b16 %v2238
        %v2335 = vunpack.c.l.b16 %v2239
        %v2336 = vunpack.c.l.b16 %v2240
        %v2337 = vunpack.c.l.b16 %v2241
        %v2338 = vunpack.c.l.b16 %v2242
        %v2339 = vunpack.c.l.b16 %v2243
        %v2340 = vunpack.c.l.b16 %v2244
        %v2341 = vunpack.c.l.b16 %v2245
        %v2342 = vunpack.c.l.b16 %v2246
        %v2343 = vunpack.c.l.b16 %v2247
        %v2344 = vunpack.c.l.b16 %v2248
        %v2345 = vunpack.c.l.b16 %v2249
        %v2346 = vunpack.c.l.b16 %v2250
        %v2347 = vunpack.c.l.b16 %v2251
        %v2348 = vunpack.c.l.b16 %v2252
        %v2349 = vpack.c.b16 %v2334, %v2333
        %v2350 = vpack.c.b16 %v2336, %v2335
        %v2351 = vpack.c.b16 %v2338, %v2337
        %v2352 = vpack.c.b16 %v2340, %v2339
        %v2353 = vpack.c.b16 %v2342, %v2341
        %v2354 = vpack.c.b16 %v2344, %v2343
        %v2355 = vpack.c.b16 %v2346, %v2345
        %v2356 = vpack.c.b16 %v2348, %v2347
        %2365 = vmatpush.bf16.msra.mxu0 %v2356
        %2366 = vmatpush.bf16.msra.mxu0 %v2355
        %2367 = vmatpush.bf16.msra.mxu0 %v2354
        %2368 = vmatpush.bf16.msra.mxu0 %v2353
        %2369 = vmatpush.bf16.msra.mxu0 %v2352
        %2370 = vmatpush.bf16.msra.mxu0 %v2351
        %2371 = vmatpush.bf16.msra.mxu0 %v2350
        %2372 = vmatpush.bf16.msra.mxu0 %v2349
        %2373 = vmatmul.bf16.gmra.mxu0 %v2285
        %v2374 = vpop.f32.mrf.mxu0
        %v2375 = vadd.f32 0.0, %v2374
        %v2376 = vpop.f32.mrf.mxu0
        %v2377 = vadd.f32 0.0, %v2376
        %2378 = vmatmul.bf16.gmra.mxu0 %v2286
        %v2379 = vpop.f32.mrf.mxu0
        %v2380 = vadd.f32 0.0, %v2379
        %v2381 = vpop.f32.mrf.mxu0
        %v2382 = vadd.f32 0.0, %v2381
        %2383 = vmatmul.bf16.gmra.mxu0 %v2287
        %v2384 = vpop.f32.mrf.mxu0
        %v2385 = vadd.f32 0.0, %v2384
        %v2386 = vpop.f32.mrf.mxu0
        %v2387 = vadd.f32 0.0, %v2386
        %2388 = vmatmul.bf16.gmra.mxu0 %v2288
        %v2389 = vpop.f32.mrf.mxu0
        %v2390 = vadd.f32 0.0, %v2389
        %v2391 = vpop.f32.mrf.mxu0
        %v2392 = vadd.f32 0.0, %v2391
        %2393 = vmatmul.bf16.gmra.mxu0 %v2289
        %v2394 = vpop.f32.mrf.mxu0
        %v2395 = vadd.f32 0.0, %v2394
        %v2396 = vpop.f32.mrf.mxu0
        %v2397 = vadd.f32 0.0, %v2396
        %2398 = vmatmul.bf16.gmra.mxu0 %v2290
        %v2399 = vpop.f32.mrf.mxu0
        %v2400 = vadd.f32 0.0, %v2399
        %v2401 = vpop.f32.mrf.mxu0
        %v2402 = vadd.f32 0.0, %v2401
        %2403 = vmatmul.bf16.gmra.mxu0 %v2291
        %v2404 = vpop.f32.mrf.mxu0
        %v2405 = vadd.f32 0.0, %v2404
        %v2406 = vpop.f32.mrf.mxu0
        %v2407 = vadd.f32 0.0, %v2406
        %2408 = vmatmul.bf16.gmra.mxu0 %v2292
        %v2409 = vpop.f32.mrf.mxu0
        %v2410 = vadd.f32 0.0, %v2409
        %v2411 = vpop.f32.mrf.mxu0
        %v2412 = vadd.f32 0.0, %v2411
        %2413 = vmatmul.bf16.gmra.mxu0 %v2293
        %v2414 = vpop.f32.mrf.mxu0
        %v2415 = vadd.f32 0.0, %v2414
        %v2416 = vpop.f32.mrf.mxu0
        %v2417 = vadd.f32 0.0, %v2416
        %2418 = vmatmul.bf16.gmra.mxu0 %v2294
        %v2419 = vpop.f32.mrf.mxu0
        %v2420 = vadd.f32 0.0, %v2419
        %v2421 = vpop.f32.mrf.mxu0
        %v2422 = vadd.f32 0.0, %v2421
        %2423 = vmatmul.bf16.gmra.mxu0 %v2295
        %v2424 = vpop.f32.mrf.mxu0
        %v2425 = vadd.f32 0.0, %v2424
        %v2426 = vpop.f32.mrf.mxu0
        %v2427 = vadd.f32 0.0, %v2426
        %2428 = vmatmul.bf16.gmra.mxu0 %v2296
        %v2429 = vpop.f32.mrf.mxu0
        %v2430 = vadd.f32 0.0, %v2429
        %v2431 = vpop.f32.mrf.mxu0
        %v2432 = vadd.f32 0.0, %v2431
        %2433 = vmatmul.bf16.gmra.mxu0 %v2297
        %v2434 = vpop.f32.mrf.mxu0
        %v2435 = vadd.f32 0.0, %v2434
        %v2436 = vpop.f32.mrf.mxu0
        %v2437 = vadd.f32 0.0, %v2436
        %2438 = vmatmul.bf16.gmra.mxu0 %v2298
        %v2439 = vpop.f32.mrf.mxu0
        %v2440 = vadd.f32 0.0, %v2439
        %v2441 = vpop.f32.mrf.mxu0
        %v2442 = vadd.f32 0.0, %v2441
        %2443 = vmatmul.bf16.gmra.mxu0 %v2299
        %v2444 = vpop.f32.mrf.mxu0
        %v2445 = vadd.f32 0.0, %v2444
        %v2446 = vpop.f32.mrf.mxu0
        %v2447 = vadd.f32 0.0, %v2446
        %2448 = vmatmul.bf16.gmra.mxu0 %v2300
        %v2449 = vpop.f32.mrf.mxu0
        %v2450 = vadd.f32 0.0, %v2449
        %v2451 = vpop.f32.mrf.mxu0
        %v2452 = vadd.f32 0.0, %v2451
        %2453 = vdwg.mxu0
        %v2454 = vadd.f32 %v1994, %v2375
        %v2455 = vadd.f32 %v1996, %v2377
        %v2456 = vadd.f32 %v1999, %v2380
        %v2457 = vadd.f32 %v2001, %v2382
        %v2458 = vadd.f32 %v2004, %v2385
        %v2459 = vadd.f32 %v2006, %v2387
        %v2460 = vadd.f32 %v2009, %v2390
        %v2461 = vadd.f32 %v2011, %v2392
        %v2462 = vadd.f32 %v2014, %v2395
        %v2463 = vadd.f32 %v2016, %v2397
        %v2464 = vadd.f32 %v2019, %v2400
        %v2465 = vadd.f32 %v2021, %v2402
        %v2466 = vadd.f32 %v2024, %v2405
        %v2467 = vadd.f32 %v2026, %v2407
        %v2468 = vadd.f32 %v2029, %v2410
        %v2469 = vadd.f32 %v2031, %v2412
        %v2470 = vadd.f32 %v2034, %v2415
        %v2471 = vadd.f32 %v2036, %v2417
        %v2472 = vadd.f32 %v2039, %v2420
        %v2473 = vadd.f32 %v2041, %v2422
        %v2474 = vadd.f32 %v2044, %v2425
        %v2475 = vadd.f32 %v2046, %v2427
        %v2476 = vadd.f32 %v2049, %v2430
        %v2477 = vadd.f32 %v2051, %v2432
        %v2478 = vadd.f32 %v2054, %v2435
        %v2479 = vadd.f32 %v2056, %v2437
        %v2480 = vadd.f32 %v2059, %v2440
        %v2481 = vadd.f32 %v2061, %v2442
        %v2482 = vadd.f32 %v2064, %v2445
        %v2483 = vadd.f32 %v2066, %v2447
        %v2484 = vadd.f32 %v2069, %v2450
        %v2485 = vadd.f32 %v2071, %v2452
        %v2486 = vld [vmem:[%s1056] sm:$0xf]
        %v2487 = vld [vmem:[%s1056 + $0x4] sm:$0xf]
        %v2488 = vld [vmem:[%s1056 + $0xc] sm:$0xf]
        %v2489 = vld [vmem:[%s1056 + $0x10] sm:$0xf]
        %v2490 = vld [vmem:[%s1056 + $0x18] sm:$0xf]
        %v2491 = vld [vmem:[%s1056 + $0x1c] sm:$0xf]
        %v2492 = vld [vmem:[%s1056 + $0x24] sm:$0xf]
        %v2493 = vld [vmem:[%s1056 + $0x28] sm:$0xf]
        %v2494 = vld [vmem:[%s1056 + $0x30] sm:$0xf]
        %v2495 = vld [vmem:[%s1056 + $0x34] sm:$0xf]
        %v2496 = vld [vmem:[%s1056 + $0x3c] sm:$0xf]
        %v2497 = vld [vmem:[%s1056 + $0x40] sm:$0xf]
        %v2498 = vld [vmem:[%s1056 + $0x48] sm:$0xf]
        %v2499 = vld [vmem:[%s1056 + $0x4c] sm:$0xf]
        %v2500 = vld [vmem:[%s1056 + $0x54] sm:$0xf]
        %v2501 = vld [vmem:[%s1056 + $0x58] sm:$0xf]
        %v2502 = vld [vmem:[%s1056 + $0x60] sm:$0xf]
        %v2503 = vld [vmem:[%s1056 + $0x64] sm:$0xf]
        %v2504 = vld [vmem:[%s1056 + $0x6c] sm:$0xf]
        %v2505 = vld [vmem:[%s1056 + $0x70] sm:$0xf]
        %v2506 = vld [vmem:[%s1056 + $0x78] sm:$0xf]
        %v2507 = vld [vmem:[%s1056 + $0x7c] sm:$0xf]
        %v2508 = vld [vmem:[%s1056 + $0x84] sm:$0xf]
        %v2509 = vld [vmem:[%s1056 + $0x88] sm:$0xf]
        %v2510 = vld [vmem:[%s1056 + $0x90] sm:$0xf]
        %v2511 = vld [vmem:[%s1056 + $0x94] sm:$0xf]
        %v2512 = vld [vmem:[%s1056 + $0x9c] sm:$0xf]
        %v2513 = vld [vmem:[%s1056 + $0xa0] sm:$0xf]
        %v2514 = vld [vmem:[%s1056 + $0xa8] sm:$0xf]
        %v2515 = vld [vmem:[%s1056 + $0xac] sm:$0xf]
        %v2516 = vld [vmem:[%s1056 + $0xb4] sm:$0xf]
        %v2517 = vld [vmem:[%s1056 + $0xb8] sm:$0xf]
        %s2518 = scalar_lea.vmem %s5, 192
        %v2519 = vld [vmem:[%s2518] sm:$0xf]
        %v2520 = vld [vmem:[%s2518 + $0x4] sm:$0xf]
        %v2521 = vld [vmem:[%s2518 + $0x8] sm:$0xf]
        %v2522 = vld [vmem:[%s2518 + $0xc] sm:$0xf]
        %v2523 = vld [vmem:[%s2518 + $0x10] sm:$0xf]
        %v2524 = vld [vmem:[%s2518 + $0x14] sm:$0xf]
        %v2525 = vld [vmem:[%s2518 + $0x18] sm:$0xf]
        %v2526 = vld [vmem:[%s2518 + $0x1c] sm:$0xf]
        %v2527 = vld [vmem:[%s2518 + $0x20] sm:$0xf]
        %v2528 = vld [vmem:[%s2518 + $0x24] sm:$0xf]
        %v2529 = vld [vmem:[%s2518 + $0x28] sm:$0xf]
        %v2530 = vld [vmem:[%s2518 + $0x2c] sm:$0xf]
        %v2531 = vld [vmem:[%s2518 + $0x30] sm:$0xf]
        %v2532 = vld [vmem:[%s2518 + $0x34] sm:$0xf]
        %v2533 = vld [vmem:[%s2518 + $0x38] sm:$0xf]
        %v2534 = vld [vmem:[%s2518 + $0x3c] sm:$0xf]
        %v2567 = vunpack.c.l.b16 %v2486
        %v2568 = vunpack.c.l.b16 %v2487
        %v2569 = vunpack.c.l.b16 %v2488
        %v2570 = vunpack.c.l.b16 %v2489
        %v2571 = vunpack.c.l.b16 %v2490
        %v2572 = vunpack.c.l.b16 %v2491
        %v2573 = vunpack.c.l.b16 %v2492
        %v2574 = vunpack.c.l.b16 %v2493
        %v2575 = vunpack.c.l.b16 %v2494
        %v2576 = vunpack.c.l.b16 %v2495
        %v2577 = vunpack.c.l.b16 %v2496
        %v2578 = vunpack.c.l.b16 %v2497
        %v2579 = vunpack.c.l.b16 %v2498
        %v2580 = vunpack.c.l.b16 %v2499
        %v2581 = vunpack.c.l.b16 %v2500
        %v2582 = vunpack.c.l.b16 %v2501
        %v2583 = vunpack.c.l.b16 %v2502
        %v2584 = vunpack.c.l.b16 %v2503
        %v2585 = vunpack.c.l.b16 %v2504
        %v2586 = vunpack.c.l.b16 %v2505
        %v2587 = vunpack.c.l.b16 %v2506
        %v2588 = vunpack.c.l.b16 %v2507
        %v2589 = vunpack.c.l.b16 %v2508
        %v2590 = vunpack.c.l.b16 %v2509
        %v2591 = vunpack.c.l.b16 %v2510
        %v2592 = vunpack.c.l.b16 %v2511
        %v2593 = vunpack.c.l.b16 %v2512
        %v2594 = vunpack.c.l.b16 %v2513
        %v2595 = vunpack.c.l.b16 %v2514
        %v2596 = vunpack.c.l.b16 %v2515
        %v2597 = vunpack.c.l.b16 %v2516
        %v2598 = vunpack.c.l.b16 %v2517
        %v2599 = vpack.c.b16 %v2568, %v2567
        %v2600 = vpack.c.b16 %v2570, %v2569
        %v2601 = vpack.c.b16 %v2572, %v2571
        %v2602 = vpack.c.b16 %v2574, %v2573
        %v2603 = vpack.c.b16 %v2576, %v2575
        %v2604 = vpack.c.b16 %v2578, %v2577
        %v2605 = vpack.c.b16 %v2580, %v2579
        %v2606 = vpack.c.b16 %v2582, %v2581
        %v2607 = vpack.c.b16 %v2584, %v2583
        %v2608 = vpack.c.b16 %v2586, %v2585
        %v2609 = vpack.c.b16 %v2588, %v2587
        %v2610 = vpack.c.b16 %v2590, %v2589
        %v2611 = vpack.c.b16 %v2592, %v2591
        %v2612 = vpack.c.b16 %v2594, %v2593
        %v2613 = vpack.c.b16 %v2596, %v2595
        %v2614 = vpack.c.b16 %v2598, %v2597
        %v2647 = vunpack.c.l.b16 %v2519
        %v2648 = vunpack.c.l.b16 %v2520
        %v2649 = vunpack.c.l.b16 %v2521
        %v2650 = vunpack.c.l.b16 %v2522
        %v2651 = vunpack.c.l.b16 %v2523
        %v2652 = vunpack.c.l.b16 %v2524
        %v2653 = vunpack.c.l.b16 %v2525
        %v2654 = vunpack.c.l.b16 %v2526
        %v2655 = vunpack.c.l.b16 %v2527
        %v2656 = vunpack.c.l.b16 %v2528
        %v2657 = vunpack.c.l.b16 %v2529
        %v2658 = vunpack.c.l.b16 %v2530
        %v2659 = vunpack.c.l.b16 %v2531
        %v2660 = vunpack.c.l.b16 %v2532
        %v2661 = vunpack.c.l.b16 %v2533
        %v2662 = vunpack.c.l.b16 %v2534
        %v2663 = vpack.c.b16 %v2648, %v2647
        %v2664 = vpack.c.b16 %v2650, %v2649
        %v2665 = vpack.c.b16 %v2652, %v2651
        %v2666 = vpack.c.b16 %v2654, %v2653
        %v2667 = vpack.c.b16 %v2656, %v2655
        %v2668 = vpack.c.b16 %v2658, %v2657
        %v2669 = vpack.c.b16 %v2660, %v2659
        %v2670 = vpack.c.b16 %v2662, %v2661
        %2679 = vmatpush.bf16.msra.mxu0 %v2670
        %2680 = vmatpush.bf16.msra.mxu0 %v2669
        %2681 = vmatpush.bf16.msra.mxu0 %v2668
        %2682 = vmatpush.bf16.msra.mxu0 %v2667
        %2683 = vmatpush.bf16.msra.mxu0 %v2666
        %2684 = vmatpush.bf16.msra.mxu0 %v2665
        %2685 = vmatpush.bf16.msra.mxu0 %v2664
        %2686 = vmatpush.bf16.msra.mxu0 %v2663
        %2687 = vmatmul.bf16.gmra.mxu0 %v2599
        %v2688 = vpop.f32.mrf.mxu0
        %v2689 = vadd.f32 0.0, %v2688
        %v2690 = vpop.f32.mrf.mxu0
        %v2691 = vadd.f32 0.0, %v2690
        %2692 = vmatmul.bf16.gmra.mxu0 %v2600
        %v2693 = vpop.f32.mrf.mxu0
        %v2694 = vadd.f32 0.0, %v2693
        %v2695 = vpop.f32.mrf.mxu0
        %v2696 = vadd.f32 0.0, %v2695
        %2697 = vmatmul.bf16.gmra.mxu0 %v2601
        %v2698 = vpop.f32.mrf.mxu0
        %v2699 = vadd.f32 0.0, %v2698
        %v2700 = vpop.f32.mrf.mxu0
        %v2701 = vadd.f32 0.0, %v2700
        %2702 = vmatmul.bf16.gmra.mxu0 %v2602
        %v2703 = vpop.f32.mrf.mxu0
        %v2704 = vadd.f32 0.0, %v2703
        %v2705 = vpop.f32.mrf.mxu0
        %v2706 = vadd.f32 0.0, %v2705
        %2707 = vmatmul.bf16.gmra.mxu0 %v2603
        %v2708 = vpop.f32.mrf.mxu0
        %v2709 = vadd.f32 0.0, %v2708
        %v2710 = vpop.f32.mrf.mxu0
        %v2711 = vadd.f32 0.0, %v2710
        %2712 = vmatmul.bf16.gmra.mxu0 %v2604
        %v2713 = vpop.f32.mrf.mxu0
        %v2714 = vadd.f32 0.0, %v2713
        %v2715 = vpop.f32.mrf.mxu0
        %v2716 = vadd.f32 0.0, %v2715
        %2717 = vmatmul.bf16.gmra.mxu0 %v2605
        %v2718 = vpop.f32.mrf.mxu0
        %v2719 = vadd.f32 0.0, %v2718
        %v2720 = vpop.f32.mrf.mxu0
        %v2721 = vadd.f32 0.0, %v2720
        %2722 = vmatmul.bf16.gmra.mxu0 %v2606
        %v2723 = vpop.f32.mrf.mxu0
        %v2724 = vadd.f32 0.0, %v2723
        %v2725 = vpop.f32.mrf.mxu0
        %v2726 = vadd.f32 0.0, %v2725
        %2727 = vmatmul.bf16.gmra.mxu0 %v2607
        %v2728 = vpop.f32.mrf.mxu0
        %v2729 = vadd.f32 0.0, %v2728
        %v2730 = vpop.f32.mrf.mxu0
        %v2731 = vadd.f32 0.0, %v2730
        %2732 = vmatmul.bf16.gmra.mxu0 %v2608
        %v2733 = vpop.f32.mrf.mxu0
        %v2734 = vadd.f32 0.0, %v2733
        %v2735 = vpop.f32.mrf.mxu0
        %v2736 = vadd.f32 0.0, %v2735
        %2737 = vmatmul.bf16.gmra.mxu0 %v2609
        %v2738 = vpop.f32.mrf.mxu0
        %v2739 = vadd.f32 0.0, %v2738
        %v2740 = vpop.f32.mrf.mxu0
        %v2741 = vadd.f32 0.0, %v2740
        %2742 = vmatmul.bf16.gmra.mxu0 %v2610
        %v2743 = vpop.f32.mrf.mxu0
        %v2744 = vadd.f32 0.0, %v2743
        %v2745 = vpop.f32.mrf.mxu0
        %v2746 = vadd.f32 0.0, %v2745
        %2747 = vmatmul.bf16.gmra.mxu0 %v2611
        %v2748 = vpop.f32.mrf.mxu0
        %v2749 = vadd.f32 0.0, %v2748
        %v2750 = vpop.f32.mrf.mxu0
        %v2751 = vadd.f32 0.0, %v2750
        %2752 = vmatmul.bf16.gmra.mxu0 %v2612
        %v2753 = vpop.f32.mrf.mxu0
        %v2754 = vadd.f32 0.0, %v2753
        %v2755 = vpop.f32.mrf.mxu0
        %v2756 = vadd.f32 0.0, %v2755
        %2757 = vmatmul.bf16.gmra.mxu0 %v2613
        %v2758 = vpop.f32.mrf.mxu0
        %v2759 = vadd.f32 0.0, %v2758
        %v2760 = vpop.f32.mrf.mxu0
        %v2761 = vadd.f32 0.0, %v2760
        %2762 = vmatmul.bf16.gmra.mxu0 %v2614
        %v2763 = vpop.f32.mrf.mxu0
        %v2764 = vadd.f32 0.0, %v2763
        %v2765 = vpop.f32.mrf.mxu0
        %v2766 = vadd.f32 0.0, %v2765
        %2767 = vdwg.mxu0
        %v2768 = vadd.f32 %v2454, %v2689
        %v2769 = vadd.f32 %v2455, %v2691
        %v2770 = vadd.f32 %v2456, %v2694
        %v2771 = vadd.f32 %v2457, %v2696
        %v2772 = vadd.f32 %v2458, %v2699
        %v2773 = vadd.f32 %v2459, %v2701
        %v2774 = vadd.f32 %v2460, %v2704
        %v2775 = vadd.f32 %v2461, %v2706
        %v2776 = vadd.f32 %v2462, %v2709
        %v2777 = vadd.f32 %v2463, %v2711
        %v2778 = vadd.f32 %v2464, %v2714
        %v2779 = vadd.f32 %v2465, %v2716
        %v2780 = vadd.f32 %v2466, %v2719
        %v2781 = vadd.f32 %v2467, %v2721
        %v2782 = vadd.f32 %v2468, %v2724
        %v2783 = vadd.f32 %v2469, %v2726
        %v2784 = vadd.f32 %v2470, %v2729
        %v2785 = vadd.f32 %v2471, %v2731
        %v2786 = vadd.f32 %v2472, %v2734
        %v2787 = vadd.f32 %v2473, %v2736
        %v2788 = vadd.f32 %v2474, %v2739
        %v2789 = vadd.f32 %v2475, %v2741
        %v2790 = vadd.f32 %v2476, %v2744
        %v2791 = vadd.f32 %v2477, %v2746
        %v2792 = vadd.f32 %v2478, %v2749
        %v2793 = vadd.f32 %v2479, %v2751
        %v2794 = vadd.f32 %v2480, %v2754
        %v2795 = vadd.f32 %v2481, %v2756
        %v2796 = vadd.f32 %v2482, %v2759
        %v2797 = vadd.f32 %v2483, %v2761
        %v2798 = vadd.f32 %v2484, %v2764
        %v2799 = vadd.f32 %v2485, %v2766
        %v2800 = vld [vmem:[%s1056] sm:$0xf]
        %v2801 = vld [vmem:[%s1056 + $0x4] sm:$0xf]
        %v2802 = vld [vmem:[%s1056 + $0x8] sm:$0x1]
        %v2803 = vld [vmem:[%s1056 + $0xc] sm:$0xf]
        %v2804 = vld [vmem:[%s1056 + $0x10] sm:$0xf]
        %v2805 = vld [vmem:[%s1056 + $0x14] sm:$0x1]
        %v2806 = vld [vmem:[%s1056 + $0x18] sm:$0xf]
        %v2807 = vld [vmem:[%s1056 + $0x1c] sm:$0xf]
        %v2808 = vld [vmem:[%s1056 + $0x20] sm:$0x1]
        %v2809 = vld [vmem:[%s1056 + $0x24] sm:$0xf]
        %v2810 = vld [vmem:[%s1056 + $0x28] sm:$0xf]
        %v2811 = vld [vmem:[%s1056 + $0x2c] sm:$0x1]
        %v2812 = vld [vmem:[%s1056 + $0x30] sm:$0xf]
        %v2813 = vld [vmem:[%s1056 + $0x34] sm:$0xf]
        %v2814 = vld [vmem:[%s1056 + $0x38] sm:$0x1]
        %v2815 = vld [vmem:[%s1056 + $0x3c] sm:$0xf]
        %v2816 = vld [vmem:[%s1056 + $0x40] sm:$0xf]
        %v2817 = vld [vmem:[%s1056 + $0x44] sm:$0x1]
        %v2818 = vld [vmem:[%s1056 + $0x48] sm:$0xf]
        %v2819 = vld [vmem:[%s1056 + $0x4c] sm:$0xf]
        %v2820 = vld [vmem:[%s1056 + $0x50] sm:$0x1]
        %v2821 = vld [vmem:[%s1056 + $0x54] sm:$0xf]
        %v2822 = vld [vmem:[%s1056 + $0x58] sm:$0xf]
        %v2823 = vld [vmem:[%s1056 + $0x5c] sm:$0x1]
        %v2824 = vld [vmem:[%s1056 + $0x60] sm:$0xf]
        %v2825 = vld [vmem:[%s1056 + $0x64] sm:$0xf]
        %v2826 = vld [vmem:[%s1056 + $0x68] sm:$0x1]
        %v2827 = vld [vmem:[%s1056 + $0x6c] sm:$0xf]
        %v2828 = vld [vmem:[%s1056 + $0x70] sm:$0xf]
        %v2829 = vld [vmem:[%s1056 + $0x74] sm:$0x1]
        %v2830 = vld [vmem:[%s1056 + $0x78] sm:$0xf]
        %v2831 = vld [vmem:[%s1056 + $0x7c] sm:$0xf]
        %v2832 = vld [vmem:[%s1056 + $0x80] sm:$0x1]
        %v2833 = vld [vmem:[%s1056 + $0x84] sm:$0xf]
        %v2834 = vld [vmem:[%s1056 + $0x88] sm:$0xf]
        %v2835 = vld [vmem:[%s1056 + $0x8c] sm:$0x1]
        %v2836 = vld [vmem:[%s1056 + $0x90] sm:$0xf]
        %v2837 = vld [vmem:[%s1056 + $0x94] sm:$0xf]
        %v2838 = vld [vmem:[%s1056 + $0x98] sm:$0x1]
        %v2839 = vld [vmem:[%s1056 + $0x9c] sm:$0xf]
        %v2840 = vld [vmem:[%s1056 + $0xa0] sm:$0xf]
        %v2841 = vld [vmem:[%s1056 + $0xa4] sm:$0x1]
        %v2842 = vld [vmem:[%s1056 + $0xa8] sm:$0xf]
        %v2843 = vld [vmem:[%s1056 + $0xac] sm:$0xf]
        %v2844 = vld [vmem:[%s1056 + $0xb0] sm:$0x1]
        %v2845 = vld [vmem:[%s1056 + $0xb4] sm:$0xf]
        %v2846 = vld [vmem:[%s1056 + $0xb8] sm:$0xf]
        %v2847 = vld [vmem:[%s1056 + $0xbc] sm:$0x1]
        %v2849 = vshrl.u32 %v2800, 16
        %v2851 = vrot.slane %v2849, 4
        %v2852 = vshll.u32 %v2800, 16
        %v2854 = vrot.slane %v2852, 5
        %v2855 = vor.u32 %v2851, %v2854
        %v2856 = vrot.slane %v2855, 4
        %v2858 = vshll.u32 %v2801, 16
        %v2860 = vrot.slane %v2858, 5
        %v2861 = vsel %vm1237, %v2856, %v2860
        %v2862 = vshrl.u32 %v2801, 16
        %v2864 = vrot.slane %v2862, 4
        %v2865 = vor.u32 %v2864, %v2860
        %v2866 = vrot.slane %v2865, 4
        %v2868 = vshll.u32 %v2802, 16
        %v2870 = vrot.slane %v2868, 5
        %v2871 = vsel %vm1237, %v2866, %v2870
        %v2873 = vshrl.u32 %v2803, 16
        %v2875 = vrot.slane %v2873, 4
        %v2876 = vshll.u32 %v2803, 16
        %v2878 = vrot.slane %v2876, 5
        %v2879 = vor.u32 %v2875, %v2878
        %v2880 = vrot.slane %v2879, 4
        %v2882 = vshll.u32 %v2804, 16
        %v2884 = vrot.slane %v2882, 5
        %v2885 = vsel %vm1237, %v2880, %v2884
        %v2886 = vshrl.u32 %v2804, 16
        %v2888 = vrot.slane %v2886, 4
        %v2889 = vor.u32 %v2888, %v2884
        %v2890 = vrot.slane %v2889, 4
        %v2892 = vshll.u32 %v2805, 16
        %v2894 = vrot.slane %v2892, 5
        %v2895 = vsel %vm1237, %v2890, %v2894
        %v2897 = vshrl.u32 %v2806, 16
        %v2899 = vrot.slane %v2897, 4
        %v2900 = vshll.u32 %v2806, 16
        %v2902 = vrot.slane %v2900, 5
        %v2903 = vor.u32 %v2899, %v2902
        %v2904 = vrot.slane %v2903, 4
        %v2906 = vshll.u32 %v2807, 16
        %v2908 = vrot.slane %v2906, 5
        %v2909 = vsel %vm1237, %v2904, %v2908
        %v2910 = vshrl.u32 %v2807, 16
        %v2912 = vrot.slane %v2910, 4
        %v2913 = vor.u32 %v2912, %v2908
        %v2914 = vrot.slane %v2913, 4
        %v2916 = vshll.u32 %v2808, 16
        %v2918 = vrot.slane %v2916, 5
        %v2919 = vsel %vm1237, %v2914, %v2918
        %v2921 = vshrl.u32 %v2809, 16
        %v2923 = vrot.slane %v2921, 4
        %v2924 = vshll.u32 %v2809, 16
        %v2926 = vrot.slane %v2924, 5
        %v2927 = vor.u32 %v2923, %v2926
        %v2928 = vrot.slane %v2927, 4
        %v2930 = vshll.u32 %v2810, 16
        %v2932 = vrot.slane %v2930, 5
        %v2933 = vsel %vm1237, %v2928, %v2932
        %v2934 = vshrl.u32 %v2810, 16
        %v2936 = vrot.slane %v2934, 4
        %v2937 = vor.u32 %v2936, %v2932
        %v2938 = vrot.slane %v2937, 4
        %v2940 = vshll.u32 %v2811, 16
        %v2942 = vrot.slane %v2940, 5
        %v2943 = vsel %vm1237, %v2938, %v2942
        %v2945 = vshrl.u32 %v2812, 16
        %v2947 = vrot.slane %v2945, 4
        %v2948 = vshll.u32 %v2812, 16
        %v2950 = vrot.slane %v2948, 5
        %v2951 = vor.u32 %v2947, %v2950
        %v2952 = vrot.slane %v2951, 4
        %v2954 = vshll.u32 %v2813, 16
        %v2956 = vrot.slane %v2954, 5
        %v2957 = vsel %vm1237, %v2952, %v2956
        %v2958 = vshrl.u32 %v2813, 16
        %v2960 = vrot.slane %v2958, 4
        %v2961 = vor.u32 %v2960, %v2956
        %v2962 = vrot.slane %v2961, 4
        %v2964 = vshll.u32 %v2814, 16
        %v2966 = vrot.slane %v2964, 5
        %v2967 = vsel %vm1237, %v2962, %v2966
        %v2969 = vshrl.u32 %v2815, 16
        %v2971 = vrot.slane %v2969, 4
        %v2972 = vshll.u32 %v2815, 16
        %v2974 = vrot.slane %v2972, 5
        %v2975 = vor.u32 %v2971, %v2974
        %v2976 = vrot.slane %v2975, 4
        %v2978 = vshll.u32 %v2816, 16
        %v2980 = vrot.slane %v2978, 5
        %v2981 = vsel %vm1237, %v2976, %v2980
        %v2982 = vshrl.u32 %v2816, 16
        %v2984 = vrot.slane %v2982, 4
        %v2985 = vor.u32 %v2984, %v2980
        %v2986 = vrot.slane %v2985, 4
        %v2988 = vshll.u32 %v2817, 16
        %v2990 = vrot.slane %v2988, 5
        %v2991 = vsel %vm1237, %v2986, %v2990
        %v2993 = vshrl.u32 %v2818, 16
        %v2995 = vrot.slane %v2993, 4
        %v2996 = vshll.u32 %v2818, 16
        %v2998 = vrot.slane %v2996, 5
        %v2999 = vor.u32 %v2995, %v2998
        %v3000 = vrot.slane %v2999, 4
        %v3002 = vshll.u32 %v2819, 16
        %v3004 = vrot.slane %v3002, 5
        %v3005 = vsel %vm1237, %v3000, %v3004
        %v3006 = vshrl.u32 %v2819, 16
        %v3008 = vrot.slane %v3006, 4
        %v3009 = vor.u32 %v3008, %v3004
        %v3010 = vrot.slane %v3009, 4
        %v3012 = vshll.u32 %v2820, 16
        %v3014 = vrot.slane %v3012, 5
        %v3015 = vsel %vm1237, %v3010, %v3014
        %v3017 = vshrl.u32 %v2821, 16
        %v3019 = vrot.slane %v3017, 4
        %v3020 = vshll.u32 %v2821, 16
        %v3022 = vrot.slane %v3020, 5
        %v3023 = vor.u32 %v3019, %v3022
        %v3024 = vrot.slane %v3023, 4
        %v3026 = vshll.u32 %v2822, 16
        %v3028 = vrot.slane %v3026, 5
        %v3029 = vsel %vm1237, %v3024, %v3028
        %v3030 = vshrl.u32 %v2822, 16
        %v3032 = vrot.slane %v3030, 4
        %v3033 = vor.u32 %v3032, %v3028
        %v3034 = vrot.slane %v3033, 4
        %v3036 = vshll.u32 %v2823, 16
        %v3038 = vrot.slane %v3036, 5
        %v3039 = vsel %vm1237, %v3034, %v3038
        %v3041 = vshrl.u32 %v2824, 16
        %v3043 = vrot.slane %v3041, 4
        %v3044 = vshll.u32 %v2824, 16
        %v3046 = vrot.slane %v3044, 5
        %v3047 = vor.u32 %v3043, %v3046
        %v3048 = vrot.slane %v3047, 4
        %v3050 = vshll.u32 %v2825, 16
        %v3052 = vrot.slane %v3050, 5
        %v3053 = vsel %vm1237, %v3048, %v3052
        %v3054 = vshrl.u32 %v2825, 16
        %v3056 = vrot.slane %v3054, 4
        %v3057 = vor.u32 %v3056, %v3052
        %v3058 = vrot.slane %v3057, 4
        %v3060 = vshll.u32 %v2826, 16
        %v3062 = vrot.slane %v3060, 5
        %v3063 = vsel %vm1237, %v3058, %v3062
        %v3065 = vshrl.u32 %v2827, 16
        %v3067 = vrot.slane %v3065, 4
        %v3068 = vshll.u32 %v2827, 16
        %v3070 = vrot.slane %v3068, 5
        %v3071 = vor.u32 %v3067, %v3070
        %v3072 = vrot.slane %v3071, 4
        %v3074 = vshll.u32 %v2828, 16
        %v3076 = vrot.slane %v3074, 5
        %v3077 = vsel %vm1237, %v3072, %v3076
        %v3078 = vshrl.u32 %v2828, 16
        %v3080 = vrot.slane %v3078, 4
        %v3081 = vor.u32 %v3080, %v3076
        %v3082 = vrot.slane %v3081, 4
        %v3084 = vshll.u32 %v2829, 16
        %v3086 = vrot.slane %v3084, 5
        %v3087 = vsel %vm1237, %v3082, %v3086
        %v3089 = vshrl.u32 %v2830, 16
        %v3091 = vrot.slane %v3089, 4
        %v3092 = vshll.u32 %v2830, 16
        %v3094 = vrot.slane %v3092, 5
        %v3095 = vor.u32 %v3091, %v3094
        %v3096 = vrot.slane %v3095, 4
        %v3098 = vshll.u32 %v2831, 16
        %v3100 = vrot.slane %v3098, 5
        %v3101 = vsel %vm1237, %v3096, %v3100
        %v3102 = vshrl.u32 %v2831, 16
        %v3104 = vrot.slane %v3102, 4
        %v3105 = vor.u32 %v3104, %v3100
        %v3106 = vrot.slane %v3105, 4
        %v3108 = vshll.u32 %v2832, 16
        %v3110 = vrot.slane %v3108, 5
        %v3111 = vsel %vm1237, %v3106, %v3110
        %v3113 = vshrl.u32 %v2833, 16
        %v3115 = vrot.slane %v3113, 4
        %v3116 = vshll.u32 %v2833, 16
        %v3118 = vrot.slane %v3116, 5
        %v3119 = vor.u32 %v3115, %v3118
        %v3120 = vrot.slane %v3119, 4
        %v3122 = vshll.u32 %v2834, 16
        %v3124 = vrot.slane %v3122, 5
        %v3125 = vsel %vm1237, %v3120, %v3124
        %v3126 = vshrl.u32 %v2834, 16
        %v3128 = vrot.slane %v3126, 4
        %v3129 = vor.u32 %v3128, %v3124
        %v3130 = vrot.slane %v3129, 4
        %v3132 = vshll.u32 %v2835, 16
        %v3134 = vrot.slane %v3132, 5
        %v3135 = vsel %vm1237, %v3130, %v3134
        %v3137 = vshrl.u32 %v2836, 16
        %v3139 = vrot.slane %v3137, 4
        %v3140 = vshll.u32 %v2836, 16
        %v3142 = vrot.slane %v3140, 5
        %v3143 = vor.u32 %v3139, %v3142
        %v3144 = vrot.slane %v3143, 4
        %v3146 = vshll.u32 %v2837, 16
        %v3148 = vrot.slane %v3146, 5
        %v3149 = vsel %vm1237, %v3144, %v3148
        %v3150 = vshrl.u32 %v2837, 16
        %v3152 = vrot.slane %v3150, 4
        %v3153 = vor.u32 %v3152, %v3148
        %v3154 = vrot.slane %v3153, 4
        %v3156 = vshll.u32 %v2838, 16
        %v3158 = vrot.slane %v3156, 5
        %v3159 = vsel %vm1237, %v3154, %v3158
        %v3161 = vshrl.u32 %v2839, 16
        %v3163 = vrot.slane %v3161, 4
        %v3164 = vshll.u32 %v2839, 16
        %v3166 = vrot.slane %v3164, 5
        %v3167 = vor.u32 %v3163, %v3166
        %v3168 = vrot.slane %v3167, 4
        %v3170 = vshll.u32 %v2840, 16
        %v3172 = vrot.slane %v3170, 5
        %v3173 = vsel %vm1237, %v3168, %v3172
        %v3174 = vshrl.u32 %v2840, 16
        %v3176 = vrot.slane %v3174, 4
        %v3177 = vor.u32 %v3176, %v3172
        %v3178 = vrot.slane %v3177, 4
        %v3180 = vshll.u32 %v2841, 16
        %v3182 = vrot.slane %v3180, 5
        %v3183 = vsel %vm1237, %v3178, %v3182
        %v3185 = vshrl.u32 %v2842, 16
        %v3187 = vrot.slane %v3185, 4
        %v3188 = vshll.u32 %v2842, 16
        %v3190 = vrot.slane %v3188, 5
        %v3191 = vor.u32 %v3187, %v3190
        %v3192 = vrot.slane %v3191, 4
        %v3194 = vshll.u32 %v2843, 16
        %v3196 = vrot.slane %v3194, 5
        %v3197 = vsel %vm1237, %v3192, %v3196
        %v3198 = vshrl.u32 %v2843, 16
        %v3200 = vrot.slane %v3198, 4
        %v3201 = vor.u32 %v3200, %v3196
        %v3202 = vrot.slane %v3201, 4
        %v3204 = vshll.u32 %v2844, 16
        %v3206 = vrot.slane %v3204, 5
        %v3207 = vsel %vm1237, %v3202, %v3206
        %v3209 = vshrl.u32 %v2845, 16
        %v3211 = vrot.slane %v3209, 4
        %v3212 = vshll.u32 %v2845, 16
        %v3214 = vrot.slane %v3212, 5
        %v3215 = vor.u32 %v3211, %v3214
        %v3216 = vrot.slane %v3215, 4
        %v3218 = vshll.u32 %v2846, 16
        %v3220 = vrot.slane %v3218, 5
        %v3221 = vsel %vm1237, %v3216, %v3220
        %v3222 = vshrl.u32 %v2846, 16
        %v3224 = vrot.slane %v3222, 4
        %v3225 = vor.u32 %v3224, %v3220
        %v3226 = vrot.slane %v3225, 4
        %v3228 = vshll.u32 %v2847, 16
        %v3230 = vrot.slane %v3228, 5
        %v3231 = vsel %vm1237, %v3226, %v3230
        %s3232 = scalar_lea.vmem %s5, 256
        %v3233 = vld [vmem:[%s3232] sm:$0xf]
        %v3234 = vld [vmem:[%s3232 + $0x4] sm:$0xf]
        %v3235 = vld [vmem:[%s3232 + $0x8] sm:$0xf]
        %v3236 = vld [vmem:[%s3232 + $0xc] sm:$0xf]
        %v3237 = vld [vmem:[%s3232 + $0x10] sm:$0xf]
        %v3238 = vld [vmem:[%s3232 + $0x14] sm:$0xf]
        %v3239 = vld [vmem:[%s3232 + $0x18] sm:$0xf]
        %v3240 = vld [vmem:[%s3232 + $0x1c] sm:$0xf]
        %v3241 = vld [vmem:[%s3232 + $0x20] sm:$0xf]
        %v3242 = vld [vmem:[%s3232 + $0x24] sm:$0xf]
        %v3243 = vld [vmem:[%s3232 + $0x28] sm:$0xf]
        %v3244 = vld [vmem:[%s3232 + $0x2c] sm:$0xf]
        %v3245 = vld [vmem:[%s3232 + $0x30] sm:$0xf]
        %v3246 = vld [vmem:[%s3232 + $0x34] sm:$0xf]
        %v3247 = vld [vmem:[%s3232 + $0x38] sm:$0xf]
        %v3248 = vld [vmem:[%s3232 + $0x3c] sm:$0xf]
        %v3249 = vunpack.c.l.b16 %v2861
        %v3250 = vunpack.c.l.b16 %v2871
        %v3251 = vunpack.c.l.b16 %v2885
        %v3252 = vunpack.c.l.b16 %v2895
        %v3253 = vunpack.c.l.b16 %v2909
        %v3254 = vunpack.c.l.b16 %v2919
        %v3255 = vunpack.c.l.b16 %v2933
        %v3256 = vunpack.c.l.b16 %v2943
        %v3257 = vunpack.c.l.b16 %v2957
        %v3258 = vunpack.c.l.b16 %v2967
        %v3259 = vunpack.c.l.b16 %v2981
        %v3260 = vunpack.c.l.b16 %v2991
        %v3261 = vunpack.c.l.b16 %v3005
        %v3262 = vunpack.c.l.b16 %v3015
        %v3263 = vunpack.c.l.b16 %v3029
        %v3264 = vunpack.c.l.b16 %v3039
        %v3265 = vunpack.c.l.b16 %v3053
        %v3266 = vunpack.c.l.b16 %v3063
        %v3267 = vunpack.c.l.b16 %v3077
        %v3268 = vunpack.c.l.b16 %v3087
        %v3269 = vunpack.c.l.b16 %v3101
        %v3270 = vunpack.c.l.b16 %v3111
        %v3271 = vunpack.c.l.b16 %v3125
        %v3272 = vunpack.c.l.b16 %v3135
        %v3273 = vunpack.c.l.b16 %v3149
        %v3274 = vunpack.c.l.b16 %v3159
        %v3275 = vunpack.c.l.b16 %v3173
        %v3276 = vunpack.c.l.b16 %v3183
        %v3277 = vunpack.c.l.b16 %v3197
        %v3278 = vunpack.c.l.b16 %v3207
        %v3279 = vunpack.c.l.b16 %v3221
        %v3280 = vunpack.c.l.b16 %v3231
        %v3281 = vpack.c.b16 %v3250, %v3249
        %v3282 = vpack.c.b16 %v3252, %v3251
        %v3283 = vpack.c.b16 %v3254, %v3253
        %v3284 = vpack.c.b16 %v3256, %v3255
        %v3285 = vpack.c.b16 %v3258, %v3257
        %v3286 = vpack.c.b16 %v3260, %v3259
        %v3287 = vpack.c.b16 %v3262, %v3261
        %v3288 = vpack.c.b16 %v3264, %v3263
        %v3289 = vpack.c.b16 %v3266, %v3265
        %v3290 = vpack.c.b16 %v3268, %v3267
        %v3291 = vpack.c.b16 %v3270, %v3269
        %v3292 = vpack.c.b16 %v3272, %v3271
        %v3293 = vpack.c.b16 %v3274, %v3273
        %v3294 = vpack.c.b16 %v3276, %v3275
        %v3295 = vpack.c.b16 %v3278, %v3277
        %v3296 = vpack.c.b16 %v3280, %v3279
        %v3329 = vunpack.c.l.b16 %v3233
        %v3330 = vunpack.c.l.b16 %v3234
        %v3331 = vunpack.c.l.b16 %v3235
        %v3332 = vunpack.c.l.b16 %v3236
        %v3333 = vunpack.c.l.b16 %v3237
        %v3334 = vunpack.c.l.b16 %v3238
        %v3335 = vunpack.c.l.b16 %v3239
        %v3336 = vunpack.c.l.b16 %v3240
        %v3337 = vunpack.c.l.b16 %v3241
        %v3338 = vunpack.c.l.b16 %v3242
        %v3339 = vunpack.c.l.b16 %v3243
        %v3340 = vunpack.c.l.b16 %v3244
        %v3341 = vunpack.c.l.b16 %v3245
        %v3342 = vunpack.c.l.b16 %v3246
        %v3343 = vunpack.c.l.b16 %v3247
        %v3344 = vunpack.c.l.b16 %v3248
        %v3345 = vpack.c.b16 %v3330, %v3329
        %v3346 = vpack.c.b16 %v3332, %v3331
        %v3347 = vpack.c.b16 %v3334, %v3333
        %v3348 = vpack.c.b16 %v3336, %v3335
        %v3349 = vpack.c.b16 %v3338, %v3337
        %v3350 = vpack.c.b16 %v3340, %v3339
        %v3351 = vpack.c.b16 %v3342, %v3341
        %v3352 = vpack.c.b16 %v3344, %v3343
        %3361 = vmatpush.bf16.msra.mxu0 %v3352
        %3362 = vmatpush.bf16.msra.mxu0 %v3351
        %3363 = vmatpush.bf16.msra.mxu0 %v3350
        %3364 = vmatpush.bf16.msra.mxu0 %v3349
        %3365 = vmatpush.bf16.msra.mxu0 %v3348
        %3366 = vmatpush.bf16.msra.mxu0 %v3347
        %3367 = vmatpush.bf16.msra.mxu0 %v3346
        %3368 = vmatpush.bf16.msra.mxu0 %v3345
        %3369 = vmatmul.bf16.gmra.mxu0 %v3281
        %v3370 = vpop.f32.mrf.mxu0
        %v3371 = vadd.f32 0.0, %v3370
        %v3372 = vpop.f32.mrf.mxu0
        %v3373 = vadd.f32 0.0, %v3372
        %3374 = vmatmul.bf16.gmra.mxu0 %v3282
        %v3375 = vpop.f32.mrf.mxu0
        %v3376 = vadd.f32 0.0, %v3375
        %v3377 = vpop.f32.mrf.mxu0
        %v3378 = vadd.f32 0.0, %v3377
        %3379 = vmatmul.bf16.gmra.mxu0 %v3283
        %v3380 = vpop.f32.mrf.mxu0
        %v3381 = vadd.f32 0.0, %v3380
        %v3382 = vpop.f32.mrf.mxu0
        %v3383 = vadd.f32 0.0, %v3382
        %3384 = vmatmul.bf16.gmra.mxu0 %v3284
        %v3385 = vpop.f32.mrf.mxu0
        %v3386 = vadd.f32 0.0, %v3385
        %v3387 = vpop.f32.mrf.mxu0
        %v3388 = vadd.f32 0.0, %v3387
        %3389 = vmatmul.bf16.gmra.mxu0 %v3285
        %v3390 = vpop.f32.mrf.mxu0
        %v3391 = vadd.f32 0.0, %v3390
        %v3392 = vpop.f32.mrf.mxu0
        %v3393 = vadd.f32 0.0, %v3392
        %3394 = vmatmul.bf16.gmra.mxu0 %v3286
        %v3395 = vpop.f32.mrf.mxu0
        %v3396 = vadd.f32 0.0, %v3395
        %v3397 = vpop.f32.mrf.mxu0
        %v3398 = vadd.f32 0.0, %v3397
        %3399 = vmatmul.bf16.gmra.mxu0 %v3287
        %v3400 = vpop.f32.mrf.mxu0
        %v3401 = vadd.f32 0.0, %v3400
        %v3402 = vpop.f32.mrf.mxu0
        %v3403 = vadd.f32 0.0, %v3402
        %3404 = vmatmul.bf16.gmra.mxu0 %v3288
        %v3405 = vpop.f32.mrf.mxu0
        %v3406 = vadd.f32 0.0, %v3405
        %v3407 = vpop.f32.mrf.mxu0
        %v3408 = vadd.f32 0.0, %v3407
        %3409 = vmatmul.bf16.gmra.mxu0 %v3289
        %v3410 = vpop.f32.mrf.mxu0
        %v3411 = vadd.f32 0.0, %v3410
        %v3412 = vpop.f32.mrf.mxu0
        %v3413 = vadd.f32 0.0, %v3412
        %3414 = vmatmul.bf16.gmra.mxu0 %v3290
        %v3415 = vpop.f32.mrf.mxu0
        %v3416 = vadd.f32 0.0, %v3415
        %v3417 = vpop.f32.mrf.mxu0
        %v3418 = vadd.f32 0.0, %v3417
        %3419 = vmatmul.bf16.gmra.mxu0 %v3291
        %v3420 = vpop.f32.mrf.mxu0
        %v3421 = vadd.f32 0.0, %v3420
        %v3422 = vpop.f32.mrf.mxu0
        %v3423 = vadd.f32 0.0, %v3422
        %3424 = vmatmul.bf16.gmra.mxu0 %v3292
        %v3425 = vpop.f32.mrf.mxu0
        %v3426 = vadd.f32 0.0, %v3425
        %v3427 = vpop.f32.mrf.mxu0
        %v3428 = vadd.f32 0.0, %v3427
        %3429 = vmatmul.bf16.gmra.mxu0 %v3293
        %v3430 = vpop.f32.mrf.mxu0
        %v3431 = vadd.f32 0.0, %v3430
        %v3432 = vpop.f32.mrf.mxu0
        %v3433 = vadd.f32 0.0, %v3432
        %3434 = vmatmul.bf16.gmra.mxu0 %v3294
        %v3435 = vpop.f32.mrf.mxu0
        %v3436 = vadd.f32 0.0, %v3435
        %v3437 = vpop.f32.mrf.mxu0
        %v3438 = vadd.f32 0.0, %v3437
        %3439 = vmatmul.bf16.gmra.mxu0 %v3295
        %v3440 = vpop.f32.mrf.mxu0
        %v3441 = vadd.f32 0.0, %v3440
        %v3442 = vpop.f32.mrf.mxu0
        %v3443 = vadd.f32 0.0, %v3442
        %3444 = vmatmul.bf16.gmra.mxu0 %v3296
        %v3445 = vpop.f32.mrf.mxu0
        %v3446 = vadd.f32 0.0, %v3445
        %v3447 = vpop.f32.mrf.mxu0
        %v3448 = vadd.f32 0.0, %v3447
        %3449 = vdwg.mxu0
        %v3450 = vadd.f32 %v2768, %v3371
        %v3451 = vadd.f32 %v2769, %v3373
        %v3452 = vadd.f32 %v2770, %v3376
        %v3453 = vadd.f32 %v2771, %v3378
        %v3454 = vadd.f32 %v2772, %v3381
        %v3455 = vadd.f32 %v2773, %v3383
        %v3456 = vadd.f32 %v2774, %v3386
        %v3457 = vadd.f32 %v2775, %v3388
        %v3458 = vadd.f32 %v2776, %v3391
        %v3459 = vadd.f32 %v2777, %v3393
        %v3460 = vadd.f32 %v2778, %v3396
        %v3461 = vadd.f32 %v2779, %v3398
        %v3462 = vadd.f32 %v2780, %v3401
        %v3463 = vadd.f32 %v2781, %v3403
        %v3464 = vadd.f32 %v2782, %v3406
        %v3465 = vadd.f32 %v2783, %v3408
        %v3466 = vadd.f32 %v2784, %v3411
        %v3467 = vadd.f32 %v2785, %v3413
        %v3468 = vadd.f32 %v2786, %v3416
        %v3469 = vadd.f32 %v2787, %v3418
        %v3470 = vadd.f32 %v2788, %v3421
        %v3471 = vadd.f32 %v2789, %v3423
        %v3472 = vadd.f32 %v2790, %v3426
        %v3473 = vadd.f32 %v2791, %v3428
        %v3474 = vadd.f32 %v2792, %v3431
        %v3475 = vadd.f32 %v2793, %v3433
        %v3476 = vadd.f32 %v2794, %v3436
        %v3477 = vadd.f32 %v2795, %v3438
        %v3478 = vadd.f32 %v2796, %v3441
        %v3479 = vadd.f32 %v2797, %v3443
        %v3480 = vadd.f32 %v2798, %v3446
        %v3481 = vadd.f32 %v2799, %v3448
        %v3482 = vld [vmem:[%s1056] sm:$0xe]
        %v3483 = vld [vmem:[%s1056 + $0xc] sm:$0xe]
        %v3484 = vld [vmem:[%s1056 + $0x18] sm:$0xe]
        %v3485 = vld [vmem:[%s1056 + $0x24] sm:$0xe]
        %v3486 = vld [vmem:[%s1056 + $0x30] sm:$0xe]
        %v3487 = vld [vmem:[%s1056 + $0x3c] sm:$0xe]
        %v3488 = vld [vmem:[%s1056 + $0x48] sm:$0xe]
        %v3489 = vld [vmem:[%s1056 + $0x54] sm:$0xe]
        %v3490 = vld [vmem:[%s1056 + $0x60] sm:$0xe]
        %v3491 = vld [vmem:[%s1056 + $0x6c] sm:$0xe]
        %v3492 = vld [vmem:[%s1056 + $0x78] sm:$0xe]
        %v3493 = vld [vmem:[%s1056 + $0x84] sm:$0xe]
        %v3494 = vld [vmem:[%s1056 + $0x90] sm:$0xe]
        %v3495 = vld [vmem:[%s1056 + $0x9c] sm:$0xe]
        %v3496 = vld [vmem:[%s1056 + $0xa8] sm:$0xe]
        %v3497 = vld [vmem:[%s1056 + $0xb4] sm:$0xe]
        %v3546 = vrot.slane %v3482, 5
        %v3547 = vrot.slane %v3546, 4
        %v3548 = vrot.slane %v2801, 5
        %v3549 = vsel %vm2123, %v3547, %v3548
        %v3550 = vrot.slane %v3548, 4
        %v3551 = vrot.slane %v2802, 5
        %v3552 = vsel %vm2123, %v3550, %v3551
        %v3553 = vrot.slane %v3483, 5
        %v3554 = vrot.slane %v3553, 4
        %v3555 = vrot.slane %v2804, 5
        %v3556 = vsel %vm2123, %v3554, %v3555
        %v3557 = vrot.slane %v3555, 4
        %v3558 = vrot.slane %v2805, 5
        %v3559 = vsel %vm2123, %v3557, %v3558
        %v3560 = vrot.slane %v3484, 5
        %v3561 = vrot.slane %v3560, 4
        %v3562 = vrot.slane %v2807, 5
        %v3563 = vsel %vm2123, %v3561, %v3562
        %v3564 = vrot.slane %v3562, 4
        %v3565 = vrot.slane %v2808, 5
        %v3566 = vsel %vm2123, %v3564, %v3565
        %v3567 = vrot.slane %v3485, 5
        %v3568 = vrot.slane %v3567, 4
        %v3569 = vrot.slane %v2810, 5
        %v3570 = vsel %vm2123, %v3568, %v3569
        %v3571 = vrot.slane %v3569, 4
        %v3572 = vrot.slane %v2811, 5
        %v3573 = vsel %vm2123, %v3571, %v3572
        %v3574 = vrot.slane %v3486, 5
        %v3575 = vrot.slane %v3574, 4
        %v3576 = vrot.slane %v2813, 5
        %v3577 = vsel %vm2123, %v3575, %v3576
        %v3578 = vrot.slane %v3576, 4
        %v3579 = vrot.slane %v2814, 5
        %v3580 = vsel %vm2123, %v3578, %v3579
        %v3581 = vrot.slane %v3487, 5
        %v3582 = vrot.slane %v3581, 4
        %v3583 = vrot.slane %v2816, 5
        %v3584 = vsel %vm2123, %v3582, %v3583
        %v3585 = vrot.slane %v3583, 4
        %v3586 = vrot.slane %v2817, 5
        %v3587 = vsel %vm2123, %v3585, %v3586
        %v3588 = vrot.slane %v3488, 5
        %v3589 = vrot.slane %v3588, 4
        %v3590 = vrot.slane %v2819, 5
        %v3591 = vsel %vm2123, %v3589, %v3590
        %v3592 = vrot.slane %v3590, 4
        %v3593 = vrot.slane %v2820, 5
        %v3594 = vsel %vm2123, %v3592, %v3593
        %v3595 = vrot.slane %v3489, 5
        %v3596 = vrot.slane %v3595, 4
        %v3597 = vrot.slane %v2822, 5
        %v3598 = vsel %vm2123, %v3596, %v3597
        %v3599 = vrot.slane %v3597, 4
        %v3600 = vrot.slane %v2823, 5
        %v3601 = vsel %vm2123, %v3599, %v3600
        %v3602 = vrot.slane %v3490, 5
        %v3603 = vrot.slane %v3602, 4
        %v3604 = vrot.slane %v2825, 5
        %v3605 = vsel %vm2123, %v3603, %v3604
        %v3606 = vrot.slane %v3604, 4
        %v3607 = vrot.slane %v2826, 5
        %v3608 = vsel %vm2123, %v3606, %v3607
        %v3609 = vrot.slane %v3491, 5
        %v3610 = vrot.slane %v3609, 4
        %v3611 = vrot.slane %v2828, 5
        %v3612 = vsel %vm2123, %v3610, %v3611
        %v3613 = vrot.slane %v3611, 4
        %v3614 = vrot.slane %v2829, 5
        %v3615 = vsel %vm2123, %v3613, %v3614
        %v3616 = vrot.slane %v3492, 5
        %v3617 = vrot.slane %v3616, 4
        %v3618 = vrot.slane %v2831, 5
        %v3619 = vsel %vm2123, %v3617, %v3618
        %v3620 = vrot.slane %v3618, 4
        %v3621 = vrot.slane %v2832, 5
        %v3622 = vsel %vm2123, %v3620, %v3621
        %v3623 = vrot.slane %v3493, 5
        %v3624 = vrot.slane %v3623, 4
        %v3625 = vrot.slane %v2834, 5
        %v3626 = vsel %vm2123, %v3624, %v3625
        %v3627 = vrot.slane %v3625, 4
        %v3628 = vrot.slane %v2835, 5
        %v3629 = vsel %vm2123, %v3627, %v3628
        %v3630 = vrot.slane %v3494, 5
        %v3631 = vrot.slane %v3630, 4
        %v3632 = vrot.slane %v2837, 5
        %v3633 = vsel %vm2123, %v3631, %v3632
        %v3634 = vrot.slane %v3632, 4
        %v3635 = vrot.slane %v2838, 5
        %v3636 = vsel %vm2123, %v3634, %v3635
        %v3637 = vrot.slane %v3495, 5
        %v3638 = vrot.slane %v3637, 4
        %v3639 = vrot.slane %v2840, 5
        %v3640 = vsel %vm2123, %v3638, %v3639
        %v3641 = vrot.slane %v3639, 4
        %v3642 = vrot.slane %v2841, 5
        %v3643 = vsel %vm2123, %v3641, %v3642
        %v3644 = vrot.slane %v3496, 5
        %v3645 = vrot.slane %v3644, 4
        %v3646 = vrot.slane %v2843, 5
        %v3647 = vsel %vm2123, %v3645, %v3646
        %v3648 = vrot.slane %v3646, 4
        %v3649 = vrot.slane %v2844, 5
        %v3650 = vsel %vm2123, %v3648, %v3649
        %v3651 = vrot.slane %v3497, 5
        %v3652 = vrot.slane %v3651, 4
        %v3653 = vrot.slane %v2846, 5
        %v3654 = vsel %vm2123, %v3652, %v3653
        %v3655 = vrot.slane %v3653, 4
        %v3656 = vrot.slane %v2847, 5
        %v3657 = vsel %vm2123, %v3655, %v3656
        %s3658 = scalar_lea.vmem %s5, 320
        %v3659 = vld [vmem:[%s3658] sm:$0xf]
        %v3660 = vld [vmem:[%s3658 + $0x4] sm:$0xf]
        %v3661 = vld [vmem:[%s3658 + $0x8] sm:$0xf]
        %v3662 = vld [vmem:[%s3658 + $0xc] sm:$0xf]
        %v3663 = vld [vmem:[%s3658 + $0x10] sm:$0xf]
        %v3664 = vld [vmem:[%s3658 + $0x14] sm:$0xf]
        %v3665 = vld [vmem:[%s3658 + $0x18] sm:$0xf]
        %v3666 = vld [vmem:[%s3658 + $0x1c] sm:$0xf]
        %v3667 = vld [vmem:[%s3658 + $0x20] sm:$0xf]
        %v3668 = vld [vmem:[%s3658 + $0x24] sm:$0xf]
        %v3669 = vld [vmem:[%s3658 + $0x28] sm:$0xf]
        %v3670 = vld [vmem:[%s3658 + $0x2c] sm:$0xf]
        %v3671 = vld [vmem:[%s3658 + $0x30] sm:$0xf]
        %v3672 = vld [vmem:[%s3658 + $0x34] sm:$0xf]
        %v3673 = vld [vmem:[%s3658 + $0x38] sm:$0xf]
        %v3674 = vld [vmem:[%s3658 + $0x3c] sm:$0xf]
        %v3675 = vunpack.c.l.b16 %v3549
        %v3676 = vunpack.c.l.b16 %v3552
        %v3677 = vunpack.c.l.b16 %v3556
        %v3678 = vunpack.c.l.b16 %v3559
        %v3679 = vunpack.c.l.b16 %v3563
        %v3680 = vunpack.c.l.b16 %v3566
        %v3681 = vunpack.c.l.b16 %v3570
        %v3682 = vunpack.c.l.b16 %v3573
        %v3683 = vunpack.c.l.b16 %v3577
        %v3684 = vunpack.c.l.b16 %v3580
        %v3685 = vunpack.c.l.b16 %v3584
        %v3686 = vunpack.c.l.b16 %v3587
        %v3687 = vunpack.c.l.b16 %v3591
        %v3688 = vunpack.c.l.b16 %v3594
        %v3689 = vunpack.c.l.b16 %v3598
        %v3690 = vunpack.c.l.b16 %v3601
        %v3691 = vunpack.c.l.b16 %v3605
        %v3692 = vunpack.c.l.b16 %v3608
        %v3693 = vunpack.c.l.b16 %v3612
        %v3694 = vunpack.c.l.b16 %v3615
        %v3695 = vunpack.c.l.b16 %v3619
        %v3696 = vunpack.c.l.b16 %v3622
        %v3697 = vunpack.c.l.b16 %v3626
        %v3698 = vunpack.c.l.b16 %v3629
        %v3699 = vunpack.c.l.b16 %v3633
        %v3700 = vunpack.c.l.b16 %v3636
        %v3701 = vunpack.c.l.b16 %v3640
        %v3702 = vunpack.c.l.b16 %v3643
        %v3703 = vunpack.c.l.b16 %v3647
        %v3704 = vunpack.c.l.b16 %v3650
        %v3705 = vunpack.c.l.b16 %v3654
        %v3706 = vunpack.c.l.b16 %v3657
        %v3707 = vpack.c.b16 %v3676, %v3675
        %v3708 = vpack.c.b16 %v3678, %v3677
        %v3709 = vpack.c.b16 %v3680, %v3679
        %v3710 = vpack.c.b16 %v3682, %v3681
        %v3711 = vpack.c.b16 %v3684, %v3683
        %v3712 = vpack.c.b16 %v3686, %v3685
        %v3713 = vpack.c.b16 %v3688, %v3687
        %v3714 = vpack.c.b16 %v3690, %v3689
        %v3715 = vpack.c.b16 %v3692, %v3691
        %v3716 = vpack.c.b16 %v3694, %v3693
        %v3717 = vpack.c.b16 %v3696, %v3695
        %v3718 = vpack.c.b16 %v3698, %v3697
        %v3719 = vpack.c.b16 %v3700, %v3699
        %v3720 = vpack.c.b16 %v3702, %v3701
        %v3721 = vpack.c.b16 %v3704, %v3703
        %v3722 = vpack.c.b16 %v3706, %v3705
        %v3755 = vunpack.c.l.b16 %v3659
        %v3756 = vunpack.c.l.b16 %v3660
        %v3757 = vunpack.c.l.b16 %v3661
        %v3758 = vunpack.c.l.b16 %v3662
        %v3759 = vunpack.c.l.b16 %v3663
        %v3760 = vunpack.c.l.b16 %v3664
        %v3761 = vunpack.c.l.b16 %v3665
        %v3762 = vunpack.c.l.b16 %v3666
        %v3763 = vunpack.c.l.b16 %v3667
        %v3764 = vunpack.c.l.b16 %v3668
        %v3765 = vunpack.c.l.b16 %v3669
        %v3766 = vunpack.c.l.b16 %v3670
        %v3767 = vunpack.c.l.b16 %v3671
        %v3768 = vunpack.c.l.b16 %v3672
        %v3769 = vunpack.c.l.b16 %v3673
        %v3770 = vunpack.c.l.b16 %v3674
        %v3771 = vpack.c.b16 %v3756, %v3755
        %v3772 = vpack.c.b16 %v3758, %v3757
        %v3773 = vpack.c.b16 %v3760, %v3759
        %v3774 = vpack.c.b16 %v3762, %v3761
        %v3775 = vpack.c.b16 %v3764, %v3763
        %v3776 = vpack.c.b16 %v3766, %v3765
        %v3777 = vpack.c.b16 %v3768, %v3767
        %v3778 = vpack.c.b16 %v3770, %v3769
        %3787 = vmatpush.bf16.msra.mxu0 %v3778
        %3788 = vmatpush.bf16.msra.mxu0 %v3777
        %3789 = vmatpush.bf16.msra.mxu0 %v3776
        %3790 = vmatpush.bf16.msra.mxu0 %v3775
        %3791 = vmatpush.bf16.msra.mxu0 %v3774
        %3792 = vmatpush.bf16.msra.mxu0 %v3773
        %3793 = vmatpush.bf16.msra.mxu0 %v3772
        %3794 = vmatpush.bf16.msra.mxu0 %v3771
        %3795 = vmatmul.bf16.gmra.mxu0 %v3707
        %v3796 = vpop.f32.mrf.mxu0
        %v3797 = vadd.f32 0.0, %v3796
        %v3798 = vpop.f32.mrf.mxu0
        %v3799 = vadd.f32 0.0, %v3798
        %3800 = vmatmul.bf16.gmra.mxu0 %v3708
        %v3801 = vpop.f32.mrf.mxu0
        %v3802 = vadd.f32 0.0, %v3801
        %v3803 = vpop.f32.mrf.mxu0
        %v3804 = vadd.f32 0.0, %v3803
        %3805 = vmatmul.bf16.gmra.mxu0 %v3709
        %v3806 = vpop.f32.mrf.mxu0
        %v3807 = vadd.f32 0.0, %v3806
        %v3808 = vpop.f32.mrf.mxu0
        %v3809 = vadd.f32 0.0, %v3808
        %3810 = vmatmul.bf16.gmra.mxu0 %v3710
        %v3811 = vpop.f32.mrf.mxu0
        %v3812 = vadd.f32 0.0, %v3811
        %v3813 = vpop.f32.mrf.mxu0
        %v3814 = vadd.f32 0.0, %v3813
        %3815 = vmatmul.bf16.gmra.mxu0 %v3711
        %v3816 = vpop.f32.mrf.mxu0
        %v3817 = vadd.f32 0.0, %v3816
        %v3818 = vpop.f32.mrf.mxu0
        %v3819 = vadd.f32 0.0, %v3818
        %3820 = vmatmul.bf16.gmra.mxu0 %v3712
        %v3821 = vpop.f32.mrf.mxu0
        %v3822 = vadd.f32 0.0, %v3821
        %v3823 = vpop.f32.mrf.mxu0
        %v3824 = vadd.f32 0.0, %v3823
        %3825 = vmatmul.bf16.gmra.mxu0 %v3713
        %v3826 = vpop.f32.mrf.mxu0
        %v3827 = vadd.f32 0.0, %v3826
        %v3828 = vpop.f32.mrf.mxu0
        %v3829 = vadd.f32 0.0, %v3828
        %3830 = vmatmul.bf16.gmra.mxu0 %v3714
        %v3831 = vpop.f32.mrf.mxu0
        %v3832 = vadd.f32 0.0, %v3831
        %v3833 = vpop.f32.mrf.mxu0
        %v3834 = vadd.f32 0.0, %v3833
        %3835 = vmatmul.bf16.gmra.mxu0 %v3715
        %v3836 = vpop.f32.mrf.mxu0
        %v3837 = vadd.f32 0.0, %v3836
        %v3838 = vpop.f32.mrf.mxu0
        %v3839 = vadd.f32 0.0, %v3838
        %3840 = vmatmul.bf16.gmra.mxu0 %v3716
        %v3841 = vpop.f32.mrf.mxu0
        %v3842 = vadd.f32 0.0, %v3841
        %v3843 = vpop.f32.mrf.mxu0
        %v3844 = vadd.f32 0.0, %v3843
        %3845 = vmatmul.bf16.gmra.mxu0 %v3717
        %v3846 = vpop.f32.mrf.mxu0
        %v3847 = vadd.f32 0.0, %v3846
        %v3848 = vpop.f32.mrf.mxu0
        %v3849 = vadd.f32 0.0, %v3848
        %3850 = vmatmul.bf16.gmra.mxu0 %v3718
        %v3851 = vpop.f32.mrf.mxu0
        %v3852 = vadd.f32 0.0, %v3851
        %v3853 = vpop.f32.mrf.mxu0
        %v3854 = vadd.f32 0.0, %v3853
        %3855 = vmatmul.bf16.gmra.mxu0 %v3719
        %v3856 = vpop.f32.mrf.mxu0
        %v3857 = vadd.f32 0.0, %v3856
        %v3858 = vpop.f32.mrf.mxu0
        %v3859 = vadd.f32 0.0, %v3858
        %3860 = vmatmul.bf16.gmra.mxu0 %v3720
        %v3861 = vpop.f32.mrf.mxu0
        %v3862 = vadd.f32 0.0, %v3861
        %v3863 = vpop.f32.mrf.mxu0
        %v3864 = vadd.f32 0.0, %v3863
        %3865 = vmatmul.bf16.gmra.mxu0 %v3721
        %v3866 = vpop.f32.mrf.mxu0
        %v3867 = vadd.f32 0.0, %v3866
        %v3868 = vpop.f32.mrf.mxu0
        %v3869 = vadd.f32 0.0, %v3868
        %3870 = vmatmul.bf16.gmra.mxu0 %v3722
        %v3871 = vpop.f32.mrf.mxu0
        %v3872 = vadd.f32 0.0, %v3871
        %v3873 = vpop.f32.mrf.mxu0
        %v3874 = vadd.f32 0.0, %v3873
        %3875 = vdwg.mxu0
        %v3876 = vadd.f32 %v3450, %v3797
        %v3877 = vadd.f32 %v3451, %v3799
        %v3878 = vadd.f32 %v3452, %v3802
        %v3879 = vadd.f32 %v3453, %v3804
        %v3880 = vadd.f32 %v3454, %v3807
        %v3881 = vadd.f32 %v3455, %v3809
        %v3882 = vadd.f32 %v3456, %v3812
        %v3883 = vadd.f32 %v3457, %v3814
        %v3884 = vadd.f32 %v3458, %v3817
        %v3885 = vadd.f32 %v3459, %v3819
        %v3886 = vadd.f32 %v3460, %v3822
        %v3887 = vadd.f32 %v3461, %v3824
        %v3888 = vadd.f32 %v3462, %v3827
        %v3889 = vadd.f32 %v3463, %v3829
        %v3890 = vadd.f32 %v3464, %v3832
        %v3891 = vadd.f32 %v3465, %v3834
        %v3892 = vadd.f32 %v3466, %v3837
        %v3893 = vadd.f32 %v3467, %v3839
        %v3894 = vadd.f32 %v3468, %v3842
        %v3895 = vadd.f32 %v3469, %v3844
        %v3896 = vadd.f32 %v3470, %v3847
        %v3897 = vadd.f32 %v3471, %v3849
        %v3898 = vadd.f32 %v3472, %v3852
        %v3899 = vadd.f32 %v3473, %v3854
        %v3900 = vadd.f32 %v3474, %v3857
        %v3901 = vadd.f32 %v3475, %v3859
        %v3902 = vadd.f32 %v3476, %v3862
        %v3903 = vadd.f32 %v3477, %v3864
        %v3904 = vadd.f32 %v3478, %v3867
        %v3905 = vadd.f32 %v3479, %v3869
        %v3906 = vadd.f32 %v3480, %v3872
        %v3907 = vadd.f32 %v3481, %v3874
        %s3908 = scalar_lea.vmem [#allocation2], 24
        %v3909 = vld [vmem:[%s3908] sm:$0xf]
        %v3910 = vld [vmem:[%s3908 + $0x4] sm:$0xf]
        %v3911 = vld [vmem:[%s3908 + $0xc] sm:$0xf]
        %v3912 = vld [vmem:[%s3908 + $0x10] sm:$0xf]
        %v3913 = vld [vmem:[%s3908 + $0x18] sm:$0xf]
        %v3914 = vld [vmem:[%s3908 + $0x1c] sm:$0xf]
        %v3915 = vld [vmem:[%s3908 + $0x24] sm:$0xf]
        %v3916 = vld [vmem:[%s3908 + $0x28] sm:$0xf]
        %v3917 = vld [vmem:[%s3908 + $0x30] sm:$0xf]
        %v3918 = vld [vmem:[%s3908 + $0x34] sm:$0xf]
        %v3919 = vld [vmem:[%s3908 + $0x3c] sm:$0xf]
        %v3920 = vld [vmem:[%s3908 + $0x40] sm:$0xf]
        %v3921 = vld [vmem:[%s3908 + $0x48] sm:$0xf]
        %v3922 = vld [vmem:[%s3908 + $0x4c] sm:$0xf]
        %v3923 = vld [vmem:[%s3908 + $0x54] sm:$0xf]
        %v3924 = vld [vmem:[%s3908 + $0x58] sm:$0xf]
        %v3925 = vld [vmem:[%s3908 + $0x60] sm:$0xf]
        %v3926 = vld [vmem:[%s3908 + $0x64] sm:$0xf]
        %v3927 = vld [vmem:[%s3908 + $0x6c] sm:$0xf]
        %v3928 = vld [vmem:[%s3908 + $0x70] sm:$0xf]
        %v3929 = vld [vmem:[%s3908 + $0x78] sm:$0xf]
        %v3930 = vld [vmem:[%s3908 + $0x7c] sm:$0xf]
        %v3931 = vld [vmem:[%s3908 + $0x84] sm:$0xf]
        %v3932 = vld [vmem:[%s3908 + $0x88] sm:$0xf]
        %v3933 = vld [vmem:[%s3908 + $0x90] sm:$0xf]
        %v3934 = vld [vmem:[%s3908 + $0x94] sm:$0xf]
        %v3935 = vld [vmem:[%s3908 + $0x9c] sm:$0xf]
        %v3936 = vld [vmem:[%s3908 + $0xa0] sm:$0xf]
        %v3937 = vld [vmem:[%s3908 + $0xa8] sm:$0xf]
        %v3938 = vld [vmem:[%s3908 + $0xac] sm:$0xf]
        %v3939 = vld [vmem:[%s3908 + $0xb4] sm:$0xf]
        %v3940 = vld [vmem:[%s3908 + $0xb8] sm:$0xf]
        %s3941 = scalar_lea.vmem %s5, 384
        %v3942 = vld [vmem:[%s3941] sm:$0xf]
        %v3943 = vld [vmem:[%s3941 + $0x4] sm:$0xf]
        %v3944 = vld [vmem:[%s3941 + $0x8] sm:$0xf]
        %v3945 = vld [vmem:[%s3941 + $0xc] sm:$0xf]
        %v3946 = vld [vmem:[%s3941 + $0x10] sm:$0xf]
        %v3947 = vld [vmem:[%s3941 + $0x14] sm:$0xf]
        %v3948 = vld [vmem:[%s3941 + $0x18] sm:$0xf]
        %v3949 = vld [vmem:[%s3941 + $0x1c] sm:$0xf]
        %v3950 = vld [vmem:[%s3941 + $0x20] sm:$0xf]
        %v3951 = vld [vmem:[%s3941 + $0x24] sm:$0xf]
        %v3952 = vld [vmem:[%s3941 + $0x28] sm:$0xf]
        %v3953 = vld [vmem:[%s3941 + $0x2c] sm:$0xf]
        %v3954 = vld [vmem:[%s3941 + $0x30] sm:$0xf]
        %v3955 = vld [vmem:[%s3941 + $0x34] sm:$0xf]
        %v3956 = vld [vmem:[%s3941 + $0x38] sm:$0xf]
        %v3957 = vld [vmem:[%s3941 + $0x3c] sm:$0xf]
        %v3990 = vunpack.c.l.b16 %v3909
        %v3991 = vunpack.c.l.b16 %v3910
        %v3992 = vunpack.c.l.b16 %v3911
        %v3993 = vunpack.c.l.b16 %v3912
        %v3994 = vunpack.c.l.b16 %v3913
        %v3995 = vunpack.c.l.b16 %v3914
        %v3996 = vunpack.c.l.b16 %v3915
        %v3997 = vunpack.c.l.b16 %v3916
        %v3998 = vunpack.c.l.b16 %v3917
        %v3999 = vunpack.c.l.b16 %v3918
        %v4000 = vunpack.c.l.b16 %v3919
        %v4001 = vunpack.c.l.b16 %v3920
        %v4002 = vunpack.c.l.b16 %v3921
        %v4003 = vunpack.c.l.b16 %v3922
        %v4004 = vunpack.c.l.b16 %v3923
        %v4005 = vunpack.c.l.b16 %v3924
        %v4006 = vunpack.c.l.b16 %v3925
        %v4007 = vunpack.c.l.b16 %v3926
        %v4008 = vunpack.c.l.b16 %v3927
        %v4009 = vunpack.c.l.b16 %v3928
        %v4010 = vunpack.c.l.b16 %v3929
        %v4011 = vunpack.c.l.b16 %v3930
        %v4012 = vunpack.c.l.b16 %v3931
        %v4013 = vunpack.c.l.b16 %v3932
        %v4014 = vunpack.c.l.b16 %v3933
        %v4015 = vunpack.c.l.b16 %v3934
        %v4016 = vunpack.c.l.b16 %v3935
        %v4017 = vunpack.c.l.b16 %v3936
        %v4018 = vunpack.c.l.b16 %v3937
        %v4019 = vunpack.c.l.b16 %v3938
        %v4020 = vunpack.c.l.b16 %v3939
        %v4021 = vunpack.c.l.b16 %v3940
        %v4022 = vpack.c.b16 %v3991, %v3990
        %v4023 = vpack.c.b16 %v3993, %v3992
        %v4024 = vpack.c.b16 %v3995, %v3994
        %v4025 = vpack.c.b16 %v3997, %v3996
        %v4026 = vpack.c.b16 %v3999, %v3998
        %v4027 = vpack.c.b16 %v4001, %v4000
        %v4028 = vpack.c.b16 %v4003, %v4002
        %v4029 = vpack.c.b16 %v4005, %v4004
        %v4030 = vpack.c.b16 %v4007, %v4006
        %v4031 = vpack.c.b16 %v4009, %v4008
        %v4032 = vpack.c.b16 %v4011, %v4010
        %v4033 = vpack.c.b16 %v4013, %v4012
        %v4034 = vpack.c.b16 %v4015, %v4014
        %v4035 = vpack.c.b16 %v4017, %v4016
        %v4036 = vpack.c.b16 %v4019, %v4018
        %v4037 = vpack.c.b16 %v4021, %v4020
        %v4070 = vunpack.c.l.b16 %v3942
        %v4071 = vunpack.c.l.b16 %v3943
        %v4072 = vunpack.c.l.b16 %v3944
        %v4073 = vunpack.c.l.b16 %v3945
        %v4074 = vunpack.c.l.b16 %v3946
        %v4075 = vunpack.c.l.b16 %v3947
        %v4076 = vunpack.c.l.b16 %v3948
        %v4077 = vunpack.c.l.b16 %v3949
        %v4078 = vunpack.c.l.b16 %v3950
        %v4079 = vunpack.c.l.b16 %v3951
        %v4080 = vunpack.c.l.b16 %v3952
        %v4081 = vunpack.c.l.b16 %v3953
        %v4082 = vunpack.c.l.b16 %v3954
        %v4083 = vunpack.c.l.b16 %v3955
        %v4084 = vunpack.c.l.b16 %v3956
        %v4085 = vunpack.c.l.b16 %v3957
        %v4086 = vpack.c.b16 %v4071, %v4070
        %v4087 = vpack.c.b16 %v4073, %v4072
        %v4088 = vpack.c.b16 %v4075, %v4074
        %v4089 = vpack.c.b16 %v4077, %v4076
        %v4090 = vpack.c.b16 %v4079, %v4078
        %v4091 = vpack.c.b16 %v4081, %v4080
        %v4092 = vpack.c.b16 %v4083, %v4082
        %v4093 = vpack.c.b16 %v4085, %v4084
        %4102 = vmatpush.bf16.msra.mxu0 %v4093
        %4103 = vmatpush.bf16.msra.mxu0 %v4092
        %4104 = vmatpush.bf16.msra.mxu0 %v4091
        %4105 = vmatpush.bf16.msra.mxu0 %v4090
        %4106 = vmatpush.bf16.msra.mxu0 %v4089
        %4107 = vmatpush.bf16.msra.mxu0 %v4088
        %4108 = vmatpush.bf16.msra.mxu0 %v4087
        %4109 = vmatpush.bf16.msra.mxu0 %v4086
        %4110 = vmatmul.bf16.gmra.mxu0 %v4022
        %v4111 = vpop.f32.mrf.mxu0
        %v4112 = vadd.f32 0.0, %v4111
        %v4113 = vpop.f32.mrf.mxu0
        %v4114 = vadd.f32 0.0, %v4113
        %4115 = vmatmul.bf16.gmra.mxu0 %v4023
        %v4116 = vpop.f32.mrf.mxu0
        %v4117 = vadd.f32 0.0, %v4116
        %v4118 = vpop.f32.mrf.mxu0
        %v4119 = vadd.f32 0.0, %v4118
        %4120 = vmatmul.bf16.gmra.mxu0 %v4024
        %v4121 = vpop.f32.mrf.mxu0
        %v4122 = vadd.f32 0.0, %v4121
        %v4123 = vpop.f32.mrf.mxu0
        %v4124 = vadd.f32 0.0, %v4123
        %4125 = vmatmul.bf16.gmra.mxu0 %v4025
        %v4126 = vpop.f32.mrf.mxu0
        %v4127 = vadd.f32 0.0, %v4126
        %v4128 = vpop.f32.mrf.mxu0
        %v4129 = vadd.f32 0.0, %v4128
        %4130 = vmatmul.bf16.gmra.mxu0 %v4026
        %v4131 = vpop.f32.mrf.mxu0
        %v4132 = vadd.f32 0.0, %v4131
        %v4133 = vpop.f32.mrf.mxu0
        %v4134 = vadd.f32 0.0, %v4133
        %4135 = vmatmul.bf16.gmra.mxu0 %v4027
        %v4136 = vpop.f32.mrf.mxu0
        %v4137 = vadd.f32 0.0, %v4136
        %v4138 = vpop.f32.mrf.mxu0
        %v4139 = vadd.f32 0.0, %v4138
        %4140 = vmatmul.bf16.gmra.mxu0 %v4028
        %v4141 = vpop.f32.mrf.mxu0
        %v4142 = vadd.f32 0.0, %v4141
        %v4143 = vpop.f32.mrf.mxu0
        %v4144 = vadd.f32 0.0, %v4143
        %4145 = vmatmul.bf16.gmra.mxu0 %v4029
        %v4146 = vpop.f32.mrf.mxu0
        %v4147 = vadd.f32 0.0, %v4146
        %v4148 = vpop.f32.mrf.mxu0
        %v4149 = vadd.f32 0.0, %v4148
        %4150 = vmatmul.bf16.gmra.mxu0 %v4030
        %v4151 = vpop.f32.mrf.mxu0
        %v4152 = vadd.f32 0.0, %v4151
        %v4153 = vpop.f32.mrf.mxu0
        %v4154 = vadd.f32 0.0, %v4153
        %4155 = vmatmul.bf16.gmra.mxu0 %v4031
        %v4156 = vpop.f32.mrf.mxu0
        %v4157 = vadd.f32 0.0, %v4156
        %v4158 = vpop.f32.mrf.mxu0
        %v4159 = vadd.f32 0.0, %v4158
        %4160 = vmatmul.bf16.gmra.mxu0 %v4032
        %v4161 = vpop.f32.mrf.mxu0
        %v4162 = vadd.f32 0.0, %v4161
        %v4163 = vpop.f32.mrf.mxu0
        %v4164 = vadd.f32 0.0, %v4163
        %4165 = vmatmul.bf16.gmra.mxu0 %v4033
        %v4166 = vpop.f32.mrf.mxu0
        %v4167 = vadd.f32 0.0, %v4166
        %v4168 = vpop.f32.mrf.mxu0
        %v4169 = vadd.f32 0.0, %v4168
        %4170 = vmatmul.bf16.gmra.mxu0 %v4034
        %v4171 = vpop.f32.mrf.mxu0
        %v4172 = vadd.f32 0.0, %v4171
        %v4173 = vpop.f32.mrf.mxu0
        %v4174 = vadd.f32 0.0, %v4173
        %4175 = vmatmul.bf16.gmra.mxu0 %v4035
        %v4176 = vpop.f32.mrf.mxu0
        %v4177 = vadd.f32 0.0, %v4176
        %v4178 = vpop.f32.mrf.mxu0
        %v4179 = vadd.f32 0.0, %v4178
        %4180 = vmatmul.bf16.gmra.mxu0 %v4036
        %v4181 = vpop.f32.mrf.mxu0
        %v4182 = vadd.f32 0.0, %v4181
        %v4183 = vpop.f32.mrf.mxu0
        %v4184 = vadd.f32 0.0, %v4183
        %4185 = vmatmul.bf16.gmra.mxu0 %v4037
        %v4186 = vpop.f32.mrf.mxu0
        %v4187 = vadd.f32 0.0, %v4186
        %v4188 = vpop.f32.mrf.mxu0
        %v4189 = vadd.f32 0.0, %v4188
        %4190 = vdwg.mxu0
        %v4191 = vadd.f32 %v3876, %v4112
        %v4192 = vadd.f32 %v3877, %v4114
        %v4193 = vadd.f32 %v3878, %v4117
        %v4194 = vadd.f32 %v3879, %v4119
        %v4195 = vadd.f32 %v3880, %v4122
        %v4196 = vadd.f32 %v3881, %v4124
        %v4197 = vadd.f32 %v3882, %v4127
        %v4198 = vadd.f32 %v3883, %v4129
        %v4199 = vadd.f32 %v3884, %v4132
        %v4200 = vadd.f32 %v3885, %v4134
        %v4201 = vadd.f32 %v3886, %v4137
        %v4202 = vadd.f32 %v3887, %v4139
        %v4203 = vadd.f32 %v3888, %v4142
        %v4204 = vadd.f32 %v3889, %v4144
        %v4205 = vadd.f32 %v3890, %v4147
        %v4206 = vadd.f32 %v3891, %v4149
        %v4207 = vadd.f32 %v3892, %v4152
        %v4208 = vadd.f32 %v3893, %v4154
        %v4209 = vadd.f32 %v3894, %v4157
        %v4210 = vadd.f32 %v3895, %v4159
        %v4211 = vadd.f32 %v3896, %v4162
        %v4212 = vadd.f32 %v3897, %v4164
        %v4213 = vadd.f32 %v3898, %v4167
        %v4214 = vadd.f32 %v3899, %v4169
        %v4215 = vadd.f32 %v3900, %v4172
        %v4216 = vadd.f32 %v3901, %v4174
        %v4217 = vadd.f32 %v3902, %v4177
        %v4218 = vadd.f32 %v3903, %v4179
        %v4219 = vadd.f32 %v3904, %v4182
        %v4220 = vadd.f32 %v3905, %v4184
        %v4221 = vadd.f32 %v3906, %v4187
        %v4222 = vadd.f32 %v3907, %v4189
        %v4223 = vld [vmem:[%s3908] sm:$0xf]
        %v4224 = vld [vmem:[%s3908 + $0x4] sm:$0xf]
        %v4225 = vld [vmem:[%s3908 + $0x8] sm:$0x1]
        %v4226 = vld [vmem:[%s3908 + $0xc] sm:$0xf]
        %v4227 = vld [vmem:[%s3908 + $0x10] sm:$0xf]
        %v4228 = vld [vmem:[%s3908 + $0x14] sm:$0x1]
        %v4229 = vld [vmem:[%s3908 + $0x18] sm:$0xf]
        %v4230 = vld [vmem:[%s3908 + $0x1c] sm:$0xf]
        %v4231 = vld [vmem:[%s3908 + $0x20] sm:$0x1]
        %v4232 = vld [vmem:[%s3908 + $0x24] sm:$0xf]
        %v4233 = vld [vmem:[%s3908 + $0x28] sm:$0xf]
        %v4234 = vld [vmem:[%s3908 + $0x2c] sm:$0x1]
        %v4235 = vld [vmem:[%s3908 + $0x30] sm:$0xf]
        %v4236 = vld [vmem:[%s3908 + $0x34] sm:$0xf]
        %v4237 = vld [vmem:[%s3908 + $0x38] sm:$0x1]
        %v4238 = vld [vmem:[%s3908 + $0x3c] sm:$0xf]
        %v4239 = vld [vmem:[%s3908 + $0x40] sm:$0xf]
        %v4240 = vld [vmem:[%s3908 + $0x44] sm:$0x1]
        %v4241 = vld [vmem:[%s3908 + $0x48] sm:$0xf]
        %v4242 = vld [vmem:[%s3908 + $0x4c] sm:$0xf]
        %v4243 = vld [vmem:[%s3908 + $0x50] sm:$0x1]
        %v4244 = vld [vmem:[%s3908 + $0x54] sm:$0xf]
        %v4245 = vld [vmem:[%s3908 + $0x58] sm:$0xf]
        %v4246 = vld [vmem:[%s3908 + $0x5c] sm:$0x1]
        %v4247 = vld [vmem:[%s3908 + $0x60] sm:$0xf]
        %v4248 = vld [vmem:[%s3908 + $0x64] sm:$0xf]
        %v4249 = vld [vmem:[%s3908 + $0x68] sm:$0x1]
        %v4250 = vld [vmem:[%s3908 + $0x6c] sm:$0xf]
        %v4251 = vld [vmem:[%s3908 + $0x70] sm:$0xf]
        %v4252 = vld [vmem:[%s3908 + $0x74] sm:$0x1]
        %v4253 = vld [vmem:[%s3908 + $0x78] sm:$0xf]
        %v4254 = vld [vmem:[%s3908 + $0x7c] sm:$0xf]
        %v4255 = vld [vmem:[%s3908 + $0x80] sm:$0x1]
        %v4256 = vld [vmem:[%s3908 + $0x84] sm:$0xf]
        %v4257 = vld [vmem:[%s3908 + $0x88] sm:$0xf]
        %v4258 = vld [vmem:[%s3908 + $0x8c] sm:$0x1]
        %v4259 = vld [vmem:[%s3908 + $0x90] sm:$0xf]
        %v4260 = vld [vmem:[%s3908 + $0x94] sm:$0xf]
        %v4261 = vld [vmem:[%s3908 + $0x98] sm:$0x1]
        %v4262 = vld [vmem:[%s3908 + $0x9c] sm:$0xf]
        %v4263 = vld [vmem:[%s3908 + $0xa0] sm:$0xf]
        %v4264 = vld [vmem:[%s3908 + $0xa4] sm:$0x1]
        %v4265 = vld [vmem:[%s3908 + $0xa8] sm:$0xf]
        %v4266 = vld [vmem:[%s3908 + $0xac] sm:$0xf]
        %v4267 = vld [vmem:[%s3908 + $0xb0] sm:$0x1]
        %v4268 = vld [vmem:[%s3908 + $0xb4] sm:$0xf]
        %v4269 = vld [vmem:[%s3908 + $0xb8] sm:$0xf]
        %v4270 = vld [vmem:[%s3908 + $0xbc] sm:$0x1]
        %v4272 = vshrl.u32 %v4223, 16
        %v4274 = vrot.slane %v4272, 4
        %v4275 = vshll.u32 %v4223, 16
        %v4277 = vrot.slane %v4275, 5
        %v4278 = vor.u32 %v4274, %v4277
        %v4279 = vrot.slane %v4278, 4
        %v4281 = vshll.u32 %v4224, 16
        %v4283 = vrot.slane %v4281, 5
        %v4284 = vsel %vm1237, %v4279, %v4283
        %v4285 = vshrl.u32 %v4224, 16
        %v4287 = vrot.slane %v4285, 4
        %v4288 = vor.u32 %v4287, %v4283
        %v4289 = vrot.slane %v4288, 4
        %v4291 = vshll.u32 %v4225, 16
        %v4293 = vrot.slane %v4291, 5
        %v4294 = vsel %vm1237, %v4289, %v4293
        %v4296 = vshrl.u32 %v4226, 16
        %v4298 = vrot.slane %v4296, 4
        %v4299 = vshll.u32 %v4226, 16
        %v4301 = vrot.slane %v4299, 5
        %v4302 = vor.u32 %v4298, %v4301
        %v4303 = vrot.slane %v4302, 4
        %v4305 = vshll.u32 %v4227, 16
        %v4307 = vrot.slane %v4305, 5
        %v4308 = vsel %vm1237, %v4303, %v4307
        %v4309 = vshrl.u32 %v4227, 16
        %v4311 = vrot.slane %v4309, 4
        %v4312 = vor.u32 %v4311, %v4307
        %v4313 = vrot.slane %v4312, 4
        %v4315 = vshll.u32 %v4228, 16
        %v4317 = vrot.slane %v4315, 5
        %v4318 = vsel %vm1237, %v4313, %v4317
        %v4320 = vshrl.u32 %v4229, 16
        %v4322 = vrot.slane %v4320, 4
        %v4323 = vshll.u32 %v4229, 16
        %v4325 = vrot.slane %v4323, 5
        %v4326 = vor.u32 %v4322, %v4325
        %v4327 = vrot.slane %v4326, 4
        %v4329 = vshll.u32 %v4230, 16
        %v4331 = vrot.slane %v4329, 5
        %v4332 = vsel %vm1237, %v4327, %v4331
        %v4333 = vshrl.u32 %v4230, 16
        %v4335 = vrot.slane %v4333, 4
        %v4336 = vor.u32 %v4335, %v4331
        %v4337 = vrot.slane %v4336, 4
        %v4339 = vshll.u32 %v4231, 16
        %v4341 = vrot.slane %v4339, 5
        %v4342 = vsel %vm1237, %v4337, %v4341
        %v4344 = vshrl.u32 %v4232, 16
        %v4346 = vrot.slane %v4344, 4
        %v4347 = vshll.u32 %v4232, 16
        %v4349 = vrot.slane %v4347, 5
        %v4350 = vor.u32 %v4346, %v4349
        %v4351 = vrot.slane %v4350, 4
        %v4353 = vshll.u32 %v4233, 16
        %v4355 = vrot.slane %v4353, 5
        %v4356 = vsel %vm1237, %v4351, %v4355
        %v4357 = vshrl.u32 %v4233, 16
        %v4359 = vrot.slane %v4357, 4
        %v4360 = vor.u32 %v4359, %v4355
        %v4361 = vrot.slane %v4360, 4
        %v4363 = vshll.u32 %v4234, 16
        %v4365 = vrot.slane %v4363, 5
        %v4366 = vsel %vm1237, %v4361, %v4365
        %v4368 = vshrl.u32 %v4235, 16
        %v4370 = vrot.slane %v4368, 4
        %v4371 = vshll.u32 %v4235, 16
        %v4373 = vrot.slane %v4371, 5
        %v4374 = vor.u32 %v4370, %v4373
        %v4375 = vrot.slane %v4374, 4
        %v4377 = vshll.u32 %v4236, 16
        %v4379 = vrot.slane %v4377, 5
        %v4380 = vsel %vm1237, %v4375, %v4379
        %v4381 = vshrl.u32 %v4236, 16
        %v4383 = vrot.slane %v4381, 4
        %v4384 = vor.u32 %v4383, %v4379
        %v4385 = vrot.slane %v4384, 4
        %v4387 = vshll.u32 %v4237, 16
        %v4389 = vrot.slane %v4387, 5
        %v4390 = vsel %vm1237, %v4385, %v4389
        %v4392 = vshrl.u32 %v4238, 16
        %v4394 = vrot.slane %v4392, 4
        %v4395 = vshll.u32 %v4238, 16
        %v4397 = vrot.slane %v4395, 5
        %v4398 = vor.u32 %v4394, %v4397
        %v4399 = vrot.slane %v4398, 4
        %v4401 = vshll.u32 %v4239, 16
        %v4403 = vrot.slane %v4401, 5
        %v4404 = vsel %vm1237, %v4399, %v4403
        %v4405 = vshrl.u32 %v4239, 16
        %v4407 = vrot.slane %v4405, 4
        %v4408 = vor.u32 %v4407, %v4403
        %v4409 = vrot.slane %v4408, 4
        %v4411 = vshll.u32 %v4240, 16
        %v4413 = vrot.slane %v4411, 5
        %v4414 = vsel %vm1237, %v4409, %v4413
        %v4416 = vshrl.u32 %v4241, 16
        %v4418 = vrot.slane %v4416, 4
        %v4419 = vshll.u32 %v4241, 16
        %v4421 = vrot.slane %v4419, 5
        %v4422 = vor.u32 %v4418, %v4421
        %v4423 = vrot.slane %v4422, 4
        %v4425 = vshll.u32 %v4242, 16
        %v4427 = vrot.slane %v4425, 5
        %v4428 = vsel %vm1237, %v4423, %v4427
        %v4429 = vshrl.u32 %v4242, 16
        %v4431 = vrot.slane %v4429, 4
        %v4432 = vor.u32 %v4431, %v4427
        %v4433 = vrot.slane %v4432, 4
        %v4435 = vshll.u32 %v4243, 16
        %v4437 = vrot.slane %v4435, 5
        %v4438 = vsel %vm1237, %v4433, %v4437
        %v4440 = vshrl.u32 %v4244, 16
        %v4442 = vrot.slane %v4440, 4
        %v4443 = vshll.u32 %v4244, 16
        %v4445 = vrot.slane %v4443, 5
        %v4446 = vor.u32 %v4442, %v4445
        %v4447 = vrot.slane %v4446, 4
        %v4449 = vshll.u32 %v4245, 16
        %v4451 = vrot.slane %v4449, 5
        %v4452 = vsel %vm1237, %v4447, %v4451
        %v4453 = vshrl.u32 %v4245, 16
        %v4455 = vrot.slane %v4453, 4
        %v4456 = vor.u32 %v4455, %v4451
        %v4457 = vrot.slane %v4456, 4
        %v4459 = vshll.u32 %v4246, 16
        %v4461 = vrot.slane %v4459, 5
        %v4462 = vsel %vm1237, %v4457, %v4461
        %v4464 = vshrl.u32 %v4247, 16
        %v4466 = vrot.slane %v4464, 4
        %v4467 = vshll.u32 %v4247, 16
        %v4469 = vrot.slane %v4467, 5
        %v4470 = vor.u32 %v4466, %v4469
        %v4471 = vrot.slane %v4470, 4
        %v4473 = vshll.u32 %v4248, 16
        %v4475 = vrot.slane %v4473, 5
        %v4476 = vsel %vm1237, %v4471, %v4475
        %v4477 = vshrl.u32 %v4248, 16
        %v4479 = vrot.slane %v4477, 4
        %v4480 = vor.u32 %v4479, %v4475
        %v4481 = vrot.slane %v4480, 4
        %v4483 = vshll.u32 %v4249, 16
        %v4485 = vrot.slane %v4483, 5
        %v4486 = vsel %vm1237, %v4481, %v4485
        %v4488 = vshrl.u32 %v4250, 16
        %v4490 = vrot.slane %v4488, 4
        %v4491 = vshll.u32 %v4250, 16
        %v4493 = vrot.slane %v4491, 5
        %v4494 = vor.u32 %v4490, %v4493
        %v4495 = vrot.slane %v4494, 4
        %v4497 = vshll.u32 %v4251, 16
        %v4499 = vrot.slane %v4497, 5
        %v4500 = vsel %vm1237, %v4495, %v4499
        %v4501 = vshrl.u32 %v4251, 16
        %v4503 = vrot.slane %v4501, 4
        %v4504 = vor.u32 %v4503, %v4499
        %v4505 = vrot.slane %v4504, 4
        %v4507 = vshll.u32 %v4252, 16
        %v4509 = vrot.slane %v4507, 5
        %v4510 = vsel %vm1237, %v4505, %v4509
        %v4512 = vshrl.u32 %v4253, 16
        %v4514 = vrot.slane %v4512, 4
        %v4515 = vshll.u32 %v4253, 16
        %v4517 = vrot.slane %v4515, 5
        %v4518 = vor.u32 %v4514, %v4517
        %v4519 = vrot.slane %v4518, 4
        %v4521 = vshll.u32 %v4254, 16
        %v4523 = vrot.slane %v4521, 5
        %v4524 = vsel %vm1237, %v4519, %v4523
        %v4525 = vshrl.u32 %v4254, 16
        %v4527 = vrot.slane %v4525, 4
        %v4528 = vor.u32 %v4527, %v4523
        %v4529 = vrot.slane %v4528, 4
        %v4531 = vshll.u32 %v4255, 16
        %v4533 = vrot.slane %v4531, 5
        %v4534 = vsel %vm1237, %v4529, %v4533
        %v4536 = vshrl.u32 %v4256, 16
        %v4538 = vrot.slane %v4536, 4
        %v4539 = vshll.u32 %v4256, 16
        %v4541 = vrot.slane %v4539, 5
        %v4542 = vor.u32 %v4538, %v4541
        %v4543 = vrot.slane %v4542, 4
        %v4545 = vshll.u32 %v4257, 16
        %v4547 = vrot.slane %v4545, 5
        %v4548 = vsel %vm1237, %v4543, %v4547
        %v4549 = vshrl.u32 %v4257, 16
        %v4551 = vrot.slane %v4549, 4
        %v4552 = vor.u32 %v4551, %v4547
        %v4553 = vrot.slane %v4552, 4
        %v4555 = vshll.u32 %v4258, 16
        %v4557 = vrot.slane %v4555, 5
        %v4558 = vsel %vm1237, %v4553, %v4557
        %v4560 = vshrl.u32 %v4259, 16
        %v4562 = vrot.slane %v4560, 4
        %v4563 = vshll.u32 %v4259, 16
        %v4565 = vrot.slane %v4563, 5
        %v4566 = vor.u32 %v4562, %v4565
        %v4567 = vrot.slane %v4566, 4
        %v4569 = vshll.u32 %v4260, 16
        %v4571 = vrot.slane %v4569, 5
        %v4572 = vsel %vm1237, %v4567, %v4571
        %v4573 = vshrl.u32 %v4260, 16
        %v4575 = vrot.slane %v4573, 4
        %v4576 = vor.u32 %v4575, %v4571
        %v4577 = vrot.slane %v4576, 4
        %v4579 = vshll.u32 %v4261, 16
        %v4581 = vrot.slane %v4579, 5
        %v4582 = vsel %vm1237, %v4577, %v4581
        %v4584 = vshrl.u32 %v4262, 16
        %v4586 = vrot.slane %v4584, 4
        %v4587 = vshll.u32 %v4262, 16
        %v4589 = vrot.slane %v4587, 5
        %v4590 = vor.u32 %v4586, %v4589
        %v4591 = vrot.slane %v4590, 4
        %v4593 = vshll.u32 %v4263, 16
        %v4595 = vrot.slane %v4593, 5
        %v4596 = vsel %vm1237, %v4591, %v4595
        %v4597 = vshrl.u32 %v4263, 16
        %v4599 = vrot.slane %v4597, 4
        %v4600 = vor.u32 %v4599, %v4595
        %v4601 = vrot.slane %v4600, 4
        %v4603 = vshll.u32 %v4264, 16
        %v4605 = vrot.slane %v4603, 5
        %v4606 = vsel %vm1237, %v4601, %v4605
        %v4608 = vshrl.u32 %v4265, 16
        %v4610 = vrot.slane %v4608, 4
        %v4611 = vshll.u32 %v4265, 16
        %v4613 = vrot.slane %v4611, 5
        %v4614 = vor.u32 %v4610, %v4613
        %v4615 = vrot.slane %v4614, 4
        %v4617 = vshll.u32 %v4266, 16
        %v4619 = vrot.slane %v4617, 5
        %v4620 = vsel %vm1237, %v4615, %v4619
        %v4621 = vshrl.u32 %v4266, 16
        %v4623 = vrot.slane %v4621, 4
        %v4624 = vor.u32 %v4623, %v4619
        %v4625 = vrot.slane %v4624, 4
        %v4627 = vshll.u32 %v4267, 16
        %v4629 = vrot.slane %v4627, 5
        %v4630 = vsel %vm1237, %v4625, %v4629
        %v4632 = vshrl.u32 %v4268, 16
        %v4634 = vrot.slane %v4632, 4
        %v4635 = vshll.u32 %v4268, 16
        %v4637 = vrot.slane %v4635, 5
        %v4638 = vor.u32 %v4634, %v4637
        %v4639 = vrot.slane %v4638, 4
        %v4641 = vshll.u32 %v4269, 16
        %v4643 = vrot.slane %v4641, 5
        %v4644 = vsel %vm1237, %v4639, %v4643
        %v4645 = vshrl.u32 %v4269, 16
        %v4647 = vrot.slane %v4645, 4
        %v4648 = vor.u32 %v4647, %v4643
        %v4649 = vrot.slane %v4648, 4
        %v4651 = vshll.u32 %v4270, 16
        %v4653 = vrot.slane %v4651, 5
        %v4654 = vsel %vm1237, %v4649, %v4653
        %s4655 = scalar_lea.vmem %s5, 448
        %v4656 = vld [vmem:[%s4655] sm:$0xf]
        %v4657 = vld [vmem:[%s4655 + $0x4] sm:$0xf]
        %v4658 = vld [vmem:[%s4655 + $0x8] sm:$0xf]
        %v4659 = vld [vmem:[%s4655 + $0xc] sm:$0xf]
        %v4660 = vld [vmem:[%s4655 + $0x10] sm:$0xf]
        %v4661 = vld [vmem:[%s4655 + $0x14] sm:$0xf]
        %v4662 = vld [vmem:[%s4655 + $0x18] sm:$0xf]
        %v4663 = vld [vmem:[%s4655 + $0x1c] sm:$0xf]
        %v4664 = vld [vmem:[%s4655 + $0x20] sm:$0xf]
        %v4665 = vld [vmem:[%s4655 + $0x24] sm:$0xf]
        %v4666 = vld [vmem:[%s4655 + $0x28] sm:$0xf]
        %v4667 = vld [vmem:[%s4655 + $0x2c] sm:$0xf]
        %v4668 = vld [vmem:[%s4655 + $0x30] sm:$0xf]
        %v4669 = vld [vmem:[%s4655 + $0x34] sm:$0xf]
        %v4670 = vld [vmem:[%s4655 + $0x38] sm:$0xf]
        %v4671 = vld [vmem:[%s4655 + $0x3c] sm:$0xf]
        %v4672 = vunpack.c.l.b16 %v4284
        %v4673 = vunpack.c.l.b16 %v4294
        %v4674 = vunpack.c.l.b16 %v4308
        %v4675 = vunpack.c.l.b16 %v4318
        %v4676 = vunpack.c.l.b16 %v4332
        %v4677 = vunpack.c.l.b16 %v4342
        %v4678 = vunpack.c.l.b16 %v4356
        %v4679 = vunpack.c.l.b16 %v4366
        %v4680 = vunpack.c.l.b16 %v4380
        %v4681 = vunpack.c.l.b16 %v4390
        %v4682 = vunpack.c.l.b16 %v4404
        %v4683 = vunpack.c.l.b16 %v4414
        %v4684 = vunpack.c.l.b16 %v4428
        %v4685 = vunpack.c.l.b16 %v4438
        %v4686 = vunpack.c.l.b16 %v4452
        %v4687 = vunpack.c.l.b16 %v4462
        %v4688 = vunpack.c.l.b16 %v4476
        %v4689 = vunpack.c.l.b16 %v4486
        %v4690 = vunpack.c.l.b16 %v4500
        %v4691 = vunpack.c.l.b16 %v4510
        %v4692 = vunpack.c.l.b16 %v4524
        %v4693 = vunpack.c.l.b16 %v4534
        %v4694 = vunpack.c.l.b16 %v4548
        %v4695 = vunpack.c.l.b16 %v4558
        %v4696 = vunpack.c.l.b16 %v4572
        %v4697 = vunpack.c.l.b16 %v4582
        %v4698 = vunpack.c.l.b16 %v4596
        %v4699 = vunpack.c.l.b16 %v4606
        %v4700 = vunpack.c.l.b16 %v4620
        %v4701 = vunpack.c.l.b16 %v4630
        %v4702 = vunpack.c.l.b16 %v4644
        %v4703 = vunpack.c.l.b16 %v4654
        %v4704 = vpack.c.b16 %v4673, %v4672
        %v4705 = vpack.c.b16 %v4675, %v4674
        %v4706 = vpack.c.b16 %v4677, %v4676
        %v4707 = vpack.c.b16 %v4679, %v4678
        %v4708 = vpack.c.b16 %v4681, %v4680
        %v4709 = vpack.c.b16 %v4683, %v4682
        %v4710 = vpack.c.b16 %v4685, %v4684
        %v4711 = vpack.c.b16 %v4687, %v4686
        %v4712 = vpack.c.b16 %v4689, %v4688
        %v4713 = vpack.c.b16 %v4691, %v4690
        %v4714 = vpack.c.b16 %v4693, %v4692
        %v4715 = vpack.c.b16 %v4695, %v4694
        %v4716 = vpack.c.b16 %v4697, %v4696
        %v4717 = vpack.c.b16 %v4699, %v4698
        %v4718 = vpack.c.b16 %v4701, %v4700
        %v4719 = vpack.c.b16 %v4703, %v4702
        %v4752 = vunpack.c.l.b16 %v4656
        %v4753 = vunpack.c.l.b16 %v4657
        %v4754 = vunpack.c.l.b16 %v4658
        %v4755 = vunpack.c.l.b16 %v4659
        %v4756 = vunpack.c.l.b16 %v4660
        %v4757 = vunpack.c.l.b16 %v4661
        %v4758 = vunpack.c.l.b16 %v4662
        %v4759 = vunpack.c.l.b16 %v4663
        %v4760 = vunpack.c.l.b16 %v4664
        %v4761 = vunpack.c.l.b16 %v4665
        %v4762 = vunpack.c.l.b16 %v4666
        %v4763 = vunpack.c.l.b16 %v4667
        %v4764 = vunpack.c.l.b16 %v4668
        %v4765 = vunpack.c.l.b16 %v4669
        %v4766 = vunpack.c.l.b16 %v4670
        %v4767 = vunpack.c.l.b16 %v4671
        %v4768 = vpack.c.b16 %v4753, %v4752
        %v4769 = vpack.c.b16 %v4755, %v4754
        %v4770 = vpack.c.b16 %v4757, %v4756
        %v4771 = vpack.c.b16 %v4759, %v4758
        %v4772 = vpack.c.b16 %v4761, %v4760
        %v4773 = vpack.c.b16 %v4763, %v4762
        %v4774 = vpack.c.b16 %v4765, %v4764
        %v4775 = vpack.c.b16 %v4767, %v4766
        %4784 = vmatpush.bf16.msra.mxu0 %v4775
        %4785 = vmatpush.bf16.msra.mxu0 %v4774
        %4786 = vmatpush.bf16.msra.mxu0 %v4773
        %4787 = vmatpush.bf16.msra.mxu0 %v4772
        %4788 = vmatpush.bf16.msra.mxu0 %v4771
        %4789 = vmatpush.bf16.msra.mxu0 %v4770
        %4790 = vmatpush.bf16.msra.mxu0 %v4769
        %4791 = vmatpush.bf16.msra.mxu0 %v4768
        %4792 = vmatmul.bf16.gmra.mxu0 %v4704
        %v4793 = vpop.f32.mrf.mxu0
        %v4794 = vadd.f32 0.0, %v4793
        %v4795 = vpop.f32.mrf.mxu0
        %v4796 = vadd.f32 0.0, %v4795
        %4797 = vmatmul.bf16.gmra.mxu0 %v4705
        %v4798 = vpop.f32.mrf.mxu0
        %v4799 = vadd.f32 0.0, %v4798
        %v4800 = vpop.f32.mrf.mxu0
        %v4801 = vadd.f32 0.0, %v4800
        %4802 = vmatmul.bf16.gmra.mxu0 %v4706
        %v4803 = vpop.f32.mrf.mxu0
        %v4804 = vadd.f32 0.0, %v4803
        %v4805 = vpop.f32.mrf.mxu0
        %v4806 = vadd.f32 0.0, %v4805
        %4807 = vmatmul.bf16.gmra.mxu0 %v4707
        %v4808 = vpop.f32.mrf.mxu0
        %v4809 = vadd.f32 0.0, %v4808
        %v4810 = vpop.f32.mrf.mxu0
        %v4811 = vadd.f32 0.0, %v4810
        %4812 = vmatmul.bf16.gmra.mxu0 %v4708
        %v4813 = vpop.f32.mrf.mxu0
        %v4814 = vadd.f32 0.0, %v4813
        %v4815 = vpop.f32.mrf.mxu0
        %v4816 = vadd.f32 0.0, %v4815
        %4817 = vmatmul.bf16.gmra.mxu0 %v4709
        %v4818 = vpop.f32.mrf.mxu0
        %v4819 = vadd.f32 0.0, %v4818
        %v4820 = vpop.f32.mrf.mxu0
        %v4821 = vadd.f32 0.0, %v4820
        %4822 = vmatmul.bf16.gmra.mxu0 %v4710
        %v4823 = vpop.f32.mrf.mxu0
        %v4824 = vadd.f32 0.0, %v4823
        %v4825 = vpop.f32.mrf.mxu0
        %v4826 = vadd.f32 0.0, %v4825
        %4827 = vmatmul.bf16.gmra.mxu0 %v4711
        %v4828 = vpop.f32.mrf.mxu0
        %v4829 = vadd.f32 0.0, %v4828
        %v4830 = vpop.f32.mrf.mxu0
        %v4831 = vadd.f32 0.0, %v4830
        %4832 = vmatmul.bf16.gmra.mxu0 %v4712
        %v4833 = vpop.f32.mrf.mxu0
        %v4834 = vadd.f32 0.0, %v4833
        %v4835 = vpop.f32.mrf.mxu0
        %v4836 = vadd.f32 0.0, %v4835
        %4837 = vmatmul.bf16.gmra.mxu0 %v4713
        %v4838 = vpop.f32.mrf.mxu0
        %v4839 = vadd.f32 0.0, %v4838
        %v4840 = vpop.f32.mrf.mxu0
        %v4841 = vadd.f32 0.0, %v4840
        %4842 = vmatmul.bf16.gmra.mxu0 %v4714
        %v4843 = vpop.f32.mrf.mxu0
        %v4844 = vadd.f32 0.0, %v4843
        %v4845 = vpop.f32.mrf.mxu0
        %v4846 = vadd.f32 0.0, %v4845
        %4847 = vmatmul.bf16.gmra.mxu0 %v4715
        %v4848 = vpop.f32.mrf.mxu0
        %v4849 = vadd.f32 0.0, %v4848
        %v4850 = vpop.f32.mrf.mxu0
        %v4851 = vadd.f32 0.0, %v4850
        %4852 = vmatmul.bf16.gmra.mxu0 %v4716
        %v4853 = vpop.f32.mrf.mxu0
        %v4854 = vadd.f32 0.0, %v4853
        %v4855 = vpop.f32.mrf.mxu0
        %v4856 = vadd.f32 0.0, %v4855
        %4857 = vmatmul.bf16.gmra.mxu0 %v4717
        %v4858 = vpop.f32.mrf.mxu0
        %v4859 = vadd.f32 0.0, %v4858
        %v4860 = vpop.f32.mrf.mxu0
        %v4861 = vadd.f32 0.0, %v4860
        %4862 = vmatmul.bf16.gmra.mxu0 %v4718
        %v4863 = vpop.f32.mrf.mxu0
        %v4864 = vadd.f32 0.0, %v4863
        %v4865 = vpop.f32.mrf.mxu0
        %v4866 = vadd.f32 0.0, %v4865
        %4867 = vmatmul.bf16.gmra.mxu0 %v4719
        %v4868 = vpop.f32.mrf.mxu0
        %v4869 = vadd.f32 0.0, %v4868
        %v4870 = vpop.f32.mrf.mxu0
        %v4871 = vadd.f32 0.0, %v4870
        %4872 = vdwg.mxu0
        %v4873 = vadd.f32 %v4191, %v4794
        %v4874 = vadd.f32 %v4192, %v4796
        %v4875 = vadd.f32 %v4193, %v4799
        %v4876 = vadd.f32 %v4194, %v4801
        %v4877 = vadd.f32 %v4195, %v4804
        %v4878 = vadd.f32 %v4196, %v4806
        %v4879 = vadd.f32 %v4197, %v4809
        %v4880 = vadd.f32 %v4198, %v4811
        %v4881 = vadd.f32 %v4199, %v4814
        %v4882 = vadd.f32 %v4200, %v4816
        %v4883 = vadd.f32 %v4201, %v4819
        %v4884 = vadd.f32 %v4202, %v4821
        %v4885 = vadd.f32 %v4203, %v4824
        %v4886 = vadd.f32 %v4204, %v4826
        %v4887 = vadd.f32 %v4205, %v4829
        %v4888 = vadd.f32 %v4206, %v4831
        %v4889 = vadd.f32 %v4207, %v4834
        %v4890 = vadd.f32 %v4208, %v4836
        %v4891 = vadd.f32 %v4209, %v4839
        %v4892 = vadd.f32 %v4210, %v4841
        %v4893 = vadd.f32 %v4211, %v4844
        %v4894 = vadd.f32 %v4212, %v4846
        %v4895 = vadd.f32 %v4213, %v4849
        %v4896 = vadd.f32 %v4214, %v4851
        %v4897 = vadd.f32 %v4215, %v4854
        %v4898 = vadd.f32 %v4216, %v4856
        %v4899 = vadd.f32 %v4217, %v4859
        %v4900 = vadd.f32 %v4218, %v4861
        %v4901 = vadd.f32 %v4219, %v4864
        %v4902 = vadd.f32 %v4220, %v4866
        %v4903 = vadd.f32 %v4221, %v4869
        %v4904 = vadd.f32 %v4222, %v4871
        %v4905 = vld [vmem:[%s3908] sm:$0xe]
        %v4906 = vld [vmem:[%s3908 + $0xc] sm:$0xe]
        %v4907 = vld [vmem:[%s3908 + $0x18] sm:$0xe]
        %v4908 = vld [vmem:[%s3908 + $0x24] sm:$0xe]
        %v4909 = vld [vmem:[%s3908 + $0x30] sm:$0xe]
        %v4910 = vld [vmem:[%s3908 + $0x3c] sm:$0xe]
        %v4911 = vld [vmem:[%s3908 + $0x48] sm:$0xe]
        %v4912 = vld [vmem:[%s3908 + $0x54] sm:$0xe]
        %v4913 = vld [vmem:[%s3908 + $0x60] sm:$0xe]
        %v4914 = vld [vmem:[%s3908 + $0x6c] sm:$0xe]
        %v4915 = vld [vmem:[%s3908 + $0x78] sm:$0xe]
        %v4916 = vld [vmem:[%s3908 + $0x84] sm:$0xe]
        %v4917 = vld [vmem:[%s3908 + $0x90] sm:$0xe]
        %v4918 = vld [vmem:[%s3908 + $0x9c] sm:$0xe]
        %v4919 = vld [vmem:[%s3908 + $0xa8] sm:$0xe]
        %v4920 = vld [vmem:[%s3908 + $0xb4] sm:$0xe]
        %v4969 = vrot.slane %v4905, 5
        %v4970 = vrot.slane %v4969, 4
        %v4971 = vrot.slane %v4224, 5
        %v4972 = vsel %vm2123, %v4970, %v4971
        %v4973 = vrot.slane %v4971, 4
        %v4974 = vrot.slane %v4225, 5
        %v4975 = vsel %vm2123, %v4973, %v4974
        %v4976 = vrot.slane %v4906, 5
        %v4977 = vrot.slane %v4976, 4
        %v4978 = vrot.slane %v4227, 5
        %v4979 = vsel %vm2123, %v4977, %v4978
        %v4980 = vrot.slane %v4978, 4
        %v4981 = vrot.slane %v4228, 5
        %v4982 = vsel %vm2123, %v4980, %v4981
        %v4983 = vrot.slane %v4907, 5
        %v4984 = vrot.slane %v4983, 4
        %v4985 = vrot.slane %v4230, 5
        %v4986 = vsel %vm2123, %v4984, %v4985
        %v4987 = vrot.slane %v4985, 4
        %v4988 = vrot.slane %v4231, 5
        %v4989 = vsel %vm2123, %v4987, %v4988
        %v4990 = vrot.slane %v4908, 5
        %v4991 = vrot.slane %v4990, 4
        %v4992 = vrot.slane %v4233, 5
        %v4993 = vsel %vm2123, %v4991, %v4992
        %v4994 = vrot.slane %v4992, 4
        %v4995 = vrot.slane %v4234, 5
        %v4996 = vsel %vm2123, %v4994, %v4995
        %v4997 = vrot.slane %v4909, 5
        %v4998 = vrot.slane %v4997, 4
        %v4999 = vrot.slane %v4236, 5
        %v5000 = vsel %vm2123, %v4998, %v4999
        %v5001 = vrot.slane %v4999, 4
        %v5002 = vrot.slane %v4237, 5
        %v5003 = vsel %vm2123, %v5001, %v5002
        %v5004 = vrot.slane %v4910, 5
        %v5005 = vrot.slane %v5004, 4
        %v5006 = vrot.slane %v4239, 5
        %v5007 = vsel %vm2123, %v5005, %v5006
        %v5008 = vrot.slane %v5006, 4
        %v5009 = vrot.slane %v4240, 5
        %v5010 = vsel %vm2123, %v5008, %v5009
        %v5011 = vrot.slane %v4911, 5
        %v5012 = vrot.slane %v5011, 4
        %v5013 = vrot.slane %v4242, 5
        %v5014 = vsel %vm2123, %v5012, %v5013
        %v5015 = vrot.slane %v5013, 4
        %v5016 = vrot.slane %v4243, 5
        %v5017 = vsel %vm2123, %v5015, %v5016
        %v5018 = vrot.slane %v4912, 5
        %v5019 = vrot.slane %v5018, 4
        %v5020 = vrot.slane %v4245, 5
        %v5021 = vsel %vm2123, %v5019, %v5020
        %v5022 = vrot.slane %v5020, 4
        %v5023 = vrot.slane %v4246, 5
        %v5024 = vsel %vm2123, %v5022, %v5023
        %v5025 = vrot.slane %v4913, 5
        %v5026 = vrot.slane %v5025, 4
        %v5027 = vrot.slane %v4248, 5
        %v5028 = vsel %vm2123, %v5026, %v5027
        %v5029 = vrot.slane %v5027, 4
        %v5030 = vrot.slane %v4249, 5
        %v5031 = vsel %vm2123, %v5029, %v5030
        %v5032 = vrot.slane %v4914, 5
        %v5033 = vrot.slane %v5032, 4
        %v5034 = vrot.slane %v4251, 5
        %v5035 = vsel %vm2123, %v5033, %v5034
        %v5036 = vrot.slane %v5034, 4
        %v5037 = vrot.slane %v4252, 5
        %v5038 = vsel %vm2123, %v5036, %v5037
        %v5039 = vrot.slane %v4915, 5
        %v5040 = vrot.slane %v5039, 4
        %v5041 = vrot.slane %v4254, 5
        %v5042 = vsel %vm2123, %v5040, %v5041
        %v5043 = vrot.slane %v5041, 4
        %v5044 = vrot.slane %v4255, 5
        %v5045 = vsel %vm2123, %v5043, %v5044
        %v5046 = vrot.slane %v4916, 5
        %v5047 = vrot.slane %v5046, 4
        %v5048 = vrot.slane %v4257, 5
        %v5049 = vsel %vm2123, %v5047, %v5048
        %v5050 = vrot.slane %v5048, 4
        %v5051 = vrot.slane %v4258, 5
        %v5052 = vsel %vm2123, %v5050, %v5051
        %v5053 = vrot.slane %v4917, 5
        %v5054 = vrot.slane %v5053, 4
        %v5055 = vrot.slane %v4260, 5
        %v5056 = vsel %vm2123, %v5054, %v5055
        %v5057 = vrot.slane %v5055, 4
        %v5058 = vrot.slane %v4261, 5
        %v5059 = vsel %vm2123, %v5057, %v5058
        %v5060 = vrot.slane %v4918, 5
        %v5061 = vrot.slane %v5060, 4
        %v5062 = vrot.slane %v4263, 5
        %v5063 = vsel %vm2123, %v5061, %v5062
        %v5064 = vrot.slane %v5062, 4
        %v5065 = vrot.slane %v4264, 5
        %v5066 = vsel %vm2123, %v5064, %v5065
        %v5067 = vrot.slane %v4919, 5
        %v5068 = vrot.slane %v5067, 4
        %v5069 = vrot.slane %v4266, 5
        %v5070 = vsel %vm2123, %v5068, %v5069
        %v5071 = vrot.slane %v5069, 4
        %v5072 = vrot.slane %v4267, 5
        %v5073 = vsel %vm2123, %v5071, %v5072
        %v5074 = vrot.slane %v4920, 5
        %v5075 = vrot.slane %v5074, 4
        %v5076 = vrot.slane %v4269, 5
        %v5077 = vsel %vm2123, %v5075, %v5076
        %v5078 = vrot.slane %v5076, 4
        %v5079 = vrot.slane %v4270, 5
        %v5080 = vsel %vm2123, %v5078, %v5079
        %s5081 = scalar_lea.vmem %s5, 512
        %v5082 = vld [vmem:[%s5081] sm:$0xf]
        %v5083 = vld [vmem:[%s5081 + $0x4] sm:$0xf]
        %v5084 = vld [vmem:[%s5081 + $0x8] sm:$0xf]
        %v5085 = vld [vmem:[%s5081 + $0xc] sm:$0xf]
        %v5086 = vld [vmem:[%s5081 + $0x10] sm:$0xf]
        %v5087 = vld [vmem:[%s5081 + $0x14] sm:$0xf]
        %v5088 = vld [vmem:[%s5081 + $0x18] sm:$0xf]
        %v5089 = vld [vmem:[%s5081 + $0x1c] sm:$0xf]
        %v5090 = vld [vmem:[%s5081 + $0x20] sm:$0xf]
        %v5091 = vld [vmem:[%s5081 + $0x24] sm:$0xf]
        %v5092 = vld [vmem:[%s5081 + $0x28] sm:$0xf]
        %v5093 = vld [vmem:[%s5081 + $0x2c] sm:$0xf]
        %v5094 = vld [vmem:[%s5081 + $0x30] sm:$0xf]
        %v5095 = vld [vmem:[%s5081 + $0x34] sm:$0xf]
        %v5096 = vld [vmem:[%s5081 + $0x38] sm:$0xf]
        %v5097 = vld [vmem:[%s5081 + $0x3c] sm:$0xf]
        %v5098 = vunpack.c.l.b16 %v4972
        %v5099 = vunpack.c.l.b16 %v4975
        %v5100 = vunpack.c.l.b16 %v4979
        %v5101 = vunpack.c.l.b16 %v4982
        %v5102 = vunpack.c.l.b16 %v4986
        %v5103 = vunpack.c.l.b16 %v4989
        %v5104 = vunpack.c.l.b16 %v4993
        %v5105 = vunpack.c.l.b16 %v4996
        %v5106 = vunpack.c.l.b16 %v5000
        %v5107 = vunpack.c.l.b16 %v5003
        %v5108 = vunpack.c.l.b16 %v5007
        %v5109 = vunpack.c.l.b16 %v5010
        %v5110 = vunpack.c.l.b16 %v5014
        %v5111 = vunpack.c.l.b16 %v5017
        %v5112 = vunpack.c.l.b16 %v5021
        %v5113 = vunpack.c.l.b16 %v5024
        %v5114 = vunpack.c.l.b16 %v5028
        %v5115 = vunpack.c.l.b16 %v5031
        %v5116 = vunpack.c.l.b16 %v5035
        %v5117 = vunpack.c.l.b16 %v5038
        %v5118 = vunpack.c.l.b16 %v5042
        %v5119 = vunpack.c.l.b16 %v5045
        %v5120 = vunpack.c.l.b16 %v5049
        %v5121 = vunpack.c.l.b16 %v5052
        %v5122 = vunpack.c.l.b16 %v5056
        %v5123 = vunpack.c.l.b16 %v5059
        %v5124 = vunpack.c.l.b16 %v5063
        %v5125 = vunpack.c.l.b16 %v5066
        %v5126 = vunpack.c.l.b16 %v5070
        %v5127 = vunpack.c.l.b16 %v5073
        %v5128 = vunpack.c.l.b16 %v5077
        %v5129 = vunpack.c.l.b16 %v5080
        %v5130 = vpack.c.b16 %v5099, %v5098
        %v5131 = vpack.c.b16 %v5101, %v5100
        %v5132 = vpack.c.b16 %v5103, %v5102
        %v5133 = vpack.c.b16 %v5105, %v5104
        %v5134 = vpack.c.b16 %v5107, %v5106
        %v5135 = vpack.c.b16 %v5109, %v5108
        %v5136 = vpack.c.b16 %v5111, %v5110
        %v5137 = vpack.c.b16 %v5113, %v5112
        %v5138 = vpack.c.b16 %v5115, %v5114
        %v5139 = vpack.c.b16 %v5117, %v5116
        %v5140 = vpack.c.b16 %v5119, %v5118
        %v5141 = vpack.c.b16 %v5121, %v5120
        %v5142 = vpack.c.b16 %v5123, %v5122
        %v5143 = vpack.c.b16 %v5125, %v5124
        %v5144 = vpack.c.b16 %v5127, %v5126
        %v5145 = vpack.c.b16 %v5129, %v5128
        %v5178 = vunpack.c.l.b16 %v5082
        %v5179 = vunpack.c.l.b16 %v5083
        %v5180 = vunpack.c.l.b16 %v5084
        %v5181 = vunpack.c.l.b16 %v5085
        %v5182 = vunpack.c.l.b16 %v5086
        %v5183 = vunpack.c.l.b16 %v5087
        %v5184 = vunpack.c.l.b16 %v5088
        %v5185 = vunpack.c.l.b16 %v5089
        %v5186 = vunpack.c.l.b16 %v5090
        %v5187 = vunpack.c.l.b16 %v5091
        %v5188 = vunpack.c.l.b16 %v5092
        %v5189 = vunpack.c.l.b16 %v5093
        %v5190 = vunpack.c.l.b16 %v5094
        %v5191 = vunpack.c.l.b16 %v5095
        %v5192 = vunpack.c.l.b16 %v5096
        %v5193 = vunpack.c.l.b16 %v5097
        %v5194 = vpack.c.b16 %v5179, %v5178
        %v5195 = vpack.c.b16 %v5181, %v5180
        %v5196 = vpack.c.b16 %v5183, %v5182
        %v5197 = vpack.c.b16 %v5185, %v5184
        %v5198 = vpack.c.b16 %v5187, %v5186
        %v5199 = vpack.c.b16 %v5189, %v5188
        %v5200 = vpack.c.b16 %v5191, %v5190
        %v5201 = vpack.c.b16 %v5193, %v5192
        %5210 = vmatpush.bf16.msra.mxu0 %v5201
        %5211 = vmatpush.bf16.msra.mxu0 %v5200
        %5212 = vmatpush.bf16.msra.mxu0 %v5199
        %5213 = vmatpush.bf16.msra.mxu0 %v5198
        %5214 = vmatpush.bf16.msra.mxu0 %v5197
        %5215 = vmatpush.bf16.msra.mxu0 %v5196
        %5216 = vmatpush.bf16.msra.mxu0 %v5195
        %5217 = vmatpush.bf16.msra.mxu0 %v5194
        %5218 = vmatmul.bf16.gmra.mxu0 %v5130
        %v5219 = vpop.f32.mrf.mxu0
        %v5220 = vadd.f32 0.0, %v5219
        %v5221 = vpop.f32.mrf.mxu0
        %v5222 = vadd.f32 0.0, %v5221
        %5223 = vmatmul.bf16.gmra.mxu0 %v5131
        %v5224 = vpop.f32.mrf.mxu0
        %v5225 = vadd.f32 0.0, %v5224
        %v5226 = vpop.f32.mrf.mxu0
        %v5227 = vadd.f32 0.0, %v5226
        %5228 = vmatmul.bf16.gmra.mxu0 %v5132
        %v5229 = vpop.f32.mrf.mxu0
        %v5230 = vadd.f32 0.0, %v5229
        %v5231 = vpop.f32.mrf.mxu0
        %v5232 = vadd.f32 0.0, %v5231
        %5233 = vmatmul.bf16.gmra.mxu0 %v5133
        %v5234 = vpop.f32.mrf.mxu0
        %v5235 = vadd.f32 0.0, %v5234
        %v5236 = vpop.f32.mrf.mxu0
        %v5237 = vadd.f32 0.0, %v5236
        %5238 = vmatmul.bf16.gmra.mxu0 %v5134
        %v5239 = vpop.f32.mrf.mxu0
        %v5240 = vadd.f32 0.0, %v5239
        %v5241 = vpop.f32.mrf.mxu0
        %v5242 = vadd.f32 0.0, %v5241
        %5243 = vmatmul.bf16.gmra.mxu0 %v5135
        %v5244 = vpop.f32.mrf.mxu0
        %v5245 = vadd.f32 0.0, %v5244
        %v5246 = vpop.f32.mrf.mxu0
        %v5247 = vadd.f32 0.0, %v5246
        %5248 = vmatmul.bf16.gmra.mxu0 %v5136
        %v5249 = vpop.f32.mrf.mxu0
        %v5250 = vadd.f32 0.0, %v5249
        %v5251 = vpop.f32.mrf.mxu0
        %v5252 = vadd.f32 0.0, %v5251
        %5253 = vmatmul.bf16.gmra.mxu0 %v5137
        %v5254 = vpop.f32.mrf.mxu0
        %v5255 = vadd.f32 0.0, %v5254
        %v5256 = vpop.f32.mrf.mxu0
        %v5257 = vadd.f32 0.0, %v5256
        %5258 = vmatmul.bf16.gmra.mxu0 %v5138
        %v5259 = vpop.f32.mrf.mxu0
        %v5260 = vadd.f32 0.0, %v5259
        %v5261 = vpop.f32.mrf.mxu0
        %v5262 = vadd.f32 0.0, %v5261
        %5263 = vmatmul.bf16.gmra.mxu0 %v5139
        %v5264 = vpop.f32.mrf.mxu0
        %v5265 = vadd.f32 0.0, %v5264
        %v5266 = vpop.f32.mrf.mxu0
        %v5267 = vadd.f32 0.0, %v5266
        %5268 = vmatmul.bf16.gmra.mxu0 %v5140
        %v5269 = vpop.f32.mrf.mxu0
        %v5270 = vadd.f32 0.0, %v5269
        %v5271 = vpop.f32.mrf.mxu0
        %v5272 = vadd.f32 0.0, %v5271
        %5273 = vmatmul.bf16.gmra.mxu0 %v5141
        %v5274 = vpop.f32.mrf.mxu0
        %v5275 = vadd.f32 0.0, %v5274
        %v5276 = vpop.f32.mrf.mxu0
        %v5277 = vadd.f32 0.0, %v5276
        %5278 = vmatmul.bf16.gmra.mxu0 %v5142
        %v5279 = vpop.f32.mrf.mxu0
        %v5280 = vadd.f32 0.0, %v5279
        %v5281 = vpop.f32.mrf.mxu0
        %v5282 = vadd.f32 0.0, %v5281
        %5283 = vmatmul.bf16.gmra.mxu0 %v5143
        %v5284 = vpop.f32.mrf.mxu0
        %v5285 = vadd.f32 0.0, %v5284
        %v5286 = vpop.f32.mrf.mxu0
        %v5287 = vadd.f32 0.0, %v5286
        %5288 = vmatmul.bf16.gmra.mxu0 %v5144
        %v5289 = vpop.f32.mrf.mxu0
        %v5290 = vadd.f32 0.0, %v5289
        %v5291 = vpop.f32.mrf.mxu0
        %v5292 = vadd.f32 0.0, %v5291
        %5293 = vmatmul.bf16.gmra.mxu0 %v5145
        %v5294 = vpop.f32.mrf.mxu0
        %v5295 = vadd.f32 0.0, %v5294
        %v5296 = vpop.f32.mrf.mxu0
        %v5297 = vadd.f32 0.0, %v5296
        %5298 = vdwg.mxu0
        %v5299 = vadd.f32 %v4873, %v5220
        %v5300 = vadd.f32 %v4874, %v5222
        %v5301 = vadd.f32 %v4875, %v5225
        %v5302 = vadd.f32 %v4876, %v5227
        %v5303 = vadd.f32 %v4877, %v5230
        %v5304 = vadd.f32 %v4878, %v5232
        %v5305 = vadd.f32 %v4879, %v5235
        %v5306 = vadd.f32 %v4880, %v5237
        %v5307 = vadd.f32 %v4881, %v5240
        %v5308 = vadd.f32 %v4882, %v5242
        %v5309 = vadd.f32 %v4883, %v5245
        %v5310 = vadd.f32 %v4884, %v5247
        %v5311 = vadd.f32 %v4885, %v5250
        %v5312 = vadd.f32 %v4886, %v5252
        %v5313 = vadd.f32 %v4887, %v5255
        %v5314 = vadd.f32 %v4888, %v5257
        %v5315 = vadd.f32 %v4889, %v5260
        %v5316 = vadd.f32 %v4890, %v5262
        %v5317 = vadd.f32 %v4891, %v5265
        %v5318 = vadd.f32 %v4892, %v5267
        %v5319 = vadd.f32 %v4893, %v5270
        %v5320 = vadd.f32 %v4894, %v5272
        %v5321 = vadd.f32 %v4895, %v5275
        %v5322 = vadd.f32 %v4896, %v5277
        %v5323 = vadd.f32 %v4897, %v5280
        %v5324 = vadd.f32 %v4898, %v5282
        %v5325 = vadd.f32 %v4899, %v5285
        %v5326 = vadd.f32 %v4900, %v5287
        %v5327 = vadd.f32 %v4901, %v5290
        %v5328 = vadd.f32 %v4902, %v5292
        %v5329 = vadd.f32 %v4903, %v5295
        %v5330 = vadd.f32 %v4904, %v5297
        %vm5331 = vcmask 261120
        %5332 = vst.msk [vmem:[%s244] sm:$0xff] %vm5331, %v5299
        %5333 = vst.msk [vmem:[%s244 + $0x8] sm:$0xff] %vm5331, %v5300
        %5334 = vst.msk [vmem:[%s244 + $0x10] sm:$0xff] %vm5331, %v5301
        %5335 = vst.msk [vmem:[%s244 + $0x18] sm:$0xff] %vm5331, %v5302
        %5336 = vst.msk [vmem:[%s244 + $0x20] sm:$0xff] %vm5331, %v5303
        %5337 = vst.msk [vmem:[%s244 + $0x28] sm:$0xff] %vm5331, %v5304
        %5338 = vst.msk [vmem:[%s244 + $0x30] sm:$0xff] %vm5331, %v5305
        %5339 = vst.msk [vmem:[%s244 + $0x38] sm:$0xff] %vm5331, %v5306
        %5340 = vst.msk [vmem:[%s244 + $0x40] sm:$0xff] %vm5331, %v5307
        %5341 = vst.msk [vmem:[%s244 + $0x48] sm:$0xff] %vm5331, %v5308
        %5342 = vst.msk [vmem:[%s244 + $0x50] sm:$0xff] %vm5331, %v5309
        %5343 = vst.msk [vmem:[%s244 + $0x58] sm:$0xff] %vm5331, %v5310
        %5344 = vst.msk [vmem:[%s244 + $0x60] sm:$0xff] %vm5331, %v5311
        %5345 = vst.msk [vmem:[%s244 + $0x68] sm:$0xff] %vm5331, %v5312
        %5346 = vst.msk [vmem:[%s244 + $0x70] sm:$0xff] %vm5331, %v5313
        %5347 = vst.msk [vmem:[%s244 + $0x78] sm:$0xff] %vm5331, %v5314
        %5348 = vst.msk [vmem:[%s244 + $0x80] sm:$0xff] %vm5331, %v5315
        %5349 = vst.msk [vmem:[%s244 + $0x88] sm:$0xff] %vm5331, %v5316
        %5350 = vst.msk [vmem:[%s244 + $0x90] sm:$0xff] %vm5331, %v5317
        %5351 = vst.msk [vmem:[%s244 + $0x98] sm:$0xff] %vm5331, %v5318
        %5352 = vst.msk [vmem:[%s244 + $0xa0] sm:$0xff] %vm5331, %v5319
        %5353 = vst.msk [vmem:[%s244 + $0xa8] sm:$0xff] %vm5331, %v5320
        %5354 = vst.msk [vmem:[%s244 + $0xb0] sm:$0xff] %vm5331, %v5321
        %5355 = vst.msk [vmem:[%s244 + $0xb8] sm:$0xff] %vm5331, %v5322
        %5356 = vst.msk [vmem:[%s244 + $0xc0] sm:$0xff] %vm5331, %v5323
        %5357 = vst.msk [vmem:[%s244 + $0xc8] sm:$0xff] %vm5331, %v5324
        %5358 = vst.msk [vmem:[%s244 + $0xd0] sm:$0xff] %vm5331, %v5325
        %5359 = vst.msk [vmem:[%s244 + $0xd8] sm:$0xff] %vm5331, %v5326
        %5360 = vst.msk [vmem:[%s244 + $0xe0] sm:$0xff] %vm5331, %v5327
        %5361 = vst.msk [vmem:[%s244 + $0xe8] sm:$0xff] %vm5331, %v5328
        %5362 = vst.msk [vmem:[%s244 + $0xf0] sm:$0xff] %vm5331, %v5329
        %5363 = vst.msk [vmem:[%s244 + $0xf8] sm:$0xff] %vm5331, %v5330
        %s5364 = sand.u32 %s159, 1
        %s5365 = scalar_lea.sflag [#allocation4], %s5364
        %s5366 = sand.u32 %s159, 1
        %s5367 = smul.addr %s5366, 256
        %s5368 = scalar_lea.vmem [#allocation3], %s5367
        // Predicated region
        $region45: #{tpu_custom_call.1} parent=43 // pred_check
          %p5369 = pneg %p169
        $region46: #{tpu_custom_call.1} parent=43 // pred_check_branch
          %5371 = sbr.rel (%p5369) target = $region48
        $region47: #{tpu_custom_call.1} parent=43 // pred_region
          %5373 = vsyncadd %s5365, 0
          %s5374 = smul.addr %s20, 32
          %s5375 = smul.addr %s5374, 8
          %s5376 = scalar_lea.hbm %s6, %s5375
          %s5377 = sshll.u32 %s5368, 4
          %s5378 = int_to_ptr.vmem [resolvable:$true] %s5377
          %s5379 = sshll.u32 %s5376, 4
          %s5380 = int_to_ptr.hbm [resolvable:$true] %s5379
          %5385 = dma.vmem_to_hbm [thread:$0]  %s5378, 4096, %s5380, %s5365, 128, 128, 8
        $region48: #{tpu_custom_call.1} parent=43 // pred_fallthru
          _
      $region44: #{tpu_custom_call.1} parent=5 // pred_fallthru
        _
      %p5386 = scmp.le.s32.totalorder 2, %s15
      // Predicated region
      $region49: #{tpu_custom_call.1} parent=5 // pred_check
        %p5387 = pneg %p5386
      $region50: #{tpu_custom_call.1} parent=5 // pred_check_branch
        %5389 = sbr.rel (%p5387) target = $region52
      $region51: #{tpu_custom_call.1} parent=5 // pred_region
        %s5390 = ssub.s32 %s15, 2
        // Predicated region
        $region53: #{tpu_custom_call.1} parent=51 // pred_check
          %p5391 = pneg %p175
        $region54: #{tpu_custom_call.1} parent=51 // pred_check_branch
          %5393 = sbr.rel (%p5391) target = $region56
        $region55: #{tpu_custom_call.1} parent=51 // pred_region
          %s5394 = sand.u32 %s160, 1
          %s5395 = scalar_lea.sflag [#allocation4], %s5394
          %s5396 = sand.u32 %s160, 1
          %s5397 = smul.addr %s5396, 256
          %s5398 = scalar_lea.vmem [#allocation3], %s5397
          %5400 = dma.done %s5395, 4096
        $region56: #{tpu_custom_call.1} parent=51 // pred_fallthru
          _
      $region52: #{tpu_custom_call.1} parent=5 // pred_fallthru
        _
    $region6: #{tpu_custom_call.1} parent=1 // loop_footer
      %s19 = sadd.s32 1, %s15
    $region7: #{tpu_custom_call.1} parent=1 // loop_footer_branch
      %14 = sbr.rel target = $region3
    $region8: #{tpu_custom_call.1} parent=1 // loop_exit
      _
    %5401 = vsyncpa [#allocation4], 1
    %s5402 = scalar_lea.sflag [#allocation4], 1
    %5403 = vsyncpa %s5402, 1

</llo_original>
